<compile_context>
chip_gen: v7x
topology: tpu7x:2x2x1
jax: 0.10.0
libtpu: 0.0.40
codegen_flags: <defaults>
</compile_context>

<pallas_src>
import jax
import jax.numpy as jnp
from jax.experimental import pallas as pl
from jax.experimental.pallas import tpu as pltpu

# ---------------- config (small synthetic BERT) ----------------
B, S, H = 2, 8, 32            # batch, seq, hidden
NUM_HEADS, HEAD_DIM = 4, 8    # H = NUM_HEADS * HEAD_DIM
INTER = 64                    # FFN intermediate size
VOCAB, TYPES = 32, 2
N_LAYERS = 2
LN_EPS = 1e-12                # BERT LayerNorm eps / F.normalize eps
G = NUM_HEADS * B             # (head, batch) folded into one batched-matmul axis
SCALE = 1.0 / float(HEAD_DIM) ** 0.5
NEG_INF = -1e9                # additive attention-mask constant (f32 everywhere)


def _ln(x, g, b):
    mu = jnp.mean(x, axis=-1, keepdims=True)
    xc = x - mu
    var = jnp.mean(xc * xc, axis=-1, keepdims=True)
    return xc * jax.lax.rsqrt(var + LN_EPS) * g + b


def _erf(x):
    # Abramowitz & Stegun 7.1.26; only abs/exp/recip/mul, so it lands on VPU + EUP.
    a1, a2, a3, a4, a5 = 0.254829592, -0.284496736, 1.421413741, -1.453152027, 1.061405429
    p = 0.3275911
    ax = jnp.abs(x)
    t = pl.reciprocal(1.0 + p * ax, approx=True)      # EUP slot instead of VPU divide
    poly = ((((a5 * t + a4) * t + a3) * t + a2) * t + a1) * t
    y = 1.0 - poly * jnp.exp(-ax * ax)
    return jnp.where(x < 0, -y, y)


def _gelu_exact(x):
    # HF BertModel uses exact (erf) GELU, not the tanh approximation.
    return 0.5 * x * (1.0 + _erf(x * 0.7071067811865476))


def _l2_normalize(v):
    # torch F.normalize(p=2, eps=1e-12): v / max(||v||, eps) == v * rsqrt(max(ss, eps^2))
    ss = jnp.sum(v * v, axis=-1, keepdims=True)
    return v * jax.lax.rsqrt(jnp.maximum(ss, LN_EPS * LN_EPS))


# ---------------- fused Pallas kernel ----------------

def fused_bert_kernel(tok_col_ref, seg_col_ref, tok_keys_ref,
                      word_emb_ref, type_emb_ref, pos_ref, embln_ref,
                      wqkv_ref, bqkv_ref, wo_ref, vech_ref,
                      wi_ref, bi_ref, wo2_ref,
                      text_ref, triple_ref):
    # tok_col_ref:  (B*S, 1) int32 token ids (row per (b, s), b-major)
    # seg_col_ref:  (B*S, 1) int32 segment ids
    # tok_keys_ref: (B, 1, S) int32 token ids (key-position layout for the attn bias)
    # word_emb_ref: (VOCAB, H); type_emb_ref: (TYPES, H); pos_ref: (B*S, H) pre-tiled
    # embln_ref:    (2, H)  embedding LayerNorm gamma / beta
    # wqkv_ref:     (L, H, 3H) fused [Wq | Wk | Wv]; bqkv_ref: (L, 1, 3H)
    # wo_ref:       (L, H, H); vech_ref: (L, 6, H) = [bo, ln1_g, ln1_b, bo2, ln2_g, ln2_b]
    # wi_ref: (L, H, INTER); bi_ref: (L, 1, INTER); wo2_ref: (L, INTER, H)
    tok_col = tok_col_ref[...]                                  # (B*S, 1) int32
    seg_col = seg_col_ref[...].astype(jnp.float32)              # (B*S, 1)
    notpad_col = (tok_col > 0).astype(jnp.float32)              # (B*S, 1)

    # ---- embeddings: one-hot gather as a single MXU matmul + 2-way type blend ----
    vocab_iota = jax.lax.broadcasted_iota(jnp.int32, (B * S, VOCAB), 1)
    onehot = (tok_col == vocab_iota).astype(jnp.float32)        # (B*S, VOCAB)
    word_e = jnp.dot(onehot, word_emb_ref[...],
                     preferred_element_type=jnp.float32)        # (B*S, H)
    t0 = type_emb_ref[0:1, :]
    t1 = type_emb_ref[1:2, :]
    type_e = t0 + seg_col * (t1 - t0)                           # TYPES == 2 blend
    embln = embln_ref[...]
    x2 = _ln(word_e + type_e + pos_ref[...], embln[0:1], embln[1:2])   # (B*S, H) resident

    # ---- additive attention bias from the padding mask, head-major g = n*B + b ----
    notpad_k = (tok_keys_ref[...] > 0).astype(jnp.float32)      # (B, 1, S)
    bias_b = (1.0 - notpad_k) * NEG_INF
    bias_g = jnp.broadcast_to(bias_b[None], (NUM_HEADS, B, 1, S)).reshape(G, 1, S)

    for l in range(N_LAYERS):                                   # static unroll
        wqkv = wqkv_ref[l]                                      # (H, 3H)
        bqkv = bqkv_ref[l]                                      # (1, 3H)
        wo = wo_ref[l]                                          # (H, H)
        vech = vech_ref[l]                                      # (6, H)
        bo, g1, b1 = vech[0:1], vech[1:2], vech[2:3]
        bo2, g2, b2 = vech[3:4], vech[4:5], vech[5:6]
        wi, bi, wo2 = wi_ref[l], bi_ref[l], wo2_ref[l]

        # ---- self-attention: ONE fused lane-dense QKV projection ----
        qkv = jnp.dot(x2, wqkv, preferred_element_type=jnp.float32) + bqkv   # (B*S, 3H)

        def head_view(base):
            # (B*NH, S, HEAD_DIM) view, materialized only for the SxS score step
            return jnp.concatenate(
                [qkv[:, base + n * HEAD_DIM: base + (n + 1) * HEAD_DIM]
                 .reshape(B, S, HEAD_DIM) for n in range(NUM_HEADS)], axis=0)

        qg = head_view(0)                                       # (G, S, HD)
        kg = head_view(H)
        vg = head_view(2 * H)

        s = jnp.einsum('gqd,gkd->gqk', qg, kg,
                       preferred_element_type=jnp.float32) * SCALE + bias_g
        e = jnp.exp(s - jnp.max(s, axis=-1, keepdims=True))
        p = e * pl.reciprocal(jnp.sum(e, axis=-1, keepdims=True), approx=True)
        ctxg = jnp.einsum('gqk,gkd->gqd', p, vg,
                          preferred_element_type=jnp.float32)   # (G, S, HD)

        # heads back onto the lane axis, then ONE (B*S,H)@(H,H) output projection
        ctx = jnp.concatenate(
            [ctxg[n * B:(n + 1) * B].reshape(B * S, HEAD_DIM)
             for n in range(NUM_HEADS)], axis=-1)               # (B*S, H)
        attn = jnp.dot(ctx, wo, preferred_element_type=jnp.float32) + bo
        x1 = _ln(x2 + attn, g1, b1)

        # ---- feed-forward ----
        h1 = _gelu_exact(jnp.dot(x1, wi, preferred_element_type=jnp.float32) + bi)
        ffn = jnp.dot(h1, wo2, preferred_element_type=jnp.float32) + bo2
        x2 = _ln(x1 + ffn, g2, b2)

    # ---- segment-masked pooling (block-diagonal selector matmuls) + L2 normalize ----
    r = jax.lax.broadcasted_iota(jnp.int32, (B, B * S), 1)
    ob = jax.lax.broadcasted_iota(jnp.int32, (B, B * S), 0)
    sel = ((r >= ob * S) & (r < (ob + 1) * S)).astype(jnp.float32)     # (B, B*S)
    text_mask = (1.0 - seg_col) * notpad_col                            # (B*S, 1)
    triple_mask = seg_col
    text_p = jnp.dot(sel, x2 * text_mask, preferred_element_type=jnp.float32)     # (B, H)
    triple_p = jnp.dot(sel, x2 * triple_mask, preferred_element_type=jnp.float32)
    text_ref[...] = _l2_normalize(text_p)
    triple_ref[...] = _l2_normalize(triple_p)


# ---------------- parameters (deterministic synthetic init) ----------------

def init_params(key):
    keys = jax.random.split(key, 64)
    it = iter(keys)

    def nrm(shape):
        return (0.02 * jax.random.normal(next(it), shape)).astype(jnp.float32)

    params = {
        "word_emb": nrm((VOCAB, H)),
        "pos_emb": nrm((S, H)),
        "type_emb": nrm((TYPES, H)),
        "emb_ln_g": jnp.ones((1, H), jnp.float32),
        "emb_ln_b": jnp.zeros((1, H), jnp.float32),
        "layers": [],
    }
    for _ in range(N_LAYERS):
        params["layers"].append(dict(
            wq=nrm((H, H)), bq=jnp.zeros((1, H), jnp.float32),
            wk=nrm((H, H)), bk=jnp.zeros((1, H), jnp.float32),
            wv=nrm((H, H)), bv=jnp.zeros((1, H), jnp.float32),
            wo=nrm((H, H)), bo=jnp.zeros((1, H), jnp.float32),
            g1=jnp.ones((1, H), jnp.float32), b1=jnp.zeros((1, H), jnp.float32),
            wi=nrm((H, INTER)), bi=jnp.zeros((1, INTER), jnp.float32),
            wo2=nrm((INTER, H)), bo2=jnp.zeros((1, H), jnp.float32),
            g2=jnp.ones((1, H), jnp.float32), b2=jnp.zeros((1, H), jnp.float32),
        ))
    return params


def pack_params(params):
    """Pack per-layer weights into a few stacked arrays (no head/batch replication)."""
    def pack_layer(lp):
        wqkv = jnp.concatenate([lp["wq"], lp["wk"], lp["wv"]], axis=1)     # (H, 3H)
        bqkv = jnp.concatenate([lp["bq"], lp["bk"], lp["bv"]], axis=1)     # (1, 3H)
        vech = jnp.stack([lp["bo"][0], lp["g1"][0], lp["b1"][0],
                          lp["bo2"][0], lp["g2"][0], lp["b2"][0]], axis=0)  # (6, H)
        return wqkv, bqkv, lp["wo"], vech, lp["wi"], lp["bi"], lp["wo2"]

    per_layer = [pack_layer(lp) for lp in params["layers"]]
    wqkv, bqkv, wo, vech, wi, bi, wo2 = (jnp.stack(x) for x in zip(*per_layer))
    return dict(
        word_emb=params["word_emb"],
        type_emb=params["type_emb"],
        pos_emb_tiled=jnp.tile(params["pos_emb"], (B, 1)),                 # (B*S, H)
        emb_ln=jnp.concatenate([params["emb_ln_g"], params["emb_ln_b"]], axis=0),  # (2, H)
        wqkv=wqkv, bqkv=bqkv, wo=wo, vech=vech, wi=wi, bi=bi, wo2=wo2)


# ---------------- forward (matches BERT.forward semantics) ----------------

@jax.jit
def bert_forward(packed, tokens, segments):
    # TODO(synk): string tokenization / pretrained HF BertModel weights have no Pallas
    # equivalent; token ids / segment ids are direct inputs and the encoder weights are
    # synthetic.  The attention mask equals the non-padding mask (tokens > 0), exactly as
    # the original batching code builds it, and is derived inside the kernel.
    tok = tokens.astype(jnp.int32)
    seg = segments.astype(jnp.int32)
    tok_col = tok.reshape(B * S, 1)
    seg_col = seg.reshape(B * S, 1)
    tok_keys = tok.reshape(B, 1, S)

    vspec = pl.BlockSpec(memory_space=pltpu.MemorySpace.VMEM)
    text_out, triple_out = pl.pallas_call(
        fused_bert_kernel,
        out_shape=(jax.ShapeDtypeStruct((B, H), jnp.float32),
                   jax.ShapeDtypeStruct((B, H), jnp.float32)),
        in_specs=[vspec] * 14,
        out_specs=(vspec, vspec),
        cost_estimate=pl.CostEstimate(flops=600_000, transcendentals=6_000,
                                      bytes_accessed=76_000),
    )(tok_col, seg_col, tok_keys,
      packed["word_emb"], packed["type_emb"], packed["pos_emb_tiled"], packed["emb_ln"],
      packed["wqkv"], packed["bqkv"], packed["wo"], packed["vech"],
      packed["wi"], packed["bi"], packed["wo2"])
    return text_out, triple_out


if __name__ == "__main__":
    key = jax.random.PRNGKey(0)
    pkey, tkey = jax.random.split(key)
    params = init_params(pkey)
    packed = pack_params(params)

    # deterministic synthetic token ids; batch element 1 has 2 padded positions
    tokens = jax.random.randint(tkey, (B, S), 1, VOCAB, dtype=jnp.int32)
    tokens = tokens.at[1, -2:].set(0)
    segments = jnp.array([[0, 0, 0, 0, 1, 1, 1, 1],
                          [0, 0, 0, 1, 1, 1, 0, 0]], dtype=jnp.int32)

    text_out, triple_out = bert_forward(packed, tokens, segments)
    jax.block_until_ready((text_out, triple_out))
    assert text_out.shape == (B, H) and triple_out.shape == (B, H)
    print("KERNEL_OK")
</pallas_src>

<mosaic_0001>
module attributes {stable_mosaic.version = 11 : i64} {
  func.func @fused_bert_kernel(%arg0: memref<16x1xi32, #tpu.memory_space<vmem>>, %arg1: memref<16x1xi32, #tpu.memory_space<vmem>>, %arg2: memref<2x1x8xi32, #tpu.memory_space<vmem>>, %arg3: memref<32x32xf32, #tpu.memory_space<vmem>>, %arg4: memref<2x32xf32, #tpu.memory_space<vmem>>, %arg5: memref<16x32xf32, #tpu.memory_space<vmem>>, %arg6: memref<2x32xf32, #tpu.memory_space<vmem>>, %arg7: memref<2x32x96xf32, #tpu.memory_space<vmem>>, %arg8: memref<2x1x96xf32, #tpu.memory_space<vmem>>, %arg9: memref<2x32x32xf32, #tpu.memory_space<vmem>>, %arg10: memref<2x6x32xf32, #tpu.memory_space<vmem>>, %arg11: memref<2x32x64xf32, #tpu.memory_space<vmem>>, %arg12: memref<2x1x64xf32, #tpu.memory_space<vmem>>, %arg13: memref<2x64x32xf32, #tpu.memory_space<vmem>>, %arg14: memref<2x32xf32, #tpu.memory_space<vmem>>, %arg15: memref<2x32xf32, #tpu.memory_space<vmem>>) attributes {dimension_semantics = [], scalar_prefetch = 0 : i64, scratch_operands = 0 : i64, tpu.core_type = #tpu.core_type<tc>} {
    %c0 = arith.constant 0 : index
    %c0_0 = arith.constant 0 : index
    %0 = vector.load %arg0[%c0, %c0_0] : memref<16x1xi32, #tpu.memory_space<vmem>>, vector<16x1xi32>
    %c0_1 = arith.constant 0 : index
    %c0_2 = arith.constant 0 : index
    %1 = vector.load %arg1[%c0_1, %c0_2] : memref<16x1xi32, #tpu.memory_space<vmem>>, vector<16x1xi32>
    %2 = arith.sitofp %1 : vector<16x1xi32> to vector<16x1xf32>
    %c0_i32 = arith.constant 0 : i32
    %3 = vector.broadcast %c0_i32 : i32 to vector<16x1xi32>
    %4 = arith.cmpi sgt, %0, %3 : vector<16x1xi32>
    %5 = arith.extui %4 : vector<16x1xi1> to vector<16x1xi32>
    %6 = arith.sitofp %5 : vector<16x1xi32> to vector<16x1xf32>
    %7 = tpu.iota {dimensions = array<i32: 1>} : vector<16x32xi32>
    %8 = vector.broadcast %0 : vector<16x1xi32> to vector<16x32xi32>
    %9 = arith.cmpi eq, %8, %7 : vector<16x32xi32>
    %10 = arith.extui %9 : vector<16x32xi1> to vector<16x32xi32>
    %11 = arith.sitofp %10 : vector<16x32xi32> to vector<16x32xf32>
    %c0_3 = arith.constant 0 : index
    %c0_4 = arith.constant 0 : index
    %12 = vector.load %arg3[%c0_3, %c0_4] : memref<32x32xf32, #tpu.memory_space<vmem>>, vector<32x32xf32>
    %cst = arith.constant dense<0.000000e+00> : vector<16x32xf32>
    %13 = tpu.matmul %11, %12, %cst {dimension_numbers = #tpu.dot_dimension_numbers<[1], [0], [0], [1], [0, 0, 1, 1], [], []>} : vector<16x32xf32>, vector<32x32xf32>, vector<16x32xf32> -> vector<16x32xf32>
    %c0_5 = arith.constant 0 : index
    %c0_6 = arith.constant 0 : index
    %14 = vector.load %arg4[%c0_5, %c0_6] : memref<2x32xf32, #tpu.memory_space<vmem>>, vector<1x32xf32>
    %c1 = arith.constant 1 : index
    %c0_7 = arith.constant 0 : index
    %15 = vector.load %arg4[%c1, %c0_7] : memref<2x32xf32, #tpu.memory_space<vmem>>, vector<1x32xf32>
    %16 = arith.subf %15, %14 : vector<1x32xf32>
    %17 = vector.broadcast %2 : vector<16x1xf32> to vector<16x32xf32>
    %18 = vector.broadcast %16 : vector<1x32xf32> to vector<16x32xf32>
    %19 = arith.mulf %17, %18 : vector<16x32xf32>
    %20 = vector.broadcast %14 : vector<1x32xf32> to vector<16x32xf32>
    %21 = arith.addf %20, %19 : vector<16x32xf32>
    %c0_8 = arith.constant 0 : index
    %c0_9 = arith.constant 0 : index
    %22 = vector.load %arg6[%c0_8, %c0_9] : memref<2x32xf32, #tpu.memory_space<vmem>>, vector<2x32xf32>
    %23 = arith.addf %13, %21 : vector<16x32xf32>
    %c0_10 = arith.constant 0 : index
    %c0_11 = arith.constant 0 : index
    %24 = vector.load %arg5[%c0_10, %c0_11] : memref<16x32xf32, #tpu.memory_space<vmem>>, vector<16x32xf32>
    %25 = arith.addf %23, %24 : vector<16x32xf32>
    %26 = vector.extract_strided_slice %22 {offsets = [0, 0], sizes = [1, 32], strides = [1, 1]} : vector<2x32xf32> to vector<1x32xf32>
    %27 = vector.extract_strided_slice %22 {offsets = [1, 0], sizes = [1, 32], strides = [1, 1]} : vector<2x32xf32> to vector<1x32xf32>
    %cst_12 = arith.constant dense<0.000000e+00> : vector<16xf32>
    %28 = vector.multi_reduction <add>, %25, %cst_12 [1] : vector<16x32xf32> to vector<16xf32>
    %29 = vector.shape_cast %28 : vector<16xf32> to vector<16x1xf32>
    %cst_13 = arith.constant 3.200000e+01 : f32
    %30 = vector.broadcast %cst_13 : f32 to vector<16x1xf32>
    %31 = arith.divf %29, %30 : vector<16x1xf32>
    %32 = vector.broadcast %31 : vector<16x1xf32> to vector<16x32xf32>
    %33 = arith.subf %25, %32 : vector<16x32xf32>
    %34 = arith.mulf %33, %33 : vector<16x32xf32>
    %cst_14 = arith.constant dense<0.000000e+00> : vector<16xf32>
    %35 = vector.multi_reduction <add>, %34, %cst_14 [1] : vector<16x32xf32> to vector<16xf32>
    %36 = vector.shape_cast %35 : vector<16xf32> to vector<16x1xf32>
    %cst_15 = arith.constant 3.200000e+01 : f32
    %37 = vector.broadcast %cst_15 : f32 to vector<16x1xf32>
    %38 = arith.divf %36, %37 : vector<16x1xf32>
    %cst_16 = arith.constant 9.99999996E-13 : f32
    %39 = vector.broadcast %cst_16 : f32 to vector<16x1xf32>
    %40 = arith.addf %38, %39 : vector<16x1xf32>
    %41 = math.rsqrt %40 : vector<16x1xf32>
    %42 = vector.broadcast %41 : vector<16x1xf32> to vector<16x32xf32>
    %43 = arith.mulf %33, %42 : vector<16x32xf32>
    %44 = vector.broadcast %26 : vector<1x32xf32> to vector<16x32xf32>
    %45 = arith.mulf %43, %44 : vector<16x32xf32>
    %46 = vector.broadcast %27 : vector<1x32xf32> to vector<16x32xf32>
    %47 = arith.addf %45, %46 : vector<16x32xf32>
    %c0_17 = arith.constant 0 : index
    %c0_18 = arith.constant 0 : index
    %c0_19 = arith.constant 0 : index
    %48 = vector.load %arg2[%c0_17, %c0_18, %c0_19] : memref<2x1x8xi32, #tpu.memory_space<vmem>>, vector<2x1x8xi32>
    %c0_i32_20 = arith.constant 0 : i32
    %49 = vector.broadcast %c0_i32_20 : i32 to vector<2x1x8xi32>
    %50 = arith.cmpi sgt, %48, %49 : vector<2x1x8xi32>
    %51 = arith.extui %50 : vector<2x1x8xi1> to vector<2x1x8xi32>
    %52 = arith.sitofp %51 : vector<2x1x8xi32> to vector<2x1x8xf32>
    %cst_21 = arith.constant 1.000000e+00 : f32
    %53 = vector.broadcast %cst_21 : f32 to vector<2x1x8xf32>
    %54 = arith.subf %53, %52 : vector<2x1x8xf32>
    %cst_22 = arith.constant -1.000000e+09 : f32
    %55 = vector.broadcast %cst_22 : f32 to vector<2x1x8xf32>
    %56 = arith.mulf %54, %55 : vector<2x1x8xf32>
    %57 = vector.shape_cast %56 : vector<2x1x8xf32> to vector<1x2x1x8xf32>
    %58 = vector.shape_cast %57 : vector<1x2x1x8xf32> to vector<1x2x1x8xf32>
    %59 = vector.broadcast %58 : vector<1x2x1x8xf32> to vector<4x2x1x8xf32>
    %60 = vector.shape_cast %59 : vector<4x2x1x8xf32> to vector<8x1x8xf32>
    %c0_23 = arith.constant 0 : index
    %c0_24 = arith.constant 0 : index
    %c0_25 = arith.constant 0 : index
    %61 = vector.load %arg7[%c0_23, %c0_24, %c0_25] : memref<2x32x96xf32, #tpu.memory_space<vmem>>, vector<1x32x96xf32>
    %62 = vector.shape_cast %61 : vector<1x32x96xf32> to vector<32x96xf32>
    %c0_26 = arith.constant 0 : index
    %c0_27 = arith.constant 0 : index
    %c0_28 = arith.constant 0 : index
    %63 = vector.load %arg8[%c0_26, %c0_27, %c0_28] : memref<2x1x96xf32, #tpu.memory_space<vmem>>, vector<1x1x96xf32>
    %64 = vector.shape_cast %63 : vector<1x1x96xf32> to vector<1x96xf32>
    %c0_29 = arith.constant 0 : index
    %c0_30 = arith.constant 0 : index
    %c0_31 = arith.constant 0 : index
    %65 = vector.load %arg9[%c0_29, %c0_30, %c0_31] : memref<2x32x32xf32, #tpu.memory_space<vmem>>, vector<1x32x32xf32>
    %66 = vector.shape_cast %65 : vector<1x32x32xf32> to vector<32x32xf32>
    %c0_32 = arith.constant 0 : index
    %c0_33 = arith.constant 0 : index
    %c0_34 = arith.constant 0 : index
    %67 = vector.load %arg10[%c0_32, %c0_33, %c0_34] : memref<2x6x32xf32, #tpu.memory_space<vmem>>, vector<1x6x32xf32>
    %68 = vector.shape_cast %67 : vector<1x6x32xf32> to vector<6x32xf32>
    %69 = vector.extract_strided_slice %68 {offsets = [0, 0], sizes = [1, 32], strides = [1, 1]} : vector<6x32xf32> to vector<1x32xf32>
    %70 = vector.extract_strided_slice %68 {offsets = [1, 0], sizes = [1, 32], strides = [1, 1]} : vector<6x32xf32> to vector<1x32xf32>
    %71 = vector.extract_strided_slice %68 {offsets = [2, 0], sizes = [1, 32], strides = [1, 1]} : vector<6x32xf32> to vector<1x32xf32>
    %72 = vector.extract_strided_slice %68 {offsets = [3, 0], sizes = [1, 32], strides = [1, 1]} : vector<6x32xf32> to vector<1x32xf32>
    %73 = vector.extract_strided_slice %68 {offsets = [4, 0], sizes = [1, 32], strides = [1, 1]} : vector<6x32xf32> to vector<1x32xf32>
    %74 = vector.extract_strided_slice %68 {offsets = [5, 0], sizes = [1, 32], strides = [1, 1]} : vector<6x32xf32> to vector<1x32xf32>
    %c0_35 = arith.constant 0 : index
    %c0_36 = arith.constant 0 : index
    %c0_37 = arith.constant 0 : index
    %75 = vector.load %arg11[%c0_35, %c0_36, %c0_37] : memref<2x32x64xf32, #tpu.memory_space<vmem>>, vector<1x32x64xf32>
    %76 = vector.shape_cast %75 : vector<1x32x64xf32> to vector<32x64xf32>
    %c0_38 = arith.constant 0 : index
    %c0_39 = arith.constant 0 : index
    %c0_40 = arith.constant 0 : index
    %77 = vector.load %arg12[%c0_38, %c0_39, %c0_40] : memref<2x1x64xf32, #tpu.memory_space<vmem>>, vector<1x1x64xf32>
    %78 = vector.shape_cast %77 : vector<1x1x64xf32> to vector<1x64xf32>
    %c0_41 = arith.constant 0 : index
    %c0_42 = arith.constant 0 : index
    %c0_43 = arith.constant 0 : index
    %79 = vector.load %arg13[%c0_41, %c0_42, %c0_43] : memref<2x64x32xf32, #tpu.memory_space<vmem>>, vector<1x64x32xf32>
    %80 = vector.shape_cast %79 : vector<1x64x32xf32> to vector<64x32xf32>
    %cst_44 = arith.constant dense<0.000000e+00> : vector<16x96xf32>
    %81 = tpu.matmul %47, %62, %cst_44 {dimension_numbers = #tpu.dot_dimension_numbers<[1], [0], [0], [1], [0, 0, 1, 1], [], []>} : vector<16x32xf32>, vector<32x96xf32>, vector<16x96xf32> -> vector<16x96xf32>
    %82 = vector.broadcast %64 : vector<1x96xf32> to vector<16x96xf32>
    %83 = arith.addf %81, %82 : vector<16x96xf32>
    %84 = vector.extract_strided_slice %83 {offsets = [0, 0], sizes = [16, 8], strides = [1, 1]} : vector<16x96xf32> to vector<16x8xf32>
    %85 = vector.shape_cast %84 : vector<16x8xf32> to vector<2x8x8xf32>
    %86 = vector.extract_strided_slice %83 {offsets = [0, 8], sizes = [16, 8], strides = [1, 1]} : vector<16x96xf32> to vector<16x8xf32>
    %87 = vector.shape_cast %86 : vector<16x8xf32> to vector<2x8x8xf32>
    %88 = vector.extract_strided_slice %83 {offsets = [0, 16], sizes = [16, 8], strides = [1, 1]} : vector<16x96xf32> to vector<16x8xf32>
    %89 = vector.shape_cast %88 : vector<16x8xf32> to vector<2x8x8xf32>
    %90 = vector.extract_strided_slice %83 {offsets = [0, 24], sizes = [16, 8], strides = [1, 1]} : vector<16x96xf32> to vector<16x8xf32>
    %91 = vector.shape_cast %90 : vector<16x8xf32> to vector<2x8x8xf32>
    %92 = tpu.concatenate %85, %87, %89, %91 in 0 : vector<2x8x8xf32>, vector<2x8x8xf32>, vector<2x8x8xf32>, vector<2x8x8xf32> -> vector<8x8x8xf32>
    %93 = vector.extract_strided_slice %83 {offsets = [0, 32], sizes = [16, 8], strides = [1, 1]} : vector<16x96xf32> to vector<16x8xf32>
    %94 = vector.shape_cast %93 : vector<16x8xf32> to vector<2x8x8xf32>
    %95 = vector.extract_strided_slice %83 {offsets = [0, 40], sizes = [16, 8], strides = [1, 1]} : vector<16x96xf32> to vector<16x8xf32>
    %96 = vector.shape_cast %95 : vector<16x8xf32> to vector<2x8x8xf32>
    %97 = vector.extract_strided_slice %83 {offsets = [0, 48], sizes = [16, 8], strides = [1, 1]} : vector<16x96xf32> to vector<16x8xf32>
    %98 = vector.shape_cast %97 : vector<16x8xf32> to vector<2x8x8xf32>
    %99 = vector.extract_strided_slice %83 {offsets = [0, 56], sizes = [16, 8], strides = [1, 1]} : vector<16x96xf32> to vector<16x8xf32>
    %100 = vector.shape_cast %99 : vector<16x8xf32> to vector<2x8x8xf32>
    %101 = tpu.concatenate %94, %96, %98, %100 in 0 : vector<2x8x8xf32>, vector<2x8x8xf32>, vector<2x8x8xf32>, vector<2x8x8xf32> -> vector<8x8x8xf32>
    %102 = vector.extract_strided_slice %83 {offsets = [0, 64], sizes = [16, 8], strides = [1, 1]} : vector<16x96xf32> to vector<16x8xf32>
    %103 = vector.shape_cast %102 : vector<16x8xf32> to vector<2x8x8xf32>
    %104 = vector.extract_strided_slice %83 {offsets = [0, 72], sizes = [16, 8], strides = [1, 1]} : vector<16x96xf32> to vector<16x8xf32>
    %105 = vector.shape_cast %104 : vector<16x8xf32> to vector<2x8x8xf32>
    %106 = vector.extract_strided_slice %83 {offsets = [0, 80], sizes = [16, 8], strides = [1, 1]} : vector<16x96xf32> to vector<16x8xf32>
    %107 = vector.shape_cast %106 : vector<16x8xf32> to vector<2x8x8xf32>
    %108 = vector.extract_strided_slice %83 {offsets = [0, 88], sizes = [16, 8], strides = [1, 1]} : vector<16x96xf32> to vector<16x8xf32>
    %109 = vector.shape_cast %108 : vector<16x8xf32> to vector<2x8x8xf32>
    %110 = tpu.concatenate %103, %105, %107, %109 in 0 : vector<2x8x8xf32>, vector<2x8x8xf32>, vector<2x8x8xf32>, vector<2x8x8xf32> -> vector<8x8x8xf32>
    "tpu.trace_start"() <{level = 10 : i32, message = "gqd,gkd->gqk"}> : () -> ()
    %cst_45 = arith.constant dense<0.000000e+00> : vector<8x8x8xf32>
    %111 = tpu.matmul %92, %101, %cst_45 {dimension_numbers = #tpu.dot_dimension_numbers<[2], [2], [1], [1], [0, 0, 0, 1, 1, 1], [0], [0]>} : vector<8x8x8xf32>, vector<8x8x8xf32>, vector<8x8x8xf32> -> vector<8x8x8xf32>
    "tpu.trace_stop"() : () -> ()
    %cst_46 = arith.constant 0.353553385 : f32
    %112 = vector.broadcast %cst_46 : f32 to vector<8x8x8xf32>
    %113 = arith.mulf %111, %112 : vector<8x8x8xf32>
    %114 = vector.broadcast %60 : vector<8x1x8xf32> to vector<8x8x8xf32>
    %115 = arith.addf %113, %114 : vector<8x8x8xf32>
    %cst_47 = arith.constant dense<0xFF800000> : vector<8x8xf32>
    %116 = vector.multi_reduction <maximumf>, %115, %cst_47 [2] : vector<8x8x8xf32> to vector<8x8xf32>
    %117 = vector.shape_cast %116 : vector<8x8xf32> to vector<8x8x1xf32>
    %118 = vector.broadcast %117 : vector<8x8x1xf32> to vector<8x8x8xf32>
    %119 = arith.subf %115, %118 : vector<8x8x8xf32>
    %120 = math.exp %119 : vector<8x8x8xf32>
    %cst_48 = arith.constant dense<0.000000e+00> : vector<8x8xf32>
    %121 = vector.multi_reduction <add>, %120, %cst_48 [2] : vector<8x8x8xf32> to vector<8x8xf32>
    %122 = vector.shape_cast %121 : vector<8x8xf32> to vector<8x8x1xf32>
    %123 = tpu.reciprocal %122 {approx = true} : vector<8x8x1xf32> -> vector<8x8x1xf32>
    %124 = vector.broadcast %123 : vector<8x8x1xf32> to vector<8x8x8xf32>
    %125 = arith.mulf %120, %124 : vector<8x8x8xf32>
    "tpu.trace_start"() <{level = 10 : i32, message = "gqk,gkd->gqd"}> : () -> ()
    %cst_49 = arith.constant dense<0.000000e+00> : vector<8x8x8xf32>
    %126 = tpu.matmul %125, %110, %cst_49 {dimension_numbers = #tpu.dot_dimension_numbers<[2], [1], [1], [2], [0, 0, 0, 1, 1, 2], [0], [0]>} : vector<8x8x8xf32>, vector<8x8x8xf32>, vector<8x8x8xf32> -> vector<8x8x8xf32>
    "tpu.trace_stop"() : () -> ()
    %127 = vector.extract_strided_slice %126 {offsets = [0, 0, 0], sizes = [2, 8, 8], strides = [1, 1, 1]} : vector<8x8x8xf32> to vector<2x8x8xf32>
    %128 = vector.shape_cast %127 : vector<2x8x8xf32> to vector<16x8xf32>
    %129 = vector.extract_strided_slice %126 {offsets = [2, 0, 0], sizes = [2, 8, 8], strides = [1, 1, 1]} : vector<8x8x8xf32> to vector<2x8x8xf32>
    %130 = vector.shape_cast %129 : vector<2x8x8xf32> to vector<16x8xf32>
    %131 = vector.extract_strided_slice %126 {offsets = [4, 0, 0], sizes = [2, 8, 8], strides = [1, 1, 1]} : vector<8x8x8xf32> to vector<2x8x8xf32>
    %132 = vector.shape_cast %131 : vector<2x8x8xf32> to vector<16x8xf32>
    %133 = vector.extract_strided_slice %126 {offsets = [6, 0, 0], sizes = [2, 8, 8], strides = [1, 1, 1]} : vector<8x8x8xf32> to vector<2x8x8xf32>
    %134 = vector.shape_cast %133 : vector<2x8x8xf32> to vector<16x8xf32>
    %135 = tpu.concatenate %128, %130, %132, %134 in 1 : vector<16x8xf32>, vector<16x8xf32>, vector<16x8xf32>, vector<16x8xf32> -> vector<16x32xf32>
    %cst_50 = arith.constant dense<0.000000e+00> : vector<16x32xf32>
    %136 = tpu.matmul %135, %66, %cst_50 {dimension_numbers = #tpu.dot_dimension_numbers<[1], [0], [0], [1], [0, 0, 1, 1], [], []>} : vector<16x32xf32>, vector<32x32xf32>, vector<16x32xf32> -> vector<16x32xf32>
    %137 = vector.broadcast %69 : vector<1x32xf32> to vector<16x32xf32>
    %138 = arith.addf %136, %137 : vector<16x32xf32>
    %139 = arith.addf %47, %138 : vector<16x32xf32>
    %cst_51 = arith.constant dense<0.000000e+00> : vector<16xf32>
    %140 = vector.multi_reduction <add>, %139, %cst_51 [1] : vector<16x32xf32> to vector<16xf32>
    %141 = vector.shape_cast %140 : vector<16xf32> to vector<16x1xf32>
    %cst_52 = arith.constant 3.200000e+01 : f32
    %142 = vector.broadcast %cst_52 : f32 to vector<16x1xf32>
    %143 = arith.divf %141, %142 : vector<16x1xf32>
    %144 = vector.broadcast %143 : vector<16x1xf32> to vector<16x32xf32>
    %145 = arith.subf %139, %144 : vector<16x32xf32>
    %146 = arith.mulf %145, %145 : vector<16x32xf32>
    %cst_53 = arith.constant dense<0.000000e+00> : vector<16xf32>
    %147 = vector.multi_reduction <add>, %146, %cst_53 [1] : vector<16x32xf32> to vector<16xf32>
    %148 = vector.shape_cast %147 : vector<16xf32> to vector<16x1xf32>
    %cst_54 = arith.constant 3.200000e+01 : f32
    %149 = vector.broadcast %cst_54 : f32 to vector<16x1xf32>
    %150 = arith.divf %148, %149 : vector<16x1xf32>
    %cst_55 = arith.constant 9.99999996E-13 : f32
    %151 = vector.broadcast %cst_55 : f32 to vector<16x1xf32>
    %152 = arith.addf %150, %151 : vector<16x1xf32>
    %153 = math.rsqrt %152 : vector<16x1xf32>
    %154 = vector.broadcast %153 : vector<16x1xf32> to vector<16x32xf32>
    %155 = arith.mulf %145, %154 : vector<16x32xf32>
    %156 = vector.broadcast %70 : vector<1x32xf32> to vector<16x32xf32>
    %157 = arith.mulf %155, %156 : vector<16x32xf32>
    %158 = vector.broadcast %71 : vector<1x32xf32> to vector<16x32xf32>
    %159 = arith.addf %157, %158 : vector<16x32xf32>
    %cst_56 = arith.constant dense<0.000000e+00> : vector<16x64xf32>
    %160 = tpu.matmul %159, %76, %cst_56 {dimension_numbers = #tpu.dot_dimension_numbers<[1], [0], [0], [1], [0, 0, 1, 1], [], []>} : vector<16x32xf32>, vector<32x64xf32>, vector<16x64xf32> -> vector<16x64xf32>
    %161 = vector.broadcast %78 : vector<1x64xf32> to vector<16x64xf32>
    %162 = arith.addf %160, %161 : vector<16x64xf32>
    %cst_57 = arith.constant 5.000000e-01 : f32
    %163 = vector.broadcast %cst_57 : f32 to vector<16x64xf32>
    %164 = arith.mulf %163, %162 : vector<16x64xf32>
    %cst_58 = arith.constant 0.707106769 : f32
    %165 = vector.broadcast %cst_58 : f32 to vector<16x64xf32>
    %166 = arith.mulf %162, %165 : vector<16x64xf32>
    %167 = math.absf %166 : vector<16x64xf32>
    %cst_59 = arith.constant 0.327591091 : f32
    %168 = vector.broadcast %cst_59 : f32 to vector<16x64xf32>
    %169 = arith.mulf %168, %167 : vector<16x64xf32>
    %cst_60 = arith.constant 1.000000e+00 : f32
    %170 = vector.broadcast %cst_60 : f32 to vector<16x64xf32>
    %171 = arith.addf %170, %169 : vector<16x64xf32>
    %172 = tpu.reciprocal %171 {approx = true} : vector<16x64xf32> -> vector<16x64xf32>
    %cst_61 = arith.constant 1.06140542 : f32
    %173 = vector.broadcast %cst_61 : f32 to vector<16x64xf32>
    %174 = arith.mulf %173, %172 : vector<16x64xf32>
    %cst_62 = arith.constant -1.45315206 : f32
    %175 = vector.broadcast %cst_62 : f32 to vector<16x64xf32>
    %176 = arith.addf %174, %175 : vector<16x64xf32>
    %177 = arith.mulf %176, %172 : vector<16x64xf32>
    %cst_63 = arith.constant 1.42141378 : f32
    %178 = vector.broadcast %cst_63 : f32 to vector<16x64xf32>
    %179 = arith.addf %177, %178 : vector<16x64xf32>
    %180 = arith.mulf %179, %172 : vector<16x64xf32>
    %cst_64 = arith.constant -0.284496725 : f32
    %181 = vector.broadcast %cst_64 : f32 to vector<16x64xf32>
    %182 = arith.addf %180, %181 : vector<16x64xf32>
    %183 = arith.mulf %182, %172 : vector<16x64xf32>
    %cst_65 = arith.constant 0.254829586 : f32
    %184 = vector.broadcast %cst_65 : f32 to vector<16x64xf32>
    %185 = arith.addf %183, %184 : vector<16x64xf32>
    %186 = arith.mulf %185, %172 : vector<16x64xf32>
    %cst_66 = arith.constant 0.000000e+00 : f32
    %187 = vector.broadcast %cst_66 : f32 to vector<16x64xf32>
    %188 = arith.subf %187, %167 : vector<16x64xf32>
    %189 = arith.mulf %188, %167 : vector<16x64xf32>
    %190 = math.exp %189 : vector<16x64xf32>
    %191 = arith.mulf %186, %190 : vector<16x64xf32>
    %cst_67 = arith.constant 1.000000e+00 : f32
    %192 = vector.broadcast %cst_67 : f32 to vector<16x64xf32>
    %193 = arith.subf %192, %191 : vector<16x64xf32>
    %cst_68 = arith.constant 0.000000e+00 : f32
    %194 = vector.broadcast %cst_68 : f32 to vector<16x64xf32>
    %195 = arith.cmpf olt, %166, %194 : vector<16x64xf32>
    %cst_69 = arith.constant 0.000000e+00 : f32
    %196 = vector.broadcast %cst_69 : f32 to vector<16x64xf32>
    %197 = arith.subf %196, %193 : vector<16x64xf32>
    %198 = arith.select %195, %197, %193 : vector<16x64xi1>, vector<16x64xf32>
    %cst_70 = arith.constant 1.000000e+00 : f32
    %199 = vector.broadcast %cst_70 : f32 to vector<16x64xf32>
    %200 = arith.addf %199, %198 : vector<16x64xf32>
    %201 = arith.mulf %164, %200 : vector<16x64xf32>
    %cst_71 = arith.constant dense<0.000000e+00> : vector<16x32xf32>
    %202 = tpu.matmul %201, %80, %cst_71 {dimension_numbers = #tpu.dot_dimension_numbers<[1], [0], [0], [1], [0, 0, 1, 1], [], []>} : vector<16x64xf32>, vector<64x32xf32>, vector<16x32xf32> -> vector<16x32xf32>
    %203 = vector.broadcast %72 : vector<1x32xf32> to vector<16x32xf32>
    %204 = arith.addf %202, %203 : vector<16x32xf32>
    %205 = arith.addf %159, %204 : vector<16x32xf32>
    %cst_72 = arith.constant dense<0.000000e+00> : vector<16xf32>
    %206 = vector.multi_reduction <add>, %205, %cst_72 [1] : vector<16x32xf32> to vector<16xf32>
    %207 = vector.shape_cast %206 : vector<16xf32> to vector<16x1xf32>
    %cst_73 = arith.constant 3.200000e+01 : f32
    %208 = vector.broadcast %cst_73 : f32 to vector<16x1xf32>
    %209 = arith.divf %207, %208 : vector<16x1xf32>
    %210 = vector.broadcast %209 : vector<16x1xf32> to vector<16x32xf32>
    %211 = arith.subf %205, %210 : vector<16x32xf32>
    %212 = arith.mulf %211, %211 : vector<16x32xf32>
    %cst_74 = arith.constant dense<0.000000e+00> : vector<16xf32>
    %213 = vector.multi_reduction <add>, %212, %cst_74 [1] : vector<16x32xf32> to vector<16xf32>
    %214 = vector.shape_cast %213 : vector<16xf32> to vector<16x1xf32>
    %cst_75 = arith.constant 3.200000e+01 : f32
    %215 = vector.broadcast %cst_75 : f32 to vector<16x1xf32>
    %216 = arith.divf %214, %215 : vector<16x1xf32>
    %cst_76 = arith.constant 9.99999996E-13 : f32
    %217 = vector.broadcast %cst_76 : f32 to vector<16x1xf32>
    %218 = arith.addf %216, %217 : vector<16x1xf32>
    %219 = math.rsqrt %218 : vector<16x1xf32>
    %220 = vector.broadcast %219 : vector<16x1xf32> to vector<16x32xf32>
    %221 = arith.mulf %211, %220 : vector<16x32xf32>
    %222 = vector.broadcast %73 : vector<1x32xf32> to vector<16x32xf32>
    %223 = arith.mulf %221, %222 : vector<16x32xf32>
    %224 = vector.broadcast %74 : vector<1x32xf32> to vector<16x32xf32>
    %225 = arith.addf %223, %224 : vector<16x32xf32>
    %c1_77 = arith.constant 1 : index
    %c0_78 = arith.constant 0 : index
    %c0_79 = arith.constant 0 : index
    %226 = vector.load %arg7[%c1_77, %c0_78, %c0_79] : memref<2x32x96xf32, #tpu.memory_space<vmem>>, vector<1x32x96xf32>
    %227 = vector.shape_cast %226 : vector<1x32x96xf32> to vector<32x96xf32>
    %c1_80 = arith.constant 1 : index
    %c0_81 = arith.constant 0 : index
    %c0_82 = arith.constant 0 : index
    %228 = vector.load %arg8[%c1_80, %c0_81, %c0_82] : memref<2x1x96xf32, #tpu.memory_space<vmem>>, vector<1x1x96xf32>
    %229 = vector.shape_cast %228 : vector<1x1x96xf32> to vector<1x96xf32>
    %c1_83 = arith.constant 1 : index
    %c0_84 = arith.constant 0 : index
    %c0_85 = arith.constant 0 : index
    %230 = vector.load %arg9[%c1_83, %c0_84, %c0_85] : memref<2x32x32xf32, #tpu.memory_space<vmem>>, vector<1x32x32xf32>
    %231 = vector.shape_cast %230 : vector<1x32x32xf32> to vector<32x32xf32>
    %c1_86 = arith.constant 1 : index
    %c0_87 = arith.constant 0 : index
    %c0_88 = arith.constant 0 : index
    %232 = vector.load %arg10[%c1_86, %c0_87, %c0_88] : memref<2x6x32xf32, #tpu.memory_space<vmem>>, vector<1x6x32xf32>
    %233 = vector.shape_cast %232 : vector<1x6x32xf32> to vector<6x32xf32>
    %234 = vector.extract_strided_slice %233 {offsets = [0, 0], sizes = [1, 32], strides = [1, 1]} : vector<6x32xf32> to vector<1x32xf32>
    %235 = vector.extract_strided_slice %233 {offsets = [1, 0], sizes = [1, 32], strides = [1, 1]} : vector<6x32xf32> to vector<1x32xf32>
    %236 = vector.extract_strided_slice %233 {offsets = [2, 0], sizes = [1, 32], strides = [1, 1]} : vector<6x32xf32> to vector<1x32xf32>
    %237 = vector.extract_strided_slice %233 {offsets = [3, 0], sizes = [1, 32], strides = [1, 1]} : vector<6x32xf32> to vector<1x32xf32>
    %238 = vector.extract_strided_slice %233 {offsets = [4, 0], sizes = [1, 32], strides = [1, 1]} : vector<6x32xf32> to vector<1x32xf32>
    %239 = vector.extract_strided_slice %233 {offsets = [5, 0], sizes = [1, 32], strides = [1, 1]} : vector<6x32xf32> to vector<1x32xf32>
    %c1_89 = arith.constant 1 : index
    %c0_90 = arith.constant 0 : index
    %c0_91 = arith.constant 0 : index
    %240 = vector.load %arg11[%c1_89, %c0_90, %c0_91] : memref<2x32x64xf32, #tpu.memory_space<vmem>>, vector<1x32x64xf32>
    %241 = vector.shape_cast %240 : vector<1x32x64xf32> to vector<32x64xf32>
    %c1_92 = arith.constant 1 : index
    %c0_93 = arith.constant 0 : index
    %c0_94 = arith.constant 0 : index
    %242 = vector.load %arg12[%c1_92, %c0_93, %c0_94] : memref<2x1x64xf32, #tpu.memory_space<vmem>>, vector<1x1x64xf32>
    %243 = vector.shape_cast %242 : vector<1x1x64xf32> to vector<1x64xf32>
    %c1_95 = arith.constant 1 : index
    %c0_96 = arith.constant 0 : index
    %c0_97 = arith.constant 0 : index
    %244 = vector.load %arg13[%c1_95, %c0_96, %c0_97] : memref<2x64x32xf32, #tpu.memory_space<vmem>>, vector<1x64x32xf32>
    %245 = vector.shape_cast %244 : vector<1x64x32xf32> to vector<64x32xf32>
    %cst_98 = arith.constant dense<0.000000e+00> : vector<16x96xf32>
    %246 = tpu.matmul %225, %227, %cst_98 {dimension_numbers = #tpu.dot_dimension_numbers<[1], [0], [0], [1], [0, 0, 1, 1], [], []>} : vector<16x32xf32>, vector<32x96xf32>, vector<16x96xf32> -> vector<16x96xf32>
    %247 = vector.broadcast %229 : vector<1x96xf32> to vector<16x96xf32>
    %248 = arith.addf %246, %247 : vector<16x96xf32>
    %249 = vector.extract_strided_slice %248 {offsets = [0, 0], sizes = [16, 8], strides = [1, 1]} : vector<16x96xf32> to vector<16x8xf32>
    %250 = vector.shape_cast %249 : vector<16x8xf32> to vector<2x8x8xf32>
    %251 = vector.extract_strided_slice %248 {offsets = [0, 8], sizes = [16, 8], strides = [1, 1]} : vector<16x96xf32> to vector<16x8xf32>
    %252 = vector.shape_cast %251 : vector<16x8xf32> to vector<2x8x8xf32>
    %253 = vector.extract_strided_slice %248 {offsets = [0, 16], sizes = [16, 8], strides = [1, 1]} : vector<16x96xf32> to vector<16x8xf32>
    %254 = vector.shape_cast %253 : vector<16x8xf32> to vector<2x8x8xf32>
    %255 = vector.extract_strided_slice %248 {offsets = [0, 24], sizes = [16, 8], strides = [1, 1]} : vector<16x96xf32> to vector<16x8xf32>
    %256 = vector.shape_cast %255 : vector<16x8xf32> to vector<2x8x8xf32>
    %257 = tpu.concatenate %250, %252, %254, %256 in 0 : vector<2x8x8xf32>, vector<2x8x8xf32>, vector<2x8x8xf32>, vector<2x8x8xf32> -> vector<8x8x8xf32>
    %258 = vector.extract_strided_slice %248 {offsets = [0, 32], sizes = [16, 8], strides = [1, 1]} : vector<16x96xf32> to vector<16x8xf32>
    %259 = vector.shape_cast %258 : vector<16x8xf32> to vector<2x8x8xf32>
    %260 = vector.extract_strided_slice %248 {offsets = [0, 40], sizes = [16, 8], strides = [1, 1]} : vector<16x96xf32> to vector<16x8xf32>
    %261 = vector.shape_cast %260 : vector<16x8xf32> to vector<2x8x8xf32>
    %262 = vector.extract_strided_slice %248 {offsets = [0, 48], sizes = [16, 8], strides = [1, 1]} : vector<16x96xf32> to vector<16x8xf32>
    %263 = vector.shape_cast %262 : vector<16x8xf32> to vector<2x8x8xf32>
    %264 = vector.extract_strided_slice %248 {offsets = [0, 56], sizes = [16, 8], strides = [1, 1]} : vector<16x96xf32> to vector<16x8xf32>
    %265 = vector.shape_cast %264 : vector<16x8xf32> to vector<2x8x8xf32>
    %266 = tpu.concatenate %259, %261, %263, %265 in 0 : vector<2x8x8xf32>, vector<2x8x8xf32>, vector<2x8x8xf32>, vector<2x8x8xf32> -> vector<8x8x8xf32>
    %267 = vector.extract_strided_slice %248 {offsets = [0, 64], sizes = [16, 8], strides = [1, 1]} : vector<16x96xf32> to vector<16x8xf32>
    %268 = vector.shape_cast %267 : vector<16x8xf32> to vector<2x8x8xf32>
    %269 = vector.extract_strided_slice %248 {offsets = [0, 72], sizes = [16, 8], strides = [1, 1]} : vector<16x96xf32> to vector<16x8xf32>
    %270 = vector.shape_cast %269 : vector<16x8xf32> to vector<2x8x8xf32>
    %271 = vector.extract_strided_slice %248 {offsets = [0, 80], sizes = [16, 8], strides = [1, 1]} : vector<16x96xf32> to vector<16x8xf32>
    %272 = vector.shape_cast %271 : vector<16x8xf32> to vector<2x8x8xf32>
    %273 = vector.extract_strided_slice %248 {offsets = [0, 88], sizes = [16, 8], strides = [1, 1]} : vector<16x96xf32> to vector<16x8xf32>
    %274 = vector.shape_cast %273 : vector<16x8xf32> to vector<2x8x8xf32>
    %275 = tpu.concatenate %268, %270, %272, %274 in 0 : vector<2x8x8xf32>, vector<2x8x8xf32>, vector<2x8x8xf32>, vector<2x8x8xf32> -> vector<8x8x8xf32>
    "tpu.trace_start"() <{level = 10 : i32, message = "gqd,gkd->gqk"}> : () -> ()
    %cst_99 = arith.constant dense<0.000000e+00> : vector<8x8x8xf32>
    %276 = tpu.matmul %257, %266, %cst_99 {dimension_numbers = #tpu.dot_dimension_numbers<[2], [2], [1], [1], [0, 0, 0, 1, 1, 1], [0], [0]>} : vector<8x8x8xf32>, vector<8x8x8xf32>, vector<8x8x8xf32> -> vector<8x8x8xf32>
    "tpu.trace_stop"() : () -> ()
    %cst_100 = arith.constant 0.353553385 : f32
    %277 = vector.broadcast %cst_100 : f32 to vector<8x8x8xf32>
    %278 = arith.mulf %276, %277 : vector<8x8x8xf32>
    %279 = vector.broadcast %60 : vector<8x1x8xf32> to vector<8x8x8xf32>
    %280 = arith.addf %278, %279 : vector<8x8x8xf32>
    %cst_101 = arith.constant dense<0xFF800000> : vector<8x8xf32>
    %281 = vector.multi_reduction <maximumf>, %280, %cst_101 [2] : vector<8x8x8xf32> to vector<8x8xf32>
    %282 = vector.shape_cast %281 : vector<8x8xf32> to vector<8x8x1xf32>
    %283 = vector.broadcast %282 : vector<8x8x1xf32> to vector<8x8x8xf32>
    %284 = arith.subf %280, %283 : vector<8x8x8xf32>
    %285 = math.exp %284 : vector<8x8x8xf32>
    %cst_102 = arith.constant dense<0.000000e+00> : vector<8x8xf32>
    %286 = vector.multi_reduction <add>, %285, %cst_102 [2] : vector<8x8x8xf32> to vector<8x8xf32>
    %287 = vector.shape_cast %286 : vector<8x8xf32> to vector<8x8x1xf32>
    %288 = tpu.reciprocal %287 {approx = true} : vector<8x8x1xf32> -> vector<8x8x1xf32>
    %289 = vector.broadcast %288 : vector<8x8x1xf32> to vector<8x8x8xf32>
    %290 = arith.mulf %285, %289 : vector<8x8x8xf32>
    "tpu.trace_start"() <{level = 10 : i32, message = "gqk,gkd->gqd"}> : () -> ()
    %cst_103 = arith.constant dense<0.000000e+00> : vector<8x8x8xf32>
    %291 = tpu.matmul %290, %275, %cst_103 {dimension_numbers = #tpu.dot_dimension_numbers<[2], [1], [1], [2], [0, 0, 0, 1, 1, 2], [0], [0]>} : vector<8x8x8xf32>, vector<8x8x8xf32>, vector<8x8x8xf32> -> vector<8x8x8xf32>
    "tpu.trace_stop"() : () -> ()
    %292 = vector.extract_strided_slice %291 {offsets = [0, 0, 0], sizes = [2, 8, 8], strides = [1, 1, 1]} : vector<8x8x8xf32> to vector<2x8x8xf32>
    %293 = vector.shape_cast %292 : vector<2x8x8xf32> to vector<16x8xf32>
    %294 = vector.extract_strided_slice %291 {offsets = [2, 0, 0], sizes = [2, 8, 8], strides = [1, 1, 1]} : vector<8x8x8xf32> to vector<2x8x8xf32>
    %295 = vector.shape_cast %294 : vector<2x8x8xf32> to vector<16x8xf32>
    %296 = vector.extract_strided_slice %291 {offsets = [4, 0, 0], sizes = [2, 8, 8], strides = [1, 1, 1]} : vector<8x8x8xf32> to vector<2x8x8xf32>
    %297 = vector.shape_cast %296 : vector<2x8x8xf32> to vector<16x8xf32>
    %298 = vector.extract_strided_slice %291 {offsets = [6, 0, 0], sizes = [2, 8, 8], strides = [1, 1, 1]} : vector<8x8x8xf32> to vector<2x8x8xf32>
    %299 = vector.shape_cast %298 : vector<2x8x8xf32> to vector<16x8xf32>
    %300 = tpu.concatenate %293, %295, %297, %299 in 1 : vector<16x8xf32>, vector<16x8xf32>, vector<16x8xf32>, vector<16x8xf32> -> vector<16x32xf32>
    %cst_104 = arith.constant dense<0.000000e+00> : vector<16x32xf32>
    %301 = tpu.matmul %300, %231, %cst_104 {dimension_numbers = #tpu.dot_dimension_numbers<[1], [0], [0], [1], [0, 0, 1, 1], [], []>} : vector<16x32xf32>, vector<32x32xf32>, vector<16x32xf32> -> vector<16x32xf32>
    %302 = vector.broadcast %234 : vector<1x32xf32> to vector<16x32xf32>
    %303 = arith.addf %301, %302 : vector<16x32xf32>
    %304 = arith.addf %225, %303 : vector<16x32xf32>
    %cst_105 = arith.constant dense<0.000000e+00> : vector<16xf32>
    %305 = vector.multi_reduction <add>, %304, %cst_105 [1] : vector<16x32xf32> to vector<16xf32>
    %306 = vector.shape_cast %305 : vector<16xf32> to vector<16x1xf32>
    %cst_106 = arith.constant 3.200000e+01 : f32
    %307 = vector.broadcast %cst_106 : f32 to vector<16x1xf32>
    %308 = arith.divf %306, %307 : vector<16x1xf32>
    %309 = vector.broadcast %308 : vector<16x1xf32> to vector<16x32xf32>
    %310 = arith.subf %304, %309 : vector<16x32xf32>
    %311 = arith.mulf %310, %310 : vector<16x32xf32>
    %cst_107 = arith.constant dense<0.000000e+00> : vector<16xf32>
    %312 = vector.multi_reduction <add>, %311, %cst_107 [1] : vector<16x32xf32> to vector<16xf32>
    %313 = vector.shape_cast %312 : vector<16xf32> to vector<16x1xf32>
    %cst_108 = arith.constant 3.200000e+01 : f32
    %314 = vector.broadcast %cst_108 : f32 to vector<16x1xf32>
    %315 = arith.divf %313, %314 : vector<16x1xf32>
    %cst_109 = arith.constant 9.99999996E-13 : f32
    %316 = vector.broadcast %cst_109 : f32 to vector<16x1xf32>
    %317 = arith.addf %315, %316 : vector<16x1xf32>
    %318 = math.rsqrt %317 : vector<16x1xf32>
    %319 = vector.broadcast %318 : vector<16x1xf32> to vector<16x32xf32>
    %320 = arith.mulf %310, %319 : vector<16x32xf32>
    %321 = vector.broadcast %235 : vector<1x32xf32> to vector<16x32xf32>
    %322 = arith.mulf %320, %321 : vector<16x32xf32>
    %323 = vector.broadcast %236 : vector<1x32xf32> to vector<16x32xf32>
    %324 = arith.addf %322, %323 : vector<16x32xf32>
    %cst_110 = arith.constant dense<0.000000e+00> : vector<16x64xf32>
    %325 = tpu.matmul %324, %241, %cst_110 {dimension_numbers = #tpu.dot_dimension_numbers<[1], [0], [0], [1], [0, 0, 1, 1], [], []>} : vector<16x32xf32>, vector<32x64xf32>, vector<16x64xf32> -> vector<16x64xf32>
    %326 = vector.broadcast %243 : vector<1x64xf32> to vector<16x64xf32>
    %327 = arith.addf %325, %326 : vector<16x64xf32>
    %cst_111 = arith.constant 5.000000e-01 : f32
    %328 = vector.broadcast %cst_111 : f32 to vector<16x64xf32>
    %329 = arith.mulf %328, %327 : vector<16x64xf32>
    %cst_112 = arith.constant 0.707106769 : f32
    %330 = vector.broadcast %cst_112 : f32 to vector<16x64xf32>
    %331 = arith.mulf %327, %330 : vector<16x64xf32>
    %332 = math.absf %331 : vector<16x64xf32>
    %cst_113 = arith.constant 0.327591091 : f32
    %333 = vector.broadcast %cst_113 : f32 to vector<16x64xf32>
    %334 = arith.mulf %333, %332 : vector<16x64xf32>
    %cst_114 = arith.constant 1.000000e+00 : f32
    %335 = vector.broadcast %cst_114 : f32 to vector<16x64xf32>
    %336 = arith.addf %335, %334 : vector<16x64xf32>
    %337 = tpu.reciprocal %336 {approx = true} : vector<16x64xf32> -> vector<16x64xf32>
    %cst_115 = arith.constant 1.06140542 : f32
    %338 = vector.broadcast %cst_115 : f32 to vector<16x64xf32>
    %339 = arith.mulf %338, %337 : vector<16x64xf32>
    %cst_116 = arith.constant -1.45315206 : f32
    %340 = vector.broadcast %cst_116 : f32 to vector<16x64xf32>
    %341 = arith.addf %339, %340 : vector<16x64xf32>
    %342 = arith.mulf %341, %337 : vector<16x64xf32>
    %cst_117 = arith.constant 1.42141378 : f32
    %343 = vector.broadcast %cst_117 : f32 to vector<16x64xf32>
    %344 = arith.addf %342, %343 : vector<16x64xf32>
    %345 = arith.mulf %344, %337 : vector<16x64xf32>
    %cst_118 = arith.constant -0.284496725 : f32
    %346 = vector.broadcast %cst_118 : f32 to vector<16x64xf32>
    %347 = arith.addf %345, %346 : vector<16x64xf32>
    %348 = arith.mulf %347, %337 : vector<16x64xf32>
    %cst_119 = arith.constant 0.254829586 : f32
    %349 = vector.broadcast %cst_119 : f32 to vector<16x64xf32>
    %350 = arith.addf %348, %349 : vector<16x64xf32>
    %351 = arith.mulf %350, %337 : vector<16x64xf32>
    %cst_120 = arith.constant 0.000000e+00 : f32
    %352 = vector.broadcast %cst_120 : f32 to vector<16x64xf32>
    %353 = arith.subf %352, %332 : vector<16x64xf32>
    %354 = arith.mulf %353, %332 : vector<16x64xf32>
    %355 = math.exp %354 : vector<16x64xf32>
    %356 = arith.mulf %351, %355 : vector<16x64xf32>
    %cst_121 = arith.constant 1.000000e+00 : f32
    %357 = vector.broadcast %cst_121 : f32 to vector<16x64xf32>
    %358 = arith.subf %357, %356 : vector<16x64xf32>
    %cst_122 = arith.constant 0.000000e+00 : f32
    %359 = vector.broadcast %cst_122 : f32 to vector<16x64xf32>
    %360 = arith.cmpf olt, %331, %359 : vector<16x64xf32>
    %cst_123 = arith.constant 0.000000e+00 : f32
    %361 = vector.broadcast %cst_123 : f32 to vector<16x64xf32>
    %362 = arith.subf %361, %358 : vector<16x64xf32>
    %363 = arith.select %360, %362, %358 : vector<16x64xi1>, vector<16x64xf32>
    %cst_124 = arith.constant 1.000000e+00 : f32
    %364 = vector.broadcast %cst_124 : f32 to vector<16x64xf32>
    %365 = arith.addf %364, %363 : vector<16x64xf32>
    %366 = arith.mulf %329, %365 : vector<16x64xf32>
    %cst_125 = arith.constant dense<0.000000e+00> : vector<16x32xf32>
    %367 = tpu.matmul %366, %245, %cst_125 {dimension_numbers = #tpu.dot_dimension_numbers<[1], [0], [0], [1], [0, 0, 1, 1], [], []>} : vector<16x64xf32>, vector<64x32xf32>, vector<16x32xf32> -> vector<16x32xf32>
    %368 = vector.broadcast %237 : vector<1x32xf32> to vector<16x32xf32>
    %369 = arith.addf %367, %368 : vector<16x32xf32>
    %370 = arith.addf %324, %369 : vector<16x32xf32>
    %cst_126 = arith.constant dense<0.000000e+00> : vector<16xf32>
    %371 = vector.multi_reduction <add>, %370, %cst_126 [1] : vector<16x32xf32> to vector<16xf32>
    %372 = vector.shape_cast %371 : vector<16xf32> to vector<16x1xf32>
    %cst_127 = arith.constant 3.200000e+01 : f32
    %373 = vector.broadcast %cst_127 : f32 to vector<16x1xf32>
    %374 = arith.divf %372, %373 : vector<16x1xf32>
    %375 = vector.broadcast %374 : vector<16x1xf32> to vector<16x32xf32>
    %376 = arith.subf %370, %375 : vector<16x32xf32>
    %377 = arith.mulf %376, %376 : vector<16x32xf32>
    %cst_128 = arith.constant dense<0.000000e+00> : vector<16xf32>
    %378 = vector.multi_reduction <add>, %377, %cst_128 [1] : vector<16x32xf32> to vector<16xf32>
    %379 = vector.shape_cast %378 : vector<16xf32> to vector<16x1xf32>
    %cst_129 = arith.constant 3.200000e+01 : f32
    %380 = vector.broadcast %cst_129 : f32 to vector<16x1xf32>
    %381 = arith.divf %379, %380 : vector<16x1xf32>
    %cst_130 = arith.constant 9.99999996E-13 : f32
    %382 = vector.broadcast %cst_130 : f32 to vector<16x1xf32>
    %383 = arith.addf %381, %382 : vector<16x1xf32>
    %384 = math.rsqrt %383 : vector<16x1xf32>
    %385 = vector.broadcast %384 : vector<16x1xf32> to vector<16x32xf32>
    %386 = arith.mulf %376, %385 : vector<16x32xf32>
    %387 = vector.broadcast %238 : vector<1x32xf32> to vector<16x32xf32>
    %388 = arith.mulf %386, %387 : vector<16x32xf32>
    %389 = vector.broadcast %239 : vector<1x32xf32> to vector<16x32xf32>
    %390 = arith.addf %388, %389 : vector<16x32xf32>
    %391 = tpu.iota {dimensions = array<i32: 1>} : vector<2x16xi32>
    %392 = tpu.iota {dimensions = array<i32: 0>} : vector<2x16xi32>
    %c8_i32 = arith.constant 8 : i32
    %393 = vector.broadcast %c8_i32 : i32 to vector<2x16xi32>
    %394 = arith.muli %392, %393 : vector<2x16xi32>
    %395 = arith.cmpi sge, %391, %394 : vector<2x16xi32>
    %c1_i32 = arith.constant 1 : i32
    %396 = vector.broadcast %c1_i32 : i32 to vector<2x16xi32>
    %397 = arith.addi %392, %396 : vector<2x16xi32>
    %c8_i32_131 = arith.constant 8 : i32
    %398 = vector.broadcast %c8_i32_131 : i32 to vector<2x16xi32>
    %399 = arith.muli %397, %398 : vector<2x16xi32>
    %400 = arith.cmpi slt, %391, %399 : vector<2x16xi32>
    %401 = arith.andi %395, %400 : vector<2x16xi1>
    %402 = arith.extui %401 : vector<2x16xi1> to vector<2x16xi32>
    %403 = arith.sitofp %402 : vector<2x16xi32> to vector<2x16xf32>
    %cst_132 = arith.constant 1.000000e+00 : f32
    %404 = vector.broadcast %cst_132 : f32 to vector<16x1xf32>
    %405 = arith.subf %404, %2 : vector<16x1xf32>
    %406 = arith.mulf %405, %6 : vector<16x1xf32>
    %407 = vector.broadcast %406 : vector<16x1xf32> to vector<16x32xf32>
    %408 = arith.mulf %390, %407 : vector<16x32xf32>
    %cst_133 = arith.constant dense<0.000000e+00> : vector<2x32xf32>
    %409 = tpu.matmul %403, %408, %cst_133 {dimension_numbers = #tpu.dot_dimension_numbers<[1], [0], [0], [1], [0, 0, 1, 1], [], []>} : vector<2x16xf32>, vector<16x32xf32>, vector<2x32xf32> -> vector<2x32xf32>
    %410 = vector.broadcast %2 : vector<16x1xf32> to vector<16x32xf32>
    %411 = arith.mulf %390, %410 : vector<16x32xf32>
    %cst_134 = arith.constant dense<0.000000e+00> : vector<2x32xf32>
    %412 = tpu.matmul %403, %411, %cst_134 {dimension_numbers = #tpu.dot_dimension_numbers<[1], [0], [0], [1], [0, 0, 1, 1], [], []>} : vector<2x16xf32>, vector<16x32xf32>, vector<2x32xf32> -> vector<2x32xf32>
    %413 = arith.mulf %409, %409 : vector<2x32xf32>
    %cst_135 = arith.constant dense<0.000000e+00> : vector<2xf32>
    %414 = vector.multi_reduction <add>, %413, %cst_135 [1] : vector<2x32xf32> to vector<2xf32>
    %415 = vector.shape_cast %414 : vector<2xf32> to vector<2x1xf32>
    %cst_136 = arith.constant 1.000000e-24 : f32
    %416 = vector.broadcast %cst_136 : f32 to vector<2x1xf32>
    %417 = arith.maximumf %415, %416 : vector<2x1xf32>
    %418 = math.rsqrt %417 : vector<2x1xf32>
    %419 = vector.broadcast %418 : vector<2x1xf32> to vector<2x32xf32>
    %420 = arith.mulf %409, %419 : vector<2x32xf32>
    %c0_137 = arith.constant 0 : index
    %c0_138 = arith.constant 0 : index
    %421 = vector.load %arg14[%c0_137, %c0_138] : memref<2x32xf32, #tpu.memory_space<vmem>>, vector<2x32xf32>
    tpu.vector_store %arg14[%c0_137, %c0_138], %420 {strides = array<i32>} : memref<2x32xf32, #tpu.memory_space<vmem>>, vector<2x32xf32>,
    %422 = arith.mulf %412, %412 : vector<2x32xf32>
    %cst_139 = arith.constant dense<0.000000e+00> : vector<2xf32>
    %423 = vector.multi_reduction <add>, %422, %cst_139 [1] : vector<2x32xf32> to vector<2xf32>
    %424 = vector.shape_cast %423 : vector<2xf32> to vector<2x1xf32>
    %cst_140 = arith.constant 1.000000e-24 : f32
    %425 = vector.broadcast %cst_140 : f32 to vector<2x1xf32>
    %426 = arith.maximumf %424, %425 : vector<2x1xf32>
    %427 = math.rsqrt %426 : vector<2x1xf32>
    %428 = vector.broadcast %427 : vector<2x1xf32> to vector<2x32xf32>
    %429 = arith.mulf %412, %428 : vector<2x32xf32>
    %c0_141 = arith.constant 0 : index
    %c0_142 = arith.constant 0 : index
    %430 = vector.load %arg15[%c0_141, %c0_142] : memref<2x32xf32, #tpu.memory_space<vmem>>, vector<2x32xf32>
    tpu.vector_store %arg15[%c0_141, %c0_142], %429 {strides = array<i32>} : memref<2x32xf32, #tpu.memory_space<vmem>>, vector<2x32xf32>,
    return
  }
}

</mosaic_0001>

<llo_original>
// kernel: bert_forward.1
$region0: #{bert_forward.1}
  #allocation0 [shape = 'u32[]', space=smem, size = 0x4, offset = 0x4, fixed_abs, tag = 'smem constant byte address 0x4 - core index']
  #allocation1 [shape = 'u32[144,128]{1,0:T(1,128)}', space=vmem, size = 0x12000, scoped, tag = 'internal scratch']
  %s0 = inlined_call_operand.vmem [shape: s32[16,1], index: 0, kind: input, shape index: {}]
  %s1 = inlined_call_operand.vmem [shape: s32[16,1], index: 1, kind: input, shape index: {}]
  %s2 = inlined_call_operand.vmem [shape: s32[2,1,8], index: 2, kind: input, shape index: {}]
  %s3 = inlined_call_operand.vmem [shape: f32[32,32], index: 3, kind: input, shape index: {}]
  %s4 = inlined_call_operand.hbm [shape: f32[2,32], index: 4, kind: input, shape index: {}]
  %s5 = inlined_call_operand.hbm [shape: f32[16,32], index: 5, kind: input, shape index: {}]
  %s6 = inlined_call_operand.hbm [shape: f32[2,32], index: 6, kind: input, shape index: {}]
  %s7 = inlined_call_operand.vmem [shape: f32[2,32,96], index: 7, kind: input, shape index: {}]
  %s8 = inlined_call_operand.hbm [shape: f32[2,1,96], index: 8, kind: input, shape index: {}]
  %s9 = inlined_call_operand.vmem [shape: f32[2,32,32], index: 9, kind: input, shape index: {}]
  %s10 = inlined_call_operand.vmem [shape: f32[2,6,32], index: 10, kind: input, shape index: {}]
  %s11 = inlined_call_operand.vmem [shape: f32[2,32,64], index: 11, kind: input, shape index: {}]
  %s12 = inlined_call_operand.hbm [shape: f32[2,1,64], index: 12, kind: input, shape index: {}]
  %s13 = inlined_call_operand.vmem [shape: f32[2,64,32], index: 13, kind: input, shape index: {}]
  %s14 = inlined_call_operand.hbm [shape: f32[2,32], index: 14, kind: output, shape index: {0}]
  %s15 = inlined_call_operand.hbm [shape: f32[2,32], index: 15, kind: output, shape index: {1}]
  %16 = xla_tuple %s14, %s15
  %s17 = sld [smem:[#allocation0]]
  $region94: #{bert_forward.1} parent=0
    _
  %s19 = ssub.s32 1, %s17
  %s20 = scalar_select 0, %s19, %s17
  $region1: #{bert_forward.1} parent=0
    #allocation2 [shape = 'u8[1024]{0}', space=vmem, size = 0x400, scoped, tag = 'input window, operand 4, single buffered']
    #allocation3 [shape = 's32[1]{0}', space=sflag, size = 0x4, scoped, tag = 'scoped memory for bert_forward.1']
    #allocation4 [shape = 's32[1]{0}', space=sflag, size = 0x4, scoped, tag = 'scoped memory for bert_forward.1']
    #allocation5 [shape = 'u8[8192]{0}', space=vmem, size = 0x2000, scoped, tag = 'input window, operand 5, single buffered']
    #allocation6 [shape = 's32[1]{0}', space=sflag, size = 0x4, scoped, tag = 'scoped memory for bert_forward.1']
    #allocation7 [shape = 'u8[1024]{0}', space=vmem, size = 0x400, scoped, tag = 'input window, operand 6, single buffered']
    #allocation8 [shape = 'u8[1024]{0}', space=vmem, size = 0x400, scoped, tag = 'input window, operand 8, single buffered']
    #allocation9 [shape = 's32[1]{0}', space=sflag, size = 0x4, scoped, tag = 'scoped memory for bert_forward.1']
    #allocation10 [shape = 'u8[1024]{0}', space=vmem, size = 0x400, scoped, tag = 'input window, operand 12, single buffered']
    #allocation11 [shape = 'u8[1024]{0}', space=vmem, size = 0x400, scoped, tag = 'output window, operand 0, single buffered']
    #allocation12 [shape = 'u8[1024]{0}', space=vmem, size = 0x400, scoped, tag = 'output window, operand 1, single buffered']
    #allocation13 [shape = 's32[1]{0}', space=sflag, size = 0x4, scoped, tag = 'scoped memory for bert_forward.1']
    %21 = vsyncpa [#allocation3], 0
    %22 = vsyncpa [#allocation6], 0
    %23 = vsyncpa [#allocation9], 0
    %24 = vsyncpa [#allocation4], 0
    %25 = vsyncpa [#allocation13], 0
    // Predicated region
    $region2: #{bert_forward.1} parent=1 // pred_check
      _
    $region3: #{bert_forward.1} parent=1 // pred_check_branch
      %27 = sbr.rel (0) target = $region5
    $region4: #{bert_forward.1} parent=1 // pred_region
      _
    $region5: #{bert_forward.1} parent=1 // pred_fallthru
      _
    // Predicated region
    $region6: #{bert_forward.1} parent=1 // pred_check
      _
    $region7: #{bert_forward.1} parent=1 // pred_check_branch
      %29 = sbr.rel (0) target = $region9
    $region8: #{bert_forward.1} parent=1 // pred_region
      _
    $region9: #{bert_forward.1} parent=1 // pred_fallthru
      _
    // Predicated region
    $region10: #{bert_forward.1} parent=1 // pred_check
      _
    $region11: #{bert_forward.1} parent=1 // pred_check_branch
      %31 = sbr.rel (0) target = $region13
    $region12: #{bert_forward.1} parent=1 // pred_region
      _
    $region13: #{bert_forward.1} parent=1 // pred_fallthru
      _
    // Predicated region
    $region14: #{bert_forward.1} parent=1 // pred_check
      _
    $region15: #{bert_forward.1} parent=1 // pred_check_branch
      %33 = sbr.rel (0) target = $region17
    $region16: #{bert_forward.1} parent=1 // pred_region
      _
    $region17: #{bert_forward.1} parent=1 // pred_fallthru
      _
    // Predicated region
    $region18: #{bert_forward.1} parent=1 // pred_check
      _
    $region19: #{bert_forward.1} parent=1 // pred_check_branch
      %35 = sbr.rel (0) target = $region21
    $region20: #{bert_forward.1} parent=1 // pred_region
      %s37 = ssub.s32 32, 32
      %38 = vsyncadd [#allocation3], %s37
      %s40 = sshll.u32 [#allocation2], 4
      %s41 = int_to_ptr.vmem [resolvable:$true] %s40
      %43 = dma.hbm_to_vmem [thread:$0]  %s4, 32, %s41, [#allocation3]
    $region21: #{bert_forward.1} parent=1 // pred_fallthru
      _
    // Predicated region
    $region22: #{bert_forward.1} parent=1 // pred_check
      _
    $region23: #{bert_forward.1} parent=1 // pred_check_branch
      %45 = sbr.rel (0) target = $region25
    $region24: #{bert_forward.1} parent=1 // pred_region
      %s47 = ssub.s32 256, 256
      %48 = vsyncadd [#allocation6], %s47
      %s49 = sshll.u32 [#allocation5], 4
      %s50 = int_to_ptr.vmem [resolvable:$true] %s49
      %55 = dma.hbm_to_vmem [thread:$0]  %s5, 256, %s50, [#allocation6], 128, 128, 8
    $region25: #{bert_forward.1} parent=1 // pred_fallthru
      _
    // Predicated region
    $region26: #{bert_forward.1} parent=1 // pred_check
      _
    $region27: #{bert_forward.1} parent=1 // pred_check_branch
      %57 = sbr.rel (0) target = $region29
    $region28: #{bert_forward.1} parent=1 // pred_region
      %s59 = ssub.s32 32, 32
      %60 = vsyncadd [#allocation6], %s59
      %s62 = sshll.u32 [#allocation7], 4
      %s63 = int_to_ptr.vmem [resolvable:$true] %s62
      %65 = dma.hbm_to_vmem [thread:$0]  %s6, 32, %s63, [#allocation6]
    $region29: #{bert_forward.1} parent=1 // pred_fallthru
      _
    // Predicated region
    $region30: #{bert_forward.1} parent=1 // pred_check
      _
    $region31: #{bert_forward.1} parent=1 // pred_check_branch
      %67 = sbr.rel (0) target = $region33
    $region32: #{bert_forward.1} parent=1 // pred_region
      _
    $region33: #{bert_forward.1} parent=1 // pred_fallthru
      _
    // Predicated region
    $region34: #{bert_forward.1} parent=1 // pred_check
      _
    $region35: #{bert_forward.1} parent=1 // pred_check_branch
      %69 = sbr.rel (0) target = $region37
    $region36: #{bert_forward.1} parent=1 // pred_region
      %s71 = ssub.s32 32, 32
      %72 = vsyncadd [#allocation9], %s71
      %s73 = sshll.u32 [#allocation8], 4
      %s74 = int_to_ptr.vmem [resolvable:$true] %s73
      %79 = dma.hbm_to_vmem [thread:$0]  %s8, 32, %s74, [#allocation9], 16, 16, 1
    $region37: #{bert_forward.1} parent=1 // pred_fallthru
      _
    // Predicated region
    $region38: #{bert_forward.1} parent=1 // pred_check
      _
    $region39: #{bert_forward.1} parent=1 // pred_check_branch
      %81 = sbr.rel (0) target = $region41
    $region40: #{bert_forward.1} parent=1 // pred_region
      _
    $region41: #{bert_forward.1} parent=1 // pred_fallthru
      _
    // Predicated region
    $region42: #{bert_forward.1} parent=1 // pred_check
      _
    $region43: #{bert_forward.1} parent=1 // pred_check_branch
      %83 = sbr.rel (0) target = $region45
    $region44: #{bert_forward.1} parent=1 // pred_region
      _
    $region45: #{bert_forward.1} parent=1 // pred_fallthru
      _
    // Predicated region
    $region46: #{bert_forward.1} parent=1 // pred_check
      _
    $region47: #{bert_forward.1} parent=1 // pred_check_branch
      %85 = sbr.rel (0) target = $region49
    $region48: #{bert_forward.1} parent=1 // pred_region
      _
    $region49: #{bert_forward.1} parent=1 // pred_fallthru
      _
    // Predicated region
    $region50: #{bert_forward.1} parent=1 // pred_check
      _
    $region51: #{bert_forward.1} parent=1 // pred_check_branch
      %87 = sbr.rel (0) target = $region53
    $region52: #{bert_forward.1} parent=1 // pred_region
      %s89 = ssub.s32 32, 32
      %90 = vsyncadd [#allocation9], %s89
      %s91 = sshll.u32 [#allocation10], 4
      %s92 = int_to_ptr.vmem [resolvable:$true] %s91
      %97 = dma.hbm_to_vmem [thread:$0]  %s12, 32, %s92, [#allocation9], 16, 16, 1
    $region53: #{bert_forward.1} parent=1 // pred_fallthru
      _
    // Predicated region
    $region54: #{bert_forward.1} parent=1 // pred_check
      _
    $region55: #{bert_forward.1} parent=1 // pred_check_branch
      %99 = sbr.rel (0) target = $region57
    $region56: #{bert_forward.1} parent=1 // pred_region
      _
    $region57: #{bert_forward.1} parent=1 // pred_fallthru
      _
    // Predicated region
    $region58: #{bert_forward.1} parent=1 // pred_check
      _
    $region59: #{bert_forward.1} parent=1 // pred_check_branch
      %101 = sbr.rel (0) target = $region61
    $region60: #{bert_forward.1} parent=1 // pred_region
      %102 = dma.done [#allocation3], 32
    $region61: #{bert_forward.1} parent=1 // pred_fallthru
      _
    // Predicated region
    $region62: #{bert_forward.1} parent=1 // pred_check
      _
    $region63: #{bert_forward.1} parent=1 // pred_check_branch
      %104 = sbr.rel (0) target = $region65
    $region64: #{bert_forward.1} parent=1 // pred_region
      %105 = dma.done [#allocation6], 256
    $region65: #{bert_forward.1} parent=1 // pred_fallthru
      _
    // Predicated region
    $region66: #{bert_forward.1} parent=1 // pred_check
      _
    $region67: #{bert_forward.1} parent=1 // pred_check_branch
      %107 = sbr.rel (0) target = $region69
    $region68: #{bert_forward.1} parent=1 // pred_region
      %108 = dma.done [#allocation6], 32
    $region69: #{bert_forward.1} parent=1 // pred_fallthru
      _
    // Predicated region
    $region70: #{bert_forward.1} parent=1 // pred_check
      _
    $region71: #{bert_forward.1} parent=1 // pred_check_branch
      %110 = sbr.rel (0) target = $region73
    $region72: #{bert_forward.1} parent=1 // pred_region
      %111 = dma.done [#allocation9], 32
    $region73: #{bert_forward.1} parent=1 // pred_fallthru
      _
    // Predicated region
    $region74: #{bert_forward.1} parent=1 // pred_check
      _
    $region75: #{bert_forward.1} parent=1 // pred_check_branch
      %113 = sbr.rel (0) target = $region77
    $region76: #{bert_forward.1} parent=1 // pred_region
      %114 = dma.done [#allocation9], 32
    $region77: #{bert_forward.1} parent=1 // pred_fallthru
      _
    %v115 = vld [vmem:[%s0] sm:$0xff]
    %v116 = vld [vmem:[%s0 + $0x8] sm:$0xff]
    %v117 = vld [vmem:[%s1] sm:$0xff]
    %v118 = vld [vmem:[%s1 + $0x8] sm:$0xff]
    %v119 = vcvt.s32.f32 %v117
    %v120 = vcvt.s32.f32 %v118
    %vm121 = vcmp.gt.s32.totalorder %v115, 0
    %vm122 = vcmp.gt.s32.totalorder %v116, 0
    %v123 = vsel %vm121, 1, 0
    %v124 = vsel %vm122, 1, 0
    %v125 = vcvt.s32.f32 %v123
    %v126 = vcvt.s32.f32 %v124
    %v127 = vlaneseq
    %v128 = vand.u32 %v127, 127
    %129 = vset.pattern.permute.xlu0 0
    %130 = vperm.xlu0 %129, %v115
    %v131 = vpop.permute.xlu0 %130
    %132 = vset.pattern.permute.xlu0 0
    %133 = vperm.xlu0 %132, %v116
    %v134 = vpop.permute.xlu0 %133
    %vm135 = vcmp.eq.s32.totalorder %v131, %v128
    %vm136 = vcmp.eq.s32.totalorder %v134, %v128
    %v137 = vsel %vm135, 1, 0
    %v138 = vsel %vm136, 1, 0
    %v139 = vcvt.s32.f32 %v137
    %v140 = vcvt.s32.f32 %v138
    %v141 = vld [vmem:[%s3] sm:$0xff]
    %v142 = vld [vmem:[%s3 + $0x8] sm:$0xff]
    %v143 = vld [vmem:[%s3 + $0x10] sm:$0xff]
    %v144 = vld [vmem:[%s3 + $0x18] sm:$0xff]
    %v145 = vld [vmem:[#allocation2] sm:$0x1]
    %v146 = vld [vmem:[#allocation2 + $0x1] sm:$0x1]
    %v147 = vsub.f32 %v146, %v145
    %149 = vset.pattern.permute.xlu0 0
    %150 = vperm.xlu0 %149, %v119
    %v151 = vpop.permute.xlu0 %150
    %154 = vset.pattern.permute.xlu0 0
    %155 = vperm.xlu0 %154, %v120
    %v156 = vpop.permute.xlu0 %155
    %v158 = vlaneseq
    %v159 = vshrl.u32 %v158, 7
    %v160 = vsub.s32 0, %v159
    %v161 = vrot.slane %v147, %v160
    %v162 = vmul.f32 %v151, %v161
    %v163 = vmul.f32 %v156, %v161
    %v164 = vlaneseq
    %v165 = vshrl.u32 %v164, 7
    %v166 = vsub.s32 0, %v165
    %v167 = vrot.slane %v145, %v166
    %v168 = vadd.f32 %v167, %v162
    %v169 = vadd.f32 %v167, %v163
    %v170 = vld [vmem:[#allocation7] sm:$0x3]
    %vm171 = vcmask 261120
    %v173 = vsel %vm171, %v139, 0
    %v176 = vsel %vm171, %v140, 0
    %178 = vmatprep.subr.mxu0 0.0
    %179 = vmatpush1.msra.mxu0 %v141
    %180 = vmatprep.subr.mxu0 0.0
    %181 = vmatpush1.msra.mxu0 %v142
    %182 = vmatprep.subr.mxu0 0.0
    %183 = vmatpush1.msra.mxu0 %v143
    %184 = vmatprep.subr.mxu0 0.0
    %185 = vmatpush1.msra.mxu0 %v144
    %186 = vmatprep.subr.mxu0 0.0
    %187 = vmatpush1.msra.mxu0 0.0
    %188 = vmatprep.subr.mxu0 0.0
    %189 = vmatpush1.msra.mxu0 0.0
    %190 = vmatprep.subr.mxu0 0.0
    %191 = vmatpush1.msra.mxu0 0.0
    %192 = vmatprep.subr.mxu0 0.0
    %193 = vmatpush1.msra.mxu0 0.0
    %194 = vmatprep.subr.mxu0 0.0
    %195 = vmatpush1.msra.mxu0 0.0
    %196 = vmatprep.subr.mxu0 0.0
    %197 = vmatpush1.msra.mxu0 0.0
    %198 = vmatprep.subr.mxu0 0.0
    %199 = vmatpush1.msra.mxu0 0.0
    %200 = vmatprep.subr.mxu0 0.0
    %201 = vmatpush1.msra.mxu0 0.0
    %202 = vmatprep.subr.mxu0 0.0
    %203 = vmatpush1.msra.mxu0 0.0
    %204 = vmatprep.subr.mxu0 0.0
    %205 = vmatpush1.msra.mxu0 0.0
    %206 = vmatprep.subr.mxu0 0.0
    %207 = vmatpush1.msra.mxu0 0.0
    %208 = vmatprep.subr.mxu0 0.0
    %209 = vmatpush1.msra.mxu0 0.0
    %210 = vmatprep.subr.mxu0 0.0
    %211 = vmatpush1.msra.mxu0 0.0
    %212 = vmatprep.subr.mxu0 0.0
    %213 = vmatpush1.msra.mxu0 0.0
    %214 = vmatprep.subr.mxu0 0.0
    %215 = vmatpush1.msra.mxu0 0.0
    %216 = vmatprep.subr.mxu0 0.0
    %217 = vmatpush1.msra.mxu0 0.0
    %218 = vmatprep.subr.mxu0 0.0
    %219 = vmatpush1.msra.mxu0 0.0
    %220 = vmatprep.subr.mxu0 0.0
    %221 = vmatpush1.msra.mxu0 0.0
    %222 = vmatprep.subr.mxu0 0.0
    %223 = vmatpush1.msra.mxu0 0.0
    %224 = vmatprep.subr.mxu0 0.0
    %225 = vmatpush1.msra.mxu0 0.0
    %226 = vmatprep.subr.mxu0 0.0
    %227 = vmatpush1.msra.mxu0 0.0
    %228 = vmatprep.subr.mxu0 0.0
    %229 = vmatpush1.msra.mxu0 0.0
    %230 = vmatprep.subr.mxu0 0.0
    %231 = vmatpush1.msra.mxu0 0.0
    %232 = vmatprep.subr.mxu0 0.0
    %233 = vmatpush1.msra.mxu0 0.0
    %234 = vmatprep.subr.mxu0 0.0
    %235 = vmatpush1.msra.mxu0 0.0
    %236 = vmatprep.subr.mxu0 0.0
    %237 = vmatpush1.msra.mxu0 0.0
    %238 = vmatprep.subr.mxu0 0.0
    %239 = vmatpush1.msra.mxu0 0.0
    %240 = vmatprep.subr.mxu0 0.0
    %241 = vmatpush1.msra.mxu0 0.0
    %242 = vmatprep.mubr.f32.mxu0 0.0
    %243 = vmatmul.mubr.f32.gmra.mrb[0].mxu0 %v173
    %v244 = vpop.f32.mrb[0].mxu0
    %v245 = vadd.f32 %v168, %v244
    %v246 = vpop.f32.mrb[0].mxu0
    %247 = vmatprep.mubr.f32.mxu0 0.0
    %248 = vmatmul.mubr.f32.gmra.mrb[0].mxu0 %v176
    %v249 = vpop.f32.mrb[0].mxu0
    %v250 = vadd.f32 %v169, %v249
    %v251 = vpop.f32.mrb[0].mxu0
    %252 = vdwg.mxu0
    %v253 = vld [vmem:[#allocation5] sm:$0xff]
    %v254 = vld [vmem:[#allocation5 + $0x8] sm:$0xff]
    %v255 = vadd.f32 %v245, %v253
    %v256 = vadd.f32 %v250, %v254
    %v257 = vsel %vm171, %v255, 0.0
    %258 = vadd.xlane.f32.xlu0 %v257
    %v259 = vpop.xlane.xlu0 %258
    %v260 = vsel %vm171, %v256, 0.0
    %261 = vadd.xlane.f32.xlu0 %v260
    %v262 = vpop.xlane.xlu0 %261
    %v263 = vrcp.pop 32.0
    %v264 = vmul.f32 %v259, %v263
    %v265 = vmul.f32 %v262, %v263
    %v266 = vsub.f32 %v255, %v264
    %v267 = vsub.f32 %v256, %v265
    %v268 = vmul.f32 %v266, %v266
    %v269 = vmul.f32 %v267, %v267
    %v270 = vsel %vm171, %v268, 0.0
    %271 = vadd.xlane.f32.xlu0 %v270
    %v272 = vpop.xlane.xlu0 %271
    %v273 = vsel %vm171, %v269, 0.0
    %274 = vadd.xlane.f32.xlu0 %v273
    %v275 = vpop.xlane.xlu0 %274
    %v276 = vmul.f32 %v272, %v263
    %v277 = vmul.f32 %v275, %v263
    %v278 = vadd.f32 %v276, 1e-12
    %v279 = vadd.f32 %v277, 1e-12
    %v280 = vrsqrt.pop %v278
    %v281 = vrsqrt.pop %v279
    %v282 = vmul.f32 %v266, %v280
    %v283 = vmul.f32 %v267, %v281
    %v284 = vlaneseq
    %v285 = vshrl.u32 %v284, 7
    %v286 = vsub.s32 0, %v285
    %v287 = vrot.slane %v170, %v286
    %v288 = vmul.f32 %v282, %v287
    %v289 = vmul.f32 %v283, %v287
    %v290 = vlaneseq
    %v291 = vshrl.u32 %v290, 7
    %v292 = vsub.s32 1, %v291
    %v293 = vrot.slane %v170, %v292
    %v294 = vadd.f32 %v288, %v293
    %v295 = vadd.f32 %v289, %v293
    %v296 = vld [vmem:[%s2] sm:$0x1]
    %v297 = vld [vmem:[%s2 + $0x1] sm:$0x1]
    %vm298 = vcmp.gt.s32.totalorder %v296, 0
    %vm299 = vcmp.gt.s32.totalorder %v297, 0
    %v300 = vsel %vm298, 1, 0
    %v301 = vsel %vm299, 1, 0
    %v302 = vcvt.s32.f32 %v300
    %v303 = vcvt.s32.f32 %v301
    %v304 = vsub.f32 1.0, %v302
    %v305 = vsub.f32 1.0, %v303
    %v306 = vmul.f32 %v304, -1e+09
    %v307 = vmul.f32 %v305, -1e+09
    %v308 = vld [vmem:[%s7] sm:$0xff]
    %v309 = vld [vmem:[%s7 + $0x8] sm:$0xff]
    %v310 = vld [vmem:[%s7 + $0x10] sm:$0xff]
    %v311 = vld [vmem:[%s7 + $0x18] sm:$0xff]
    %v312 = vld [vmem:[#allocation8] sm:$0x1]
    %v313 = vld [vmem:[%s9] sm:$0xff]
    %v314 = vld [vmem:[%s9 + $0x8] sm:$0xff]
    %v315 = vld [vmem:[%s9 + $0x10] sm:$0xff]
    %v316 = vld [vmem:[%s9 + $0x18] sm:$0xff]
    %v317 = vld [vmem:[%s10] sm:$0x3f]
    %v318 = vld [vmem:[%s11] sm:$0xff]
    %v319 = vld [vmem:[%s11 + $0x8] sm:$0xff]
    %v320 = vld [vmem:[%s11 + $0x10] sm:$0xff]
    %v321 = vld [vmem:[%s11 + $0x18] sm:$0xff]
    %v322 = vld [vmem:[#allocation10] sm:$0x1]
    %v323 = vld [vmem:[%s13] sm:$0xff]
    %v324 = vld [vmem:[%s13 + $0x8] sm:$0xff]
    %v325 = vld [vmem:[%s13 + $0x10] sm:$0xff]
    %v326 = vld [vmem:[%s13 + $0x18] sm:$0xff]
    %v327 = vld [vmem:[%s13 + $0x20] sm:$0xff]
    %v328 = vld [vmem:[%s13 + $0x28] sm:$0xff]
    %v329 = vld [vmem:[%s13 + $0x30] sm:$0xff]
    %v330 = vld [vmem:[%s13 + $0x38] sm:$0xff]
    %v332 = vlaneseq
    %v333 = vshrl.u32 %v332, 7
    %v334 = vsub.s32 0, %v333
    %v335 = vrot.slane %v312, %v334
    %v338 = vsel %vm171, %v294, 0
    %v341 = vsel %vm171, %v295, 0
    %343 = vmatprep.subr.mxu0 0.0
    %344 = vmatpush1.msra.mxu0 %v308
    %345 = vmatprep.subr.mxu0 0.0
    %346 = vmatpush1.msra.mxu0 %v309
    %347 = vmatprep.subr.mxu0 0.0
    %348 = vmatpush1.msra.mxu0 %v310
    %349 = vmatprep.subr.mxu0 0.0
    %350 = vmatpush1.msra.mxu0 %v311
    %351 = vmatprep.subr.mxu0 0.0
    %352 = vmatpush1.msra.mxu0 0.0
    %353 = vmatprep.subr.mxu0 0.0
    %354 = vmatpush1.msra.mxu0 0.0
    %355 = vmatprep.subr.mxu0 0.0
    %356 = vmatpush1.msra.mxu0 0.0
    %357 = vmatprep.subr.mxu0 0.0
    %358 = vmatpush1.msra.mxu0 0.0
    %359 = vmatprep.subr.mxu0 0.0
    %360 = vmatpush1.msra.mxu0 0.0
    %361 = vmatprep.subr.mxu0 0.0
    %362 = vmatpush1.msra.mxu0 0.0
    %363 = vmatprep.subr.mxu0 0.0
    %364 = vmatpush1.msra.mxu0 0.0
    %365 = vmatprep.subr.mxu0 0.0
    %366 = vmatpush1.msra.mxu0 0.0
    %367 = vmatprep.subr.mxu0 0.0
    %368 = vmatpush1.msra.mxu0 0.0
    %369 = vmatprep.subr.mxu0 0.0
    %370 = vmatpush1.msra.mxu0 0.0
    %371 = vmatprep.subr.mxu0 0.0
    %372 = vmatpush1.msra.mxu0 0.0
    %373 = vmatprep.subr.mxu0 0.0
    %374 = vmatpush1.msra.mxu0 0.0
    %375 = vmatprep.subr.mxu0 0.0
    %376 = vmatpush1.msra.mxu0 0.0
    %377 = vmatprep.subr.mxu0 0.0
    %378 = vmatpush1.msra.mxu0 0.0
    %379 = vmatprep.subr.mxu0 0.0
    %380 = vmatpush1.msra.mxu0 0.0
    %381 = vmatprep.subr.mxu0 0.0
    %382 = vmatpush1.msra.mxu0 0.0
    %383 = vmatprep.subr.mxu0 0.0
    %384 = vmatpush1.msra.mxu0 0.0
    %385 = vmatprep.subr.mxu0 0.0
    %386 = vmatpush1.msra.mxu0 0.0
    %387 = vmatprep.subr.mxu0 0.0
    %388 = vmatpush1.msra.mxu0 0.0
    %389 = vmatprep.subr.mxu0 0.0
    %390 = vmatpush1.msra.mxu0 0.0
    %391 = vmatprep.subr.mxu0 0.0
    %392 = vmatpush1.msra.mxu0 0.0
    %393 = vmatprep.subr.mxu0 0.0
    %394 = vmatpush1.msra.mxu0 0.0
    %395 = vmatprep.subr.mxu0 0.0
    %396 = vmatpush1.msra.mxu0 0.0
    %397 = vmatprep.subr.mxu0 0.0
    %398 = vmatpush1.msra.mxu0 0.0
    %399 = vmatprep.subr.mxu0 0.0
    %400 = vmatpush1.msra.mxu0 0.0
    %401 = vmatprep.subr.mxu0 0.0
    %402 = vmatpush1.msra.mxu0 0.0
    %403 = vmatprep.subr.mxu0 0.0
    %404 = vmatpush1.msra.mxu0 0.0
    %405 = vmatprep.subr.mxu0 0.0
    %406 = vmatpush1.msra.mxu0 0.0
    %407 = vmatprep.mubr.f32.mxu0 0.0
    %408 = vmatmul.mubr.f32.gmra.mrb[0].mxu0 %v338
    %v409 = vpop.f32.mrb[0].mxu0
    %v410 = vadd.f32 %v335, %v409
    %v411 = vpop.f32.mrb[0].mxu0
    %412 = vmatprep.mubr.f32.mxu0 0.0
    %413 = vmatmul.mubr.f32.gmra.mrb[0].mxu0 %v341
    %v414 = vpop.f32.mrb[0].mxu0
    %v415 = vadd.f32 %v335, %v414
    %v416 = vpop.f32.mrb[0].mxu0
    %417 = vdwg.mxu0
    %420 = vrot.lane.b32.xlu0 %v410, 120
    %v421 = vpop.permute.xlu0 %420
    %422 = vrot.lane.b32.xlu0 %v415, 120
    %v423 = vpop.permute.xlu0 %422
    %424 = vrot.lane.b32.xlu0 %v410, 112
    %v425 = vpop.permute.xlu0 %424
    %426 = vrot.lane.b32.xlu0 %v415, 112
    %v427 = vpop.permute.xlu0 %426
    %428 = vrot.lane.b32.xlu0 %v410, 104
    %v429 = vpop.permute.xlu0 %428
    %430 = vrot.lane.b32.xlu0 %v415, 104
    %v431 = vpop.permute.xlu0 %430
    %432 = vrot.lane.b32.xlu0 %v410, 96
    %v433 = vpop.permute.xlu0 %432
    %vm434 = vcmask 64512
    %v435 = vsel %vm434, %v410, 0
    %v437 = vsel %vm434, %v433, 0
    %439 = vmatprep.subr.mxu0 0.0
    %440 = vmatpush1.xpose.msra.mxu0 %v437
    %441 = vmatprep.subr.mxu0 0.0
    %442 = vmatpush1.xpose.msra.mxu0 0.0
    %443 = vmatprep.subr.mxu0 0.0
    %444 = vmatpush1.xpose.msra.mxu0 0.0
    %445 = vmatprep.subr.mxu0 0.0
    %446 = vmatpush1.xpose.msra.mxu0 0.0
    %447 = vmatprep.subr.mxu0 0.0
    %448 = vmatpush1.xpose.msra.mxu0 0.0
    %449 = vmatprep.subr.mxu0 0.0
    %450 = vmatpush1.xpose.msra.mxu0 0.0
    %451 = vmatprep.subr.mxu0 0.0
    %452 = vmatpush1.xpose.msra.mxu0 0.0
    %453 = vmatprep.subr.mxu0 0.0
    %454 = vmatpush1.xpose.msra.mxu0 0.0
    %455 = vmatprep.subr.mxu0 0.0
    %456 = vmatpush1.xpose.msra.mxu0 0.0
    %457 = vmatprep.subr.mxu0 0.0
    %458 = vmatpush1.xpose.msra.mxu0 0.0
    %459 = vmatprep.subr.mxu0 0.0
    %460 = vmatpush1.xpose.msra.mxu0 0.0
    %461 = vmatprep.subr.mxu0 0.0
    %462 = vmatpush1.xpose.msra.mxu0 0.0
    %463 = vmatprep.subr.mxu0 0.0
    %464 = vmatpush1.xpose.msra.mxu0 0.0
    %465 = vmatprep.subr.mxu0 0.0
    %466 = vmatpush1.xpose.msra.mxu0 0.0
    %467 = vmatprep.subr.mxu0 0.0
    %468 = vmatpush1.xpose.msra.mxu0 0.0
    %469 = vmatprep.subr.mxu0 0.0
    %470 = vmatpush1.xpose.msra.mxu0 0.0
    %471 = vmatprep.subr.mxu0 0.0
    %472 = vmatpush1.xpose.msra.mxu0 0.0
    %473 = vmatprep.subr.mxu0 0.0
    %474 = vmatpush1.xpose.msra.mxu0 0.0
    %475 = vmatprep.subr.mxu0 0.0
    %476 = vmatpush1.xpose.msra.mxu0 0.0
    %477 = vmatprep.subr.mxu0 0.0
    %478 = vmatpush1.xpose.msra.mxu0 0.0
    %479 = vmatprep.subr.mxu0 0.0
    %480 = vmatpush1.xpose.msra.mxu0 0.0
    %481 = vmatprep.subr.mxu0 0.0
    %482 = vmatpush1.xpose.msra.mxu0 0.0
    %483 = vmatprep.subr.mxu0 0.0
    %484 = vmatpush1.xpose.msra.mxu0 0.0
    %485 = vmatprep.subr.mxu0 0.0
    %486 = vmatpush1.xpose.msra.mxu0 0.0
    %487 = vmatprep.subr.mxu0 0.0
    %488 = vmatpush1.xpose.msra.mxu0 0.0
    %489 = vmatprep.subr.mxu0 0.0
    %490 = vmatpush1.xpose.msra.mxu0 0.0
    %491 = vmatprep.subr.mxu0 0.0
    %492 = vmatpush1.xpose.msra.mxu0 0.0
    %493 = vmatprep.subr.mxu0 0.0
    %494 = vmatpush1.xpose.msra.mxu0 0.0
    %495 = vmatprep.subr.mxu0 0.0
    %496 = vmatpush1.xpose.msra.mxu0 0.0
    %497 = vmatprep.subr.mxu0 0.0
    %498 = vmatpush1.xpose.msra.mxu0 0.0
    %499 = vmatprep.subr.mxu0 0.0
    %500 = vmatpush1.xpose.msra.mxu0 0.0
    %501 = vmatprep.subr.mxu0 0.0
    %502 = vmatpush1.xpose.msra.mxu0 0.0
    %503 = vmatprep.mubr.f32.mxu0 0.0
    %504 = vmatmul.mubr.f32.gmra.mrb[0].mxu0 %v435
    %v505 = vpop.f32.mrb[0].mxu0
    %v506 = vadd.f32 0.0, %v505
    %v507 = vpop.f32.mrb[0].mxu0
    %508 = vdwg.mxu0
    %509 = vrot.lane.b32.xlu0 %v415, 96
    %v510 = vpop.permute.xlu0 %509
    %v511 = vsel %vm434, %v415, 0
    %v513 = vsel %vm434, %v510, 0
    %515 = vmatprep.subr.mxu0 0.0
    %516 = vmatpush1.xpose.msra.mxu0 %v513
    %517 = vmatprep.subr.mxu0 0.0
    %518 = vmatpush1.xpose.msra.mxu0 0.0
    %519 = vmatprep.subr.mxu0 0.0
    %520 = vmatpush1.xpose.msra.mxu0 0.0
    %521 = vmatprep.subr.mxu0 0.0
    %522 = vmatpush1.xpose.msra.mxu0 0.0
    %523 = vmatprep.subr.mxu0 0.0
    %524 = vmatpush1.xpose.msra.mxu0 0.0
    %525 = vmatprep.subr.mxu0 0.0
    %526 = vmatpush1.xpose.msra.mxu0 0.0
    %527 = vmatprep.subr.mxu0 0.0
    %528 = vmatpush1.xpose.msra.mxu0 0.0
    %529 = vmatprep.subr.mxu0 0.0
    %530 = vmatpush1.xpose.msra.mxu0 0.0
    %531 = vmatprep.subr.mxu0 0.0
    %532 = vmatpush1.xpose.msra.mxu0 0.0
    %533 = vmatprep.subr.mxu0 0.0
    %534 = vmatpush1.xpose.msra.mxu0 0.0
    %535 = vmatprep.subr.mxu0 0.0
    %536 = vmatpush1.xpose.msra.mxu0 0.0
    %537 = vmatprep.subr.mxu0 0.0
    %538 = vmatpush1.xpose.msra.mxu0 0.0
    %539 = vmatprep.subr.mxu0 0.0
    %540 = vmatpush1.xpose.msra.mxu0 0.0
    %541 = vmatprep.subr.mxu0 0.0
    %542 = vmatpush1.xpose.msra.mxu0 0.0
    %543 = vmatprep.subr.mxu0 0.0
    %544 = vmatpush1.xpose.msra.mxu0 0.0
    %545 = vmatprep.subr.mxu0 0.0
    %546 = vmatpush1.xpose.msra.mxu0 0.0
    %547 = vmatprep.subr.mxu0 0.0
    %548 = vmatpush1.xpose.msra.mxu0 0.0
    %549 = vmatprep.subr.mxu0 0.0
    %550 = vmatpush1.xpose.msra.mxu0 0.0
    %551 = vmatprep.subr.mxu0 0.0
    %552 = vmatpush1.xpose.msra.mxu0 0.0
    %553 = vmatprep.subr.mxu0 0.0
    %554 = vmatpush1.xpose.msra.mxu0 0.0
    %555 = vmatprep.subr.mxu0 0.0
    %556 = vmatpush1.xpose.msra.mxu0 0.0
    %557 = vmatprep.subr.mxu0 0.0
    %558 = vmatpush1.xpose.msra.mxu0 0.0
    %559 = vmatprep.subr.mxu0 0.0
    %560 = vmatpush1.xpose.msra.mxu0 0.0
    %561 = vmatprep.subr.mxu0 0.0
    %562 = vmatpush1.xpose.msra.mxu0 0.0
    %563 = vmatprep.subr.mxu0 0.0
    %564 = vmatpush1.xpose.msra.mxu0 0.0
    %565 = vmatprep.subr.mxu0 0.0
    %566 = vmatpush1.xpose.msra.mxu0 0.0
    %567 = vmatprep.subr.mxu0 0.0
    %568 = vmatpush1.xpose.msra.mxu0 0.0
    %569 = vmatprep.subr.mxu0 0.0
    %570 = vmatpush1.xpose.msra.mxu0 0.0
    %571 = vmatprep.subr.mxu0 0.0
    %572 = vmatpush1.xpose.msra.mxu0 0.0
    %573 = vmatprep.subr.mxu0 0.0
    %574 = vmatpush1.xpose.msra.mxu0 0.0
    %575 = vmatprep.subr.mxu0 0.0
    %576 = vmatpush1.xpose.msra.mxu0 0.0
    %577 = vmatprep.subr.mxu0 0.0
    %578 = vmatpush1.xpose.msra.mxu0 0.0
    %579 = vmatprep.mubr.f32.mxu0 0.0
    %580 = vmatmul.mubr.f32.gmra.mrb[0].mxu0 %v511
    %v581 = vpop.f32.mrb[0].mxu0
    %v582 = vadd.f32 0.0, %v581
    %v583 = vpop.f32.mrb[0].mxu0
    %584 = vdwg.mxu0
    %585 = vrot.lane.b32.xlu0 %v421, 96
    %v586 = vpop.permute.xlu0 %585
    %v587 = vsel %vm434, %v421, 0
    %v589 = vsel %vm434, %v586, 0
    %591 = vmatprep.subr.mxu0 0.0
    %592 = vmatpush1.xpose.msra.mxu0 %v589
    %593 = vmatprep.subr.mxu0 0.0
    %594 = vmatpush1.xpose.msra.mxu0 0.0
    %595 = vmatprep.subr.mxu0 0.0
    %596 = vmatpush1.xpose.msra.mxu0 0.0
    %597 = vmatprep.subr.mxu0 0.0
    %598 = vmatpush1.xpose.msra.mxu0 0.0
    %599 = vmatprep.subr.mxu0 0.0
    %600 = vmatpush1.xpose.msra.mxu0 0.0
    %601 = vmatprep.subr.mxu0 0.0
    %602 = vmatpush1.xpose.msra.mxu0 0.0
    %603 = vmatprep.subr.mxu0 0.0
    %604 = vmatpush1.xpose.msra.mxu0 0.0
    %605 = vmatprep.subr.mxu0 0.0
    %606 = vmatpush1.xpose.msra.mxu0 0.0
    %607 = vmatprep.subr.mxu0 0.0
    %608 = vmatpush1.xpose.msra.mxu0 0.0
    %609 = vmatprep.subr.mxu0 0.0
    %610 = vmatpush1.xpose.msra.mxu0 0.0
    %611 = vmatprep.subr.mxu0 0.0
    %612 = vmatpush1.xpose.msra.mxu0 0.0
    %613 = vmatprep.subr.mxu0 0.0
    %614 = vmatpush1.xpose.msra.mxu0 0.0
    %615 = vmatprep.subr.mxu0 0.0
    %616 = vmatpush1.xpose.msra.mxu0 0.0
    %617 = vmatprep.subr.mxu0 0.0
    %618 = vmatpush1.xpose.msra.mxu0 0.0
    %619 = vmatprep.subr.mxu0 0.0
    %620 = vmatpush1.xpose.msra.mxu0 0.0
    %621 = vmatprep.subr.mxu0 0.0
    %622 = vmatpush1.xpose.msra.mxu0 0.0
    %623 = vmatprep.subr.mxu0 0.0
    %624 = vmatpush1.xpose.msra.mxu0 0.0
    %625 = vmatprep.subr.mxu0 0.0
    %626 = vmatpush1.xpose.msra.mxu0 0.0
    %627 = vmatprep.subr.mxu0 0.0
    %628 = vmatpush1.xpose.msra.mxu0 0.0
    %629 = vmatprep.subr.mxu0 0.0
    %630 = vmatpush1.xpose.msra.mxu0 0.0
    %631 = vmatprep.subr.mxu0 0.0
    %632 = vmatpush1.xpose.msra.mxu0 0.0
    %633 = vmatprep.subr.mxu0 0.0
    %634 = vmatpush1.xpose.msra.mxu0 0.0
    %635 = vmatprep.subr.mxu0 0.0
    %636 = vmatpush1.xpose.msra.mxu0 0.0
    %637 = vmatprep.subr.mxu0 0.0
    %638 = vmatpush1.xpose.msra.mxu0 0.0
    %639 = vmatprep.subr.mxu0 0.0
    %640 = vmatpush1.xpose.msra.mxu0 0.0
    %641 = vmatprep.subr.mxu0 0.0
    %642 = vmatpush1.xpose.msra.mxu0 0.0
    %643 = vmatprep.subr.mxu0 0.0
    %644 = vmatpush1.xpose.msra.mxu0 0.0
    %645 = vmatprep.subr.mxu0 0.0
    %646 = vmatpush1.xpose.msra.mxu0 0.0
    %647 = vmatprep.subr.mxu0 0.0
    %648 = vmatpush1.xpose.msra.mxu0 0.0
    %649 = vmatprep.subr.mxu0 0.0
    %650 = vmatpush1.xpose.msra.mxu0 0.0
    %651 = vmatprep.subr.mxu0 0.0
    %652 = vmatpush1.xpose.msra.mxu0 0.0
    %653 = vmatprep.subr.mxu0 0.0
    %654 = vmatpush1.xpose.msra.mxu0 0.0
    %655 = vmatprep.mubr.f32.mxu0 0.0
    %656 = vmatmul.mubr.f32.gmra.mrb[0].mxu0 %v587
    %v657 = vpop.f32.mrb[0].mxu0
    %v658 = vadd.f32 0.0, %v657
    %v659 = vpop.f32.mrb[0].mxu0
    %660 = vdwg.mxu0
    %661 = vrot.lane.b32.xlu0 %v423, 96
    %v662 = vpop.permute.xlu0 %661
    %v663 = vsel %vm434, %v423, 0
    %v665 = vsel %vm434, %v662, 0
    %667 = vmatprep.subr.mxu0 0.0
    %668 = vmatpush1.xpose.msra.mxu0 %v665
    %669 = vmatprep.subr.mxu0 0.0
    %670 = vmatpush1.xpose.msra.mxu0 0.0
    %671 = vmatprep.subr.mxu0 0.0
    %672 = vmatpush1.xpose.msra.mxu0 0.0
    %673 = vmatprep.subr.mxu0 0.0
    %674 = vmatpush1.xpose.msra.mxu0 0.0
    %675 = vmatprep.subr.mxu0 0.0
    %676 = vmatpush1.xpose.msra.mxu0 0.0
    %677 = vmatprep.subr.mxu0 0.0
    %678 = vmatpush1.xpose.msra.mxu0 0.0
    %679 = vmatprep.subr.mxu0 0.0
    %680 = vmatpush1.xpose.msra.mxu0 0.0
    %681 = vmatprep.subr.mxu0 0.0
    %682 = vmatpush1.xpose.msra.mxu0 0.0
    %683 = vmatprep.subr.mxu0 0.0
    %684 = vmatpush1.xpose.msra.mxu0 0.0
    %685 = vmatprep.subr.mxu0 0.0
    %686 = vmatpush1.xpose.msra.mxu0 0.0
    %687 = vmatprep.subr.mxu0 0.0
    %688 = vmatpush1.xpose.msra.mxu0 0.0
    %689 = vmatprep.subr.mxu0 0.0
    %690 = vmatpush1.xpose.msra.mxu0 0.0
    %691 = vmatprep.subr.mxu0 0.0
    %692 = vmatpush1.xpose.msra.mxu0 0.0
    %693 = vmatprep.subr.mxu0 0.0
    %694 = vmatpush1.xpose.msra.mxu0 0.0
    %695 = vmatprep.subr.mxu0 0.0
    %696 = vmatpush1.xpose.msra.mxu0 0.0
    %697 = vmatprep.subr.mxu0 0.0
    %698 = vmatpush1.xpose.msra.mxu0 0.0
    %699 = vmatprep.subr.mxu0 0.0
    %700 = vmatpush1.xpose.msra.mxu0 0.0
    %701 = vmatprep.subr.mxu0 0.0
    %702 = vmatpush1.xpose.msra.mxu0 0.0
    %703 = vmatprep.subr.mxu0 0.0
    %704 = vmatpush1.xpose.msra.mxu0 0.0
    %705 = vmatprep.subr.mxu0 0.0
    %706 = vmatpush1.xpose.msra.mxu0 0.0
    %707 = vmatprep.subr.mxu0 0.0
    %708 = vmatpush1.xpose.msra.mxu0 0.0
    %709 = vmatprep.subr.mxu0 0.0
    %710 = vmatpush1.xpose.msra.mxu0 0.0
    %711 = vmatprep.subr.mxu0 0.0
    %712 = vmatpush1.xpose.msra.mxu0 0.0
    %713 = vmatprep.subr.mxu0 0.0
    %714 = vmatpush1.xpose.msra.mxu0 0.0
    %715 = vmatprep.subr.mxu0 0.0
    %716 = vmatpush1.xpose.msra.mxu0 0.0
    %717 = vmatprep.subr.mxu0 0.0
    %718 = vmatpush1.xpose.msra.mxu0 0.0
    %719 = vmatprep.subr.mxu0 0.0
    %720 = vmatpush1.xpose.msra.mxu0 0.0
    %721 = vmatprep.subr.mxu0 0.0
    %722 = vmatpush1.xpose.msra.mxu0 0.0
    %723 = vmatprep.subr.mxu0 0.0
    %724 = vmatpush1.xpose.msra.mxu0 0.0
    %725 = vmatprep.subr.mxu0 0.0
    %726 = vmatpush1.xpose.msra.mxu0 0.0
    %727 = vmatprep.subr.mxu0 0.0
    %728 = vmatpush1.xpose.msra.mxu0 0.0
    %729 = vmatprep.subr.mxu0 0.0
    %730 = vmatpush1.xpose.msra.mxu0 0.0
    %731 = vmatprep.mubr.f32.mxu0 0.0
    %732 = vmatmul.mubr.f32.gmra.mrb[0].mxu0 %v663
    %v733 = vpop.f32.mrb[0].mxu0
    %v734 = vadd.f32 0.0, %v733
    %v735 = vpop.f32.mrb[0].mxu0
    %736 = vdwg.mxu0
    %737 = vrot.lane.b32.xlu0 %v425, 96
    %v738 = vpop.permute.xlu0 %737
    %v739 = vsel %vm434, %v425, 0
    %v741 = vsel %vm434, %v738, 0
    %743 = vmatprep.subr.mxu0 0.0
    %744 = vmatpush1.xpose.msra.mxu0 %v741
    %745 = vmatprep.subr.mxu0 0.0
    %746 = vmatpush1.xpose.msra.mxu0 0.0
    %747 = vmatprep.subr.mxu0 0.0
    %748 = vmatpush1.xpose.msra.mxu0 0.0
    %749 = vmatprep.subr.mxu0 0.0
    %750 = vmatpush1.xpose.msra.mxu0 0.0
    %751 = vmatprep.subr.mxu0 0.0
    %752 = vmatpush1.xpose.msra.mxu0 0.0
    %753 = vmatprep.subr.mxu0 0.0
    %754 = vmatpush1.xpose.msra.mxu0 0.0
    %755 = vmatprep.subr.mxu0 0.0
    %756 = vmatpush1.xpose.msra.mxu0 0.0
    %757 = vmatprep.subr.mxu0 0.0
    %758 = vmatpush1.xpose.msra.mxu0 0.0
    %759 = vmatprep.subr.mxu0 0.0
    %760 = vmatpush1.xpose.msra.mxu0 0.0
    %761 = vmatprep.subr.mxu0 0.0
    %762 = vmatpush1.xpose.msra.mxu0 0.0
    %763 = vmatprep.subr.mxu0 0.0
    %764 = vmatpush1.xpose.msra.mxu0 0.0
    %765 = vmatprep.subr.mxu0 0.0
    %766 = vmatpush1.xpose.msra.mxu0 0.0
    %767 = vmatprep.subr.mxu0 0.0
    %768 = vmatpush1.xpose.msra.mxu0 0.0
    %769 = vmatprep.subr.mxu0 0.0
    %770 = vmatpush1.xpose.msra.mxu0 0.0
    %771 = vmatprep.subr.mxu0 0.0
    %772 = vmatpush1.xpose.msra.mxu0 0.0
    %773 = vmatprep.subr.mxu0 0.0
    %774 = vmatpush1.xpose.msra.mxu0 0.0
    %775 = vmatprep.subr.mxu0 0.0
    %776 = vmatpush1.xpose.msra.mxu0 0.0
    %777 = vmatprep.subr.mxu0 0.0
    %778 = vmatpush1.xpose.msra.mxu0 0.0
    %779 = vmatprep.subr.mxu0 0.0
    %780 = vmatpush1.xpose.msra.mxu0 0.0
    %781 = vmatprep.subr.mxu0 0.0
    %782 = vmatpush1.xpose.msra.mxu0 0.0
    %783 = vmatprep.subr.mxu0 0.0
    %784 = vmatpush1.xpose.msra.mxu0 0.0
    %785 = vmatprep.subr.mxu0 0.0
    %786 = vmatpush1.xpose.msra.mxu0 0.0
    %787 = vmatprep.subr.mxu0 0.0
    %788 = vmatpush1.xpose.msra.mxu0 0.0
    %789 = vmatprep.subr.mxu0 0.0
    %790 = vmatpush1.xpose.msra.mxu0 0.0
    %791 = vmatprep.subr.mxu0 0.0
    %792 = vmatpush1.xpose.msra.mxu0 0.0
    %793 = vmatprep.subr.mxu0 0.0
    %794 = vmatpush1.xpose.msra.mxu0 0.0
    %795 = vmatprep.subr.mxu0 0.0
    %796 = vmatpush1.xpose.msra.mxu0 0.0
    %797 = vmatprep.subr.mxu0 0.0
    %798 = vmatpush1.xpose.msra.mxu0 0.0
    %799 = vmatprep.subr.mxu0 0.0
    %800 = vmatpush1.xpose.msra.mxu0 0.0
    %801 = vmatprep.subr.mxu0 0.0
    %802 = vmatpush1.xpose.msra.mxu0 0.0
    %803 = vmatprep.subr.mxu0 0.0
    %804 = vmatpush1.xpose.msra.mxu0 0.0
    %805 = vmatprep.subr.mxu0 0.0
    %806 = vmatpush1.xpose.msra.mxu0 0.0
    %807 = vmatprep.mubr.f32.mxu0 0.0
    %808 = vmatmul.mubr.f32.gmra.mrb[0].mxu0 %v739
    %v809 = vpop.f32.mrb[0].mxu0
    %v810 = vadd.f32 0.0, %v809
    %v811 = vpop.f32.mrb[0].mxu0
    %812 = vdwg.mxu0
    %813 = vrot.lane.b32.xlu0 %v427, 96
    %v814 = vpop.permute.xlu0 %813
    %v815 = vsel %vm434, %v427, 0
    %v817 = vsel %vm434, %v814, 0
    %819 = vmatprep.subr.mxu0 0.0
    %820 = vmatpush1.xpose.msra.mxu0 %v817
    %821 = vmatprep.subr.mxu0 0.0
    %822 = vmatpush1.xpose.msra.mxu0 0.0
    %823 = vmatprep.subr.mxu0 0.0
    %824 = vmatpush1.xpose.msra.mxu0 0.0
    %825 = vmatprep.subr.mxu0 0.0
    %826 = vmatpush1.xpose.msra.mxu0 0.0
    %827 = vmatprep.subr.mxu0 0.0
    %828 = vmatpush1.xpose.msra.mxu0 0.0
    %829 = vmatprep.subr.mxu0 0.0
    %830 = vmatpush1.xpose.msra.mxu0 0.0
    %831 = vmatprep.subr.mxu0 0.0
    %832 = vmatpush1.xpose.msra.mxu0 0.0
    %833 = vmatprep.subr.mxu0 0.0
    %834 = vmatpush1.xpose.msra.mxu0 0.0
    %835 = vmatprep.subr.mxu0 0.0
    %836 = vmatpush1.xpose.msra.mxu0 0.0
    %837 = vmatprep.subr.mxu0 0.0
    %838 = vmatpush1.xpose.msra.mxu0 0.0
    %839 = vmatprep.subr.mxu0 0.0
    %840 = vmatpush1.xpose.msra.mxu0 0.0
    %841 = vmatprep.subr.mxu0 0.0
    %842 = vmatpush1.xpose.msra.mxu0 0.0
    %843 = vmatprep.subr.mxu0 0.0
    %844 = vmatpush1.xpose.msra.mxu0 0.0
    %845 = vmatprep.subr.mxu0 0.0
    %846 = vmatpush1.xpose.msra.mxu0 0.0
    %847 = vmatprep.subr.mxu0 0.0
    %848 = vmatpush1.xpose.msra.mxu0 0.0
    %849 = vmatprep.subr.mxu0 0.0
    %850 = vmatpush1.xpose.msra.mxu0 0.0
    %851 = vmatprep.subr.mxu0 0.0
    %852 = vmatpush1.xpose.msra.mxu0 0.0
    %853 = vmatprep.subr.mxu0 0.0
    %854 = vmatpush1.xpose.msra.mxu0 0.0
    %855 = vmatprep.subr.mxu0 0.0
    %856 = vmatpush1.xpose.msra.mxu0 0.0
    %857 = vmatprep.subr.mxu0 0.0
    %858 = vmatpush1.xpose.msra.mxu0 0.0
    %859 = vmatprep.subr.mxu0 0.0
    %860 = vmatpush1.xpose.msra.mxu0 0.0
    %861 = vmatprep.subr.mxu0 0.0
    %862 = vmatpush1.xpose.msra.mxu0 0.0
    %863 = vmatprep.subr.mxu0 0.0
    %864 = vmatpush1.xpose.msra.mxu0 0.0
    %865 = vmatprep.subr.mxu0 0.0
    %866 = vmatpush1.xpose.msra.mxu0 0.0
    %867 = vmatprep.subr.mxu0 0.0
    %868 = vmatpush1.xpose.msra.mxu0 0.0
    %869 = vmatprep.subr.mxu0 0.0
    %870 = vmatpush1.xpose.msra.mxu0 0.0
    %871 = vmatprep.subr.mxu0 0.0
    %872 = vmatpush1.xpose.msra.mxu0 0.0
    %873 = vmatprep.subr.mxu0 0.0
    %874 = vmatpush1.xpose.msra.mxu0 0.0
    %875 = vmatprep.subr.mxu0 0.0
    %876 = vmatpush1.xpose.msra.mxu0 0.0
    %877 = vmatprep.subr.mxu0 0.0
    %878 = vmatpush1.xpose.msra.mxu0 0.0
    %879 = vmatprep.subr.mxu0 0.0
    %880 = vmatpush1.xpose.msra.mxu0 0.0
    %881 = vmatprep.subr.mxu0 0.0
    %882 = vmatpush1.xpose.msra.mxu0 0.0
    %883 = vmatprep.mubr.f32.mxu0 0.0
    %884 = vmatmul.mubr.f32.gmra.mrb[0].mxu0 %v815
    %v885 = vpop.f32.mrb[0].mxu0
    %v886 = vadd.f32 0.0, %v885
    %v887 = vpop.f32.mrb[0].mxu0
    %888 = vdwg.mxu0
    %889 = vrot.lane.b32.xlu0 %v429, 96
    %v890 = vpop.permute.xlu0 %889
    %v891 = vsel %vm434, %v429, 0
    %v893 = vsel %vm434, %v890, 0
    %895 = vmatprep.subr.mxu0 0.0
    %896 = vmatpush1.xpose.msra.mxu0 %v893
    %897 = vmatprep.subr.mxu0 0.0
    %898 = vmatpush1.xpose.msra.mxu0 0.0
    %899 = vmatprep.subr.mxu0 0.0
    %900 = vmatpush1.xpose.msra.mxu0 0.0
    %901 = vmatprep.subr.mxu0 0.0
    %902 = vmatpush1.xpose.msra.mxu0 0.0
    %903 = vmatprep.subr.mxu0 0.0
    %904 = vmatpush1.xpose.msra.mxu0 0.0
    %905 = vmatprep.subr.mxu0 0.0
    %906 = vmatpush1.xpose.msra.mxu0 0.0
    %907 = vmatprep.subr.mxu0 0.0
    %908 = vmatpush1.xpose.msra.mxu0 0.0
    %909 = vmatprep.subr.mxu0 0.0
    %910 = vmatpush1.xpose.msra.mxu0 0.0
    %911 = vmatprep.subr.mxu0 0.0
    %912 = vmatpush1.xpose.msra.mxu0 0.0
    %913 = vmatprep.subr.mxu0 0.0
    %914 = vmatpush1.xpose.msra.mxu0 0.0
    %915 = vmatprep.subr.mxu0 0.0
    %916 = vmatpush1.xpose.msra.mxu0 0.0
    %917 = vmatprep.subr.mxu0 0.0
    %918 = vmatpush1.xpose.msra.mxu0 0.0
    %919 = vmatprep.subr.mxu0 0.0
    %920 = vmatpush1.xpose.msra.mxu0 0.0
    %921 = vmatprep.subr.mxu0 0.0
    %922 = vmatpush1.xpose.msra.mxu0 0.0
    %923 = vmatprep.subr.mxu0 0.0
    %924 = vmatpush1.xpose.msra.mxu0 0.0
    %925 = vmatprep.subr.mxu0 0.0
    %926 = vmatpush1.xpose.msra.mxu0 0.0
    %927 = vmatprep.subr.mxu0 0.0
    %928 = vmatpush1.xpose.msra.mxu0 0.0
    %929 = vmatprep.subr.mxu0 0.0
    %930 = vmatpush1.xpose.msra.mxu0 0.0
    %931 = vmatprep.subr.mxu0 0.0
    %932 = vmatpush1.xpose.msra.mxu0 0.0
    %933 = vmatprep.subr.mxu0 0.0
    %934 = vmatpush1.xpose.msra.mxu0 0.0
    %935 = vmatprep.subr.mxu0 0.0
    %936 = vmatpush1.xpose.msra.mxu0 0.0
    %937 = vmatprep.subr.mxu0 0.0
    %938 = vmatpush1.xpose.msra.mxu0 0.0
    %939 = vmatprep.subr.mxu0 0.0
    %940 = vmatpush1.xpose.msra.mxu0 0.0
    %941 = vmatprep.subr.mxu0 0.0
    %942 = vmatpush1.xpose.msra.mxu0 0.0
    %943 = vmatprep.subr.mxu0 0.0
    %944 = vmatpush1.xpose.msra.mxu0 0.0
    %945 = vmatprep.subr.mxu0 0.0
    %946 = vmatpush1.xpose.msra.mxu0 0.0
    %947 = vmatprep.subr.mxu0 0.0
    %948 = vmatpush1.xpose.msra.mxu0 0.0
    %949 = vmatprep.subr.mxu0 0.0
    %950 = vmatpush1.xpose.msra.mxu0 0.0
    %951 = vmatprep.subr.mxu0 0.0
    %952 = vmatpush1.xpose.msra.mxu0 0.0
    %953 = vmatprep.subr.mxu0 0.0
    %954 = vmatpush1.xpose.msra.mxu0 0.0
    %955 = vmatprep.subr.mxu0 0.0
    %956 = vmatpush1.xpose.msra.mxu0 0.0
    %957 = vmatprep.subr.mxu0 0.0
    %958 = vmatpush1.xpose.msra.mxu0 0.0
    %959 = vmatprep.mubr.f32.mxu0 0.0
    %960 = vmatmul.mubr.f32.gmra.mrb[0].mxu0 %v891
    %v961 = vpop.f32.mrb[0].mxu0
    %v962 = vadd.f32 0.0, %v961
    %v963 = vpop.f32.mrb[0].mxu0
    %964 = vdwg.mxu0
    %965 = vrot.lane.b32.xlu0 %v431, 96
    %v966 = vpop.permute.xlu0 %965
    %v967 = vsel %vm434, %v431, 0
    %v969 = vsel %vm434, %v966, 0
    %971 = vmatprep.subr.mxu0 0.0
    %972 = vmatpush1.xpose.msra.mxu0 %v969
    %973 = vmatprep.subr.mxu0 0.0
    %974 = vmatpush1.xpose.msra.mxu0 0.0
    %975 = vmatprep.subr.mxu0 0.0
    %976 = vmatpush1.xpose.msra.mxu0 0.0
    %977 = vmatprep.subr.mxu0 0.0
    %978 = vmatpush1.xpose.msra.mxu0 0.0
    %979 = vmatprep.subr.mxu0 0.0
    %980 = vmatpush1.xpose.msra.mxu0 0.0
    %981 = vmatprep.subr.mxu0 0.0
    %982 = vmatpush1.xpose.msra.mxu0 0.0
    %983 = vmatprep.subr.mxu0 0.0
    %984 = vmatpush1.xpose.msra.mxu0 0.0
    %985 = vmatprep.subr.mxu0 0.0
    %986 = vmatpush1.xpose.msra.mxu0 0.0
    %987 = vmatprep.subr.mxu0 0.0
    %988 = vmatpush1.xpose.msra.mxu0 0.0
    %989 = vmatprep.subr.mxu0 0.0
    %990 = vmatpush1.xpose.msra.mxu0 0.0
    %991 = vmatprep.subr.mxu0 0.0
    %992 = vmatpush1.xpose.msra.mxu0 0.0
    %993 = vmatprep.subr.mxu0 0.0
    %994 = vmatpush1.xpose.msra.mxu0 0.0
    %995 = vmatprep.subr.mxu0 0.0
    %996 = vmatpush1.xpose.msra.mxu0 0.0
    %997 = vmatprep.subr.mxu0 0.0
    %998 = vmatpush1.xpose.msra.mxu0 0.0
    %999 = vmatprep.subr.mxu0 0.0
    %1000 = vmatpush1.xpose.msra.mxu0 0.0
    %1001 = vmatprep.subr.mxu0 0.0
    %1002 = vmatpush1.xpose.msra.mxu0 0.0
    %1003 = vmatprep.subr.mxu0 0.0
    %1004 = vmatpush1.xpose.msra.mxu0 0.0
    %1005 = vmatprep.subr.mxu0 0.0
    %1006 = vmatpush1.xpose.msra.mxu0 0.0
    %1007 = vmatprep.subr.mxu0 0.0
    %1008 = vmatpush1.xpose.msra.mxu0 0.0
    %1009 = vmatprep.subr.mxu0 0.0
    %1010 = vmatpush1.xpose.msra.mxu0 0.0
    %1011 = vmatprep.subr.mxu0 0.0
    %1012 = vmatpush1.xpose.msra.mxu0 0.0
    %1013 = vmatprep.subr.mxu0 0.0
    %1014 = vmatpush1.xpose.msra.mxu0 0.0
    %1015 = vmatprep.subr.mxu0 0.0
    %1016 = vmatpush1.xpose.msra.mxu0 0.0
    %1017 = vmatprep.subr.mxu0 0.0
    %1018 = vmatpush1.xpose.msra.mxu0 0.0
    %1019 = vmatprep.subr.mxu0 0.0
    %1020 = vmatpush1.xpose.msra.mxu0 0.0
    %1021 = vmatprep.subr.mxu0 0.0
    %1022 = vmatpush1.xpose.msra.mxu0 0.0
    %1023 = vmatprep.subr.mxu0 0.0
    %1024 = vmatpush1.xpose.msra.mxu0 0.0
    %1025 = vmatprep.subr.mxu0 0.0
    %1026 = vmatpush1.xpose.msra.mxu0 0.0
    %1027 = vmatprep.subr.mxu0 0.0
    %1028 = vmatpush1.xpose.msra.mxu0 0.0
    %1029 = vmatprep.subr.mxu0 0.0
    %1030 = vmatpush1.xpose.msra.mxu0 0.0
    %1031 = vmatprep.subr.mxu0 0.0
    %1032 = vmatpush1.xpose.msra.mxu0 0.0
    %1033 = vmatprep.subr.mxu0 0.0
    %1034 = vmatpush1.xpose.msra.mxu0 0.0
    %1035 = vmatprep.mubr.f32.mxu0 0.0
    %1036 = vmatmul.mubr.f32.gmra.mrb[0].mxu0 %v967
    %v1037 = vpop.f32.mrb[0].mxu0
    %v1038 = vadd.f32 0.0, %v1037
    %v1039 = vpop.f32.mrb[0].mxu0
    %1040 = vdwg.mxu0
    %v1041 = vmul.f32 %v506, 0.35355338
    %v1042 = vmul.f32 %v582, 0.35355338
    %v1043 = vmul.f32 %v658, 0.35355338
    %v1044 = vmul.f32 %v734, 0.35355338
    %v1045 = vmul.f32 %v810, 0.35355338
    %v1046 = vmul.f32 %v886, 0.35355338
    %v1047 = vmul.f32 %v962, 0.35355338
    %v1048 = vmul.f32 %v1038, 0.35355338
    %v1051 = vlaneseq
    %v1052 = vshrl.u32 %v1051, 7
    %v1053 = vsub.s32 0, %v1052
    %v1054 = vrot.slane %v306, %v1053
    %v1055 = vlaneseq
    %v1056 = vshrl.u32 %v1055, 7
    %v1057 = vsub.s32 0, %v1056
    %v1058 = vrot.slane %v307, %v1057
    %v1061 = vadd.f32 %v1041, %v1054
    %v1062 = vadd.f32 %v1042, %v1058
    %v1063 = vadd.f32 %v1043, %v1054
    %v1064 = vadd.f32 %v1044, %v1058
    %v1065 = vadd.f32 %v1045, %v1054
    %v1066 = vadd.f32 %v1046, %v1058
    %v1067 = vadd.f32 %v1047, %v1054
    %v1068 = vadd.f32 %v1048, %v1058
    %v1069 = vsel %vm434, %v1061, -inf
    %1070 = vmax.xlane.f32.xlu0 %v1069
    %v1071 = vpop.xlane.xlu0 %1070
    %v1072 = vsel %vm434, %v1062, -inf
    %1073 = vmax.xlane.f32.xlu0 %v1072
    %v1074 = vpop.xlane.xlu0 %1073
    %v1075 = vsel %vm434, %v1063, -inf
    %1076 = vmax.xlane.f32.xlu0 %v1075
    %v1077 = vpop.xlane.xlu0 %1076
    %v1078 = vsel %vm434, %v1064, -inf
    %1079 = vmax.xlane.f32.xlu0 %v1078
    %v1080 = vpop.xlane.xlu0 %1079
    %v1081 = vsel %vm434, %v1065, -inf
    %1082 = vmax.xlane.f32.xlu0 %v1081
    %v1083 = vpop.xlane.xlu0 %1082
    %v1084 = vsel %vm434, %v1066, -inf
    %1085 = vmax.xlane.f32.xlu0 %v1084
    %v1086 = vpop.xlane.xlu0 %1085
    %v1087 = vsel %vm434, %v1067, -inf
    %1088 = vmax.xlane.f32.xlu0 %v1087
    %v1089 = vpop.xlane.xlu0 %1088
    %v1090 = vsel %vm434, %v1068, -inf
    %1091 = vmax.xlane.f32.xlu0 %v1090
    %v1092 = vpop.xlane.xlu0 %1091
    %v1093 = vsub.f32 %v1061, %v1071
    %v1094 = vsub.f32 %v1062, %v1074
    %v1095 = vsub.f32 %v1063, %v1077
    %v1096 = vsub.f32 %v1064, %v1080
    %v1097 = vsub.f32 %v1065, %v1083
    %v1098 = vsub.f32 %v1066, %v1086
    %v1099 = vsub.f32 %v1067, %v1089
    %v1100 = vsub.f32 %v1068, %v1092
    %v1101 = vmul.f32 %v1093, 1.442695
    %v1102 = vpow.pop %v1101
    %v1103 = vmul.f32 %v1094, 1.442695
    %v1104 = vpow.pop %v1103
    %v1105 = vmul.f32 %v1095, 1.442695
    %v1106 = vpow.pop %v1105
    %v1107 = vmul.f32 %v1096, 1.442695
    %v1108 = vpow.pop %v1107
    %v1109 = vmul.f32 %v1097, 1.442695
    %v1110 = vpow.pop %v1109
    %v1111 = vmul.f32 %v1098, 1.442695
    %v1112 = vpow.pop %v1111
    %v1113 = vmul.f32 %v1099, 1.442695
    %v1114 = vpow.pop %v1113
    %v1115 = vmul.f32 %v1100, 1.442695
    %v1116 = vpow.pop %v1115
    %v1117 = vsel %vm434, %v1102, 0.0
    %1118 = vadd.xlane.f32.xlu0 %v1117
    %v1119 = vpop.xlane.xlu0 %1118
    %v1120 = vsel %vm434, %v1104, 0.0
    %1121 = vadd.xlane.f32.xlu0 %v1120
    %v1122 = vpop.xlane.xlu0 %1121
    %v1123 = vsel %vm434, %v1106, 0.0
    %1124 = vadd.xlane.f32.xlu0 %v1123
    %v1125 = vpop.xlane.xlu0 %1124
    %v1126 = vsel %vm434, %v1108, 0.0
    %1127 = vadd.xlane.f32.xlu0 %v1126
    %v1128 = vpop.xlane.xlu0 %1127
    %v1129 = vsel %vm434, %v1110, 0.0
    %1130 = vadd.xlane.f32.xlu0 %v1129
    %v1131 = vpop.xlane.xlu0 %1130
    %v1132 = vsel %vm434, %v1112, 0.0
    %1133 = vadd.xlane.f32.xlu0 %v1132
    %v1134 = vpop.xlane.xlu0 %1133
    %v1135 = vsel %vm434, %v1114, 0.0
    %1136 = vadd.xlane.f32.xlu0 %v1135
    %v1137 = vpop.xlane.xlu0 %1136
    %v1138 = vsel %vm434, %v1116, 0.0
    %1139 = vadd.xlane.f32.xlu0 %v1138
    %v1140 = vpop.xlane.xlu0 %1139
    %v1141 = vrcp.pop %v1119
    %v1142 = vrcp.pop %v1122
    %v1143 = vrcp.pop %v1125
    %v1144 = vrcp.pop %v1128
    %v1145 = vrcp.pop %v1131
    %v1146 = vrcp.pop %v1134
    %v1147 = vrcp.pop %v1137
    %v1148 = vrcp.pop %v1140
    %v1149 = vmul.f32 %v1102, %v1141
    %v1150 = vmul.f32 %v1104, %v1142
    %v1151 = vmul.f32 %v1106, %v1143
    %v1152 = vmul.f32 %v1108, %v1144
    %v1153 = vmul.f32 %v1110, %v1145
    %v1154 = vmul.f32 %v1112, %v1146
    %v1155 = vmul.f32 %v1114, %v1147
    %v1156 = vmul.f32 %v1116, %v1148
    %1157 = vrot.lane.b32.xlu0 %v410, 64
    %v1158 = vpop.permute.xlu0 %1157
    %v1161 = vsel %vm434, %v1149, 0
    %1163 = vmatprep.subr.mxu0 0.0
    %1164 = vmatpush1.msra.mxu0 %v1158
    %1165 = vmatprep.subr.mxu0 0.0
    %1166 = vmatpush1.msra.mxu0 0.0
    %1167 = vmatprep.subr.mxu0 0.0
    %1168 = vmatpush1.msra.mxu0 0.0
    %1169 = vmatprep.subr.mxu0 0.0
    %1170 = vmatpush1.msra.mxu0 0.0
    %1171 = vmatprep.subr.mxu0 0.0
    %1172 = vmatpush1.msra.mxu0 0.0
    %1173 = vmatprep.subr.mxu0 0.0
    %1174 = vmatpush1.msra.mxu0 0.0
    %1175 = vmatprep.subr.mxu0 0.0
    %1176 = vmatpush1.msra.mxu0 0.0
    %1177 = vmatprep.subr.mxu0 0.0
    %1178 = vmatpush1.msra.mxu0 0.0
    %1179 = vmatprep.subr.mxu0 0.0
    %1180 = vmatpush1.msra.mxu0 0.0
    %1181 = vmatprep.subr.mxu0 0.0
    %1182 = vmatpush1.msra.mxu0 0.0
    %1183 = vmatprep.subr.mxu0 0.0
    %1184 = vmatpush1.msra.mxu0 0.0
    %1185 = vmatprep.subr.mxu0 0.0
    %1186 = vmatpush1.msra.mxu0 0.0
    %1187 = vmatprep.subr.mxu0 0.0
    %1188 = vmatpush1.msra.mxu0 0.0
    %1189 = vmatprep.subr.mxu0 0.0
    %1190 = vmatpush1.msra.mxu0 0.0
    %1191 = vmatprep.subr.mxu0 0.0
    %1192 = vmatpush1.msra.mxu0 0.0
    %1193 = vmatprep.subr.mxu0 0.0
    %1194 = vmatpush1.msra.mxu0 0.0
    %1195 = vmatprep.subr.mxu0 0.0
    %1196 = vmatpush1.msra.mxu0 0.0
    %1197 = vmatprep.subr.mxu0 0.0
    %1198 = vmatpush1.msra.mxu0 0.0
    %1199 = vmatprep.subr.mxu0 0.0
    %1200 = vmatpush1.msra.mxu0 0.0
    %1201 = vmatprep.subr.mxu0 0.0
    %1202 = vmatpush1.msra.mxu0 0.0
    %1203 = vmatprep.subr.mxu0 0.0
    %1204 = vmatpush1.msra.mxu0 0.0
    %1205 = vmatprep.subr.mxu0 0.0
    %1206 = vmatpush1.msra.mxu0 0.0
    %1207 = vmatprep.subr.mxu0 0.0
    %1208 = vmatpush1.msra.mxu0 0.0
    %1209 = vmatprep.subr.mxu0 0.0
    %1210 = vmatpush1.msra.mxu0 0.0
    %1211 = vmatprep.subr.mxu0 0.0
    %1212 = vmatpush1.msra.mxu0 0.0
    %1213 = vmatprep.subr.mxu0 0.0
    %1214 = vmatpush1.msra.mxu0 0.0
    %1215 = vmatprep.subr.mxu0 0.0
    %1216 = vmatpush1.msra.mxu0 0.0
    %1217 = vmatprep.subr.mxu0 0.0
    %1218 = vmatpush1.msra.mxu0 0.0
    %1219 = vmatprep.subr.mxu0 0.0
    %1220 = vmatpush1.msra.mxu0 0.0
    %1221 = vmatprep.subr.mxu0 0.0
    %1222 = vmatpush1.msra.mxu0 0.0
    %1223 = vmatprep.subr.mxu0 0.0
    %1224 = vmatpush1.msra.mxu0 0.0
    %1225 = vmatprep.subr.mxu0 0.0
    %1226 = vmatpush1.msra.mxu0 0.0
    %1227 = vmatprep.mubr.f32.mxu0 0.0
    %1228 = vmatmul.mubr.f32.gmra.mrb[0].mxu0 %v1161
    %v1229 = vpop.f32.mrb[0].mxu0
    %v1230 = vadd.f32 0.0, %v1229
    %v1231 = vpop.f32.mrb[0].mxu0
    %1232 = vdwg.mxu0
    %1233 = vrot.lane.b32.xlu0 %v415, 64
    %v1234 = vpop.permute.xlu0 %1233
    %v1237 = vsel %vm434, %v1150, 0
    %1239 = vmatprep.subr.mxu0 0.0
    %1240 = vmatpush1.msra.mxu0 %v1234
    %1241 = vmatprep.subr.mxu0 0.0
    %1242 = vmatpush1.msra.mxu0 0.0
    %1243 = vmatprep.subr.mxu0 0.0
    %1244 = vmatpush1.msra.mxu0 0.0
    %1245 = vmatprep.subr.mxu0 0.0
    %1246 = vmatpush1.msra.mxu0 0.0
    %1247 = vmatprep.subr.mxu0 0.0
    %1248 = vmatpush1.msra.mxu0 0.0
    %1249 = vmatprep.subr.mxu0 0.0
    %1250 = vmatpush1.msra.mxu0 0.0
    %1251 = vmatprep.subr.mxu0 0.0
    %1252 = vmatpush1.msra.mxu0 0.0
    %1253 = vmatprep.subr.mxu0 0.0
    %1254 = vmatpush1.msra.mxu0 0.0
    %1255 = vmatprep.subr.mxu0 0.0
    %1256 = vmatpush1.msra.mxu0 0.0
    %1257 = vmatprep.subr.mxu0 0.0
    %1258 = vmatpush1.msra.mxu0 0.0
    %1259 = vmatprep.subr.mxu0 0.0
    %1260 = vmatpush1.msra.mxu0 0.0
    %1261 = vmatprep.subr.mxu0 0.0
    %1262 = vmatpush1.msra.mxu0 0.0
    %1263 = vmatprep.subr.mxu0 0.0
    %1264 = vmatpush1.msra.mxu0 0.0
    %1265 = vmatprep.subr.mxu0 0.0
    %1266 = vmatpush1.msra.mxu0 0.0
    %1267 = vmatprep.subr.mxu0 0.0
    %1268 = vmatpush1.msra.mxu0 0.0
    %1269 = vmatprep.subr.mxu0 0.0
    %1270 = vmatpush1.msra.mxu0 0.0
    %1271 = vmatprep.subr.mxu0 0.0
    %1272 = vmatpush1.msra.mxu0 0.0
    %1273 = vmatprep.subr.mxu0 0.0
    %1274 = vmatpush1.msra.mxu0 0.0
    %1275 = vmatprep.subr.mxu0 0.0
    %1276 = vmatpush1.msra.mxu0 0.0
    %1277 = vmatprep.subr.mxu0 0.0
    %1278 = vmatpush1.msra.mxu0 0.0
    %1279 = vmatprep.subr.mxu0 0.0
    %1280 = vmatpush1.msra.mxu0 0.0
    %1281 = vmatprep.subr.mxu0 0.0
    %1282 = vmatpush1.msra.mxu0 0.0
    %1283 = vmatprep.subr.mxu0 0.0
    %1284 = vmatpush1.msra.mxu0 0.0
    %1285 = vmatprep.subr.mxu0 0.0
    %1286 = vmatpush1.msra.mxu0 0.0
    %1287 = vmatprep.subr.mxu0 0.0
    %1288 = vmatpush1.msra.mxu0 0.0
    %1289 = vmatprep.subr.mxu0 0.0
    %1290 = vmatpush1.msra.mxu0 0.0
    %1291 = vmatprep.subr.mxu0 0.0
    %1292 = vmatpush1.msra.mxu0 0.0
    %1293 = vmatprep.subr.mxu0 0.0
    %1294 = vmatpush1.msra.mxu0 0.0
    %1295 = vmatprep.subr.mxu0 0.0
    %1296 = vmatpush1.msra.mxu0 0.0
    %1297 = vmatprep.subr.mxu0 0.0
    %1298 = vmatpush1.msra.mxu0 0.0
    %1299 = vmatprep.subr.mxu0 0.0
    %1300 = vmatpush1.msra.mxu0 0.0
    %1301 = vmatprep.subr.mxu0 0.0
    %1302 = vmatpush1.msra.mxu0 0.0
    %1303 = vmatprep.mubr.f32.mxu0 0.0
    %1304 = vmatmul.mubr.f32.gmra.mrb[0].mxu0 %v1237
    %v1305 = vpop.f32.mrb[0].mxu0
    %v1306 = vadd.f32 0.0, %v1305
    %v1307 = vpop.f32.mrb[0].mxu0
    %1308 = vdwg.mxu0
    %1309 = vrot.lane.b32.xlu0 %v421, 64
    %v1310 = vpop.permute.xlu0 %1309
    %v1313 = vsel %vm434, %v1151, 0
    %1315 = vmatprep.subr.mxu0 0.0
    %1316 = vmatpush1.msra.mxu0 %v1310
    %1317 = vmatprep.subr.mxu0 0.0
    %1318 = vmatpush1.msra.mxu0 0.0
    %1319 = vmatprep.subr.mxu0 0.0
    %1320 = vmatpush1.msra.mxu0 0.0
    %1321 = vmatprep.subr.mxu0 0.0
    %1322 = vmatpush1.msra.mxu0 0.0
    %1323 = vmatprep.subr.mxu0 0.0
    %1324 = vmatpush1.msra.mxu0 0.0
    %1325 = vmatprep.subr.mxu0 0.0
    %1326 = vmatpush1.msra.mxu0 0.0
    %1327 = vmatprep.subr.mxu0 0.0
    %1328 = vmatpush1.msra.mxu0 0.0
    %1329 = vmatprep.subr.mxu0 0.0
    %1330 = vmatpush1.msra.mxu0 0.0
    %1331 = vmatprep.subr.mxu0 0.0
    %1332 = vmatpush1.msra.mxu0 0.0
    %1333 = vmatprep.subr.mxu0 0.0
    %1334 = vmatpush1.msra.mxu0 0.0
    %1335 = vmatprep.subr.mxu0 0.0
    %1336 = vmatpush1.msra.mxu0 0.0
    %1337 = vmatprep.subr.mxu0 0.0
    %1338 = vmatpush1.msra.mxu0 0.0
    %1339 = vmatprep.subr.mxu0 0.0
    %1340 = vmatpush1.msra.mxu0 0.0
    %1341 = vmatprep.subr.mxu0 0.0
    %1342 = vmatpush1.msra.mxu0 0.0
    %1343 = vmatprep.subr.mxu0 0.0
    %1344 = vmatpush1.msra.mxu0 0.0
    %1345 = vmatprep.subr.mxu0 0.0
    %1346 = vmatpush1.msra.mxu0 0.0
    %1347 = vmatprep.subr.mxu0 0.0
    %1348 = vmatpush1.msra.mxu0 0.0
    %1349 = vmatprep.subr.mxu0 0.0
    %1350 = vmatpush1.msra.mxu0 0.0
    %1351 = vmatprep.subr.mxu0 0.0
    %1352 = vmatpush1.msra.mxu0 0.0
    %1353 = vmatprep.subr.mxu0 0.0
    %1354 = vmatpush1.msra.mxu0 0.0
    %1355 = vmatprep.subr.mxu0 0.0
    %1356 = vmatpush1.msra.mxu0 0.0
    %1357 = vmatprep.subr.mxu0 0.0
    %1358 = vmatpush1.msra.mxu0 0.0
    %1359 = vmatprep.subr.mxu0 0.0
    %1360 = vmatpush1.msra.mxu0 0.0
    %1361 = vmatprep.subr.mxu0 0.0
    %1362 = vmatpush1.msra.mxu0 0.0
    %1363 = vmatprep.subr.mxu0 0.0
    %1364 = vmatpush1.msra.mxu0 0.0
    %1365 = vmatprep.subr.mxu0 0.0
    %1366 = vmatpush1.msra.mxu0 0.0
    %1367 = vmatprep.subr.mxu0 0.0
    %1368 = vmatpush1.msra.mxu0 0.0
    %1369 = vmatprep.subr.mxu0 0.0
    %1370 = vmatpush1.msra.mxu0 0.0
    %1371 = vmatprep.subr.mxu0 0.0
    %1372 = vmatpush1.msra.mxu0 0.0
    %1373 = vmatprep.subr.mxu0 0.0
    %1374 = vmatpush1.msra.mxu0 0.0
    %1375 = vmatprep.subr.mxu0 0.0
    %1376 = vmatpush1.msra.mxu0 0.0
    %1377 = vmatprep.subr.mxu0 0.0
    %1378 = vmatpush1.msra.mxu0 0.0
    %1379 = vmatprep.mubr.f32.mxu0 0.0
    %1380 = vmatmul.mubr.f32.gmra.mrb[0].mxu0 %v1313
    %v1381 = vpop.f32.mrb[0].mxu0
    %v1382 = vadd.f32 0.0, %v1381
    %v1383 = vpop.f32.mrb[0].mxu0
    %1384 = vdwg.mxu0
    %1385 = vrot.lane.b32.xlu0 %v423, 64
    %v1386 = vpop.permute.xlu0 %1385
    %v1389 = vsel %vm434, %v1152, 0
    %1391 = vmatprep.subr.mxu0 0.0
    %1392 = vmatpush1.msra.mxu0 %v1386
    %1393 = vmatprep.subr.mxu0 0.0
    %1394 = vmatpush1.msra.mxu0 0.0
    %1395 = vmatprep.subr.mxu0 0.0
    %1396 = vmatpush1.msra.mxu0 0.0
    %1397 = vmatprep.subr.mxu0 0.0
    %1398 = vmatpush1.msra.mxu0 0.0
    %1399 = vmatprep.subr.mxu0 0.0
    %1400 = vmatpush1.msra.mxu0 0.0
    %1401 = vmatprep.subr.mxu0 0.0
    %1402 = vmatpush1.msra.mxu0 0.0
    %1403 = vmatprep.subr.mxu0 0.0
    %1404 = vmatpush1.msra.mxu0 0.0
    %1405 = vmatprep.subr.mxu0 0.0
    %1406 = vmatpush1.msra.mxu0 0.0
    %1407 = vmatprep.subr.mxu0 0.0
    %1408 = vmatpush1.msra.mxu0 0.0
    %1409 = vmatprep.subr.mxu0 0.0
    %1410 = vmatpush1.msra.mxu0 0.0
    %1411 = vmatprep.subr.mxu0 0.0
    %1412 = vmatpush1.msra.mxu0 0.0
    %1413 = vmatprep.subr.mxu0 0.0
    %1414 = vmatpush1.msra.mxu0 0.0
    %1415 = vmatprep.subr.mxu0 0.0
    %1416 = vmatpush1.msra.mxu0 0.0
    %1417 = vmatprep.subr.mxu0 0.0
    %1418 = vmatpush1.msra.mxu0 0.0
    %1419 = vmatprep.subr.mxu0 0.0
    %1420 = vmatpush1.msra.mxu0 0.0
    %1421 = vmatprep.subr.mxu0 0.0
    %1422 = vmatpush1.msra.mxu0 0.0
    %1423 = vmatprep.subr.mxu0 0.0
    %1424 = vmatpush1.msra.mxu0 0.0
    %1425 = vmatprep.subr.mxu0 0.0
    %1426 = vmatpush1.msra.mxu0 0.0
    %1427 = vmatprep.subr.mxu0 0.0
    %1428 = vmatpush1.msra.mxu0 0.0
    %1429 = vmatprep.subr.mxu0 0.0
    %1430 = vmatpush1.msra.mxu0 0.0
    %1431 = vmatprep.subr.mxu0 0.0
    %1432 = vmatpush1.msra.mxu0 0.0
    %1433 = vmatprep.subr.mxu0 0.0
    %1434 = vmatpush1.msra.mxu0 0.0
    %1435 = vmatprep.subr.mxu0 0.0
    %1436 = vmatpush1.msra.mxu0 0.0
    %1437 = vmatprep.subr.mxu0 0.0
    %1438 = vmatpush1.msra.mxu0 0.0
    %1439 = vmatprep.subr.mxu0 0.0
    %1440 = vmatpush1.msra.mxu0 0.0
    %1441 = vmatprep.subr.mxu0 0.0
    %1442 = vmatpush1.msra.mxu0 0.0
    %1443 = vmatprep.subr.mxu0 0.0
    %1444 = vmatpush1.msra.mxu0 0.0
    %1445 = vmatprep.subr.mxu0 0.0
    %1446 = vmatpush1.msra.mxu0 0.0
    %1447 = vmatprep.subr.mxu0 0.0
    %1448 = vmatpush1.msra.mxu0 0.0
    %1449 = vmatprep.subr.mxu0 0.0
    %1450 = vmatpush1.msra.mxu0 0.0
    %1451 = vmatprep.subr.mxu0 0.0
    %1452 = vmatpush1.msra.mxu0 0.0
    %1453 = vmatprep.subr.mxu0 0.0
    %1454 = vmatpush1.msra.mxu0 0.0
    %1455 = vmatprep.mubr.f32.mxu0 0.0
    %1456 = vmatmul.mubr.f32.gmra.mrb[0].mxu0 %v1389
    %v1457 = vpop.f32.mrb[0].mxu0
    %v1458 = vadd.f32 0.0, %v1457
    %v1459 = vpop.f32.mrb[0].mxu0
    %1460 = vdwg.mxu0
    %1461 = vrot.lane.b32.xlu0 %v425, 64
    %v1462 = vpop.permute.xlu0 %1461
    %v1465 = vsel %vm434, %v1153, 0
    %1467 = vmatprep.subr.mxu0 0.0
    %1468 = vmatpush1.msra.mxu0 %v1462
    %1469 = vmatprep.subr.mxu0 0.0
    %1470 = vmatpush1.msra.mxu0 0.0
    %1471 = vmatprep.subr.mxu0 0.0
    %1472 = vmatpush1.msra.mxu0 0.0
    %1473 = vmatprep.subr.mxu0 0.0
    %1474 = vmatpush1.msra.mxu0 0.0
    %1475 = vmatprep.subr.mxu0 0.0
    %1476 = vmatpush1.msra.mxu0 0.0
    %1477 = vmatprep.subr.mxu0 0.0
    %1478 = vmatpush1.msra.mxu0 0.0
    %1479 = vmatprep.subr.mxu0 0.0
    %1480 = vmatpush1.msra.mxu0 0.0
    %1481 = vmatprep.subr.mxu0 0.0
    %1482 = vmatpush1.msra.mxu0 0.0
    %1483 = vmatprep.subr.mxu0 0.0
    %1484 = vmatpush1.msra.mxu0 0.0
    %1485 = vmatprep.subr.mxu0 0.0
    %1486 = vmatpush1.msra.mxu0 0.0
    %1487 = vmatprep.subr.mxu0 0.0
    %1488 = vmatpush1.msra.mxu0 0.0
    %1489 = vmatprep.subr.mxu0 0.0
    %1490 = vmatpush1.msra.mxu0 0.0
    %1491 = vmatprep.subr.mxu0 0.0
    %1492 = vmatpush1.msra.mxu0 0.0
    %1493 = vmatprep.subr.mxu0 0.0
    %1494 = vmatpush1.msra.mxu0 0.0
    %1495 = vmatprep.subr.mxu0 0.0
    %1496 = vmatpush1.msra.mxu0 0.0
    %1497 = vmatprep.subr.mxu0 0.0
    %1498 = vmatpush1.msra.mxu0 0.0
    %1499 = vmatprep.subr.mxu0 0.0
    %1500 = vmatpush1.msra.mxu0 0.0
    %1501 = vmatprep.subr.mxu0 0.0
    %1502 = vmatpush1.msra.mxu0 0.0
    %1503 = vmatprep.subr.mxu0 0.0
    %1504 = vmatpush1.msra.mxu0 0.0
    %1505 = vmatprep.subr.mxu0 0.0
    %1506 = vmatpush1.msra.mxu0 0.0
    %1507 = vmatprep.subr.mxu0 0.0
    %1508 = vmatpush1.msra.mxu0 0.0
    %1509 = vmatprep.subr.mxu0 0.0
    %1510 = vmatpush1.msra.mxu0 0.0
    %1511 = vmatprep.subr.mxu0 0.0
    %1512 = vmatpush1.msra.mxu0 0.0
    %1513 = vmatprep.subr.mxu0 0.0
    %1514 = vmatpush1.msra.mxu0 0.0
    %1515 = vmatprep.subr.mxu0 0.0
    %1516 = vmatpush1.msra.mxu0 0.0
    %1517 = vmatprep.subr.mxu0 0.0
    %1518 = vmatpush1.msra.mxu0 0.0
    %1519 = vmatprep.subr.mxu0 0.0
    %1520 = vmatpush1.msra.mxu0 0.0
    %1521 = vmatprep.subr.mxu0 0.0
    %1522 = vmatpush1.msra.mxu0 0.0
    %1523 = vmatprep.subr.mxu0 0.0
    %1524 = vmatpush1.msra.mxu0 0.0
    %1525 = vmatprep.subr.mxu0 0.0
    %1526 = vmatpush1.msra.mxu0 0.0
    %1527 = vmatprep.subr.mxu0 0.0
    %1528 = vmatpush1.msra.mxu0 0.0
    %1529 = vmatprep.subr.mxu0 0.0
    %1530 = vmatpush1.msra.mxu0 0.0
    %1531 = vmatprep.mubr.f32.mxu0 0.0
    %1532 = vmatmul.mubr.f32.gmra.mrb[0].mxu0 %v1465
    %v1533 = vpop.f32.mrb[0].mxu0
    %v1534 = vadd.f32 0.0, %v1533
    %v1535 = vpop.f32.mrb[0].mxu0
    %1536 = vdwg.mxu0
    %1537 = vrot.lane.b32.xlu0 %v427, 64
    %v1538 = vpop.permute.xlu0 %1537
    %v1541 = vsel %vm434, %v1154, 0
    %1543 = vmatprep.subr.mxu0 0.0
    %1544 = vmatpush1.msra.mxu0 %v1538
    %1545 = vmatprep.subr.mxu0 0.0
    %1546 = vmatpush1.msra.mxu0 0.0
    %1547 = vmatprep.subr.mxu0 0.0
    %1548 = vmatpush1.msra.mxu0 0.0
    %1549 = vmatprep.subr.mxu0 0.0
    %1550 = vmatpush1.msra.mxu0 0.0
    %1551 = vmatprep.subr.mxu0 0.0
    %1552 = vmatpush1.msra.mxu0 0.0
    %1553 = vmatprep.subr.mxu0 0.0
    %1554 = vmatpush1.msra.mxu0 0.0
    %1555 = vmatprep.subr.mxu0 0.0
    %1556 = vmatpush1.msra.mxu0 0.0
    %1557 = vmatprep.subr.mxu0 0.0
    %1558 = vmatpush1.msra.mxu0 0.0
    %1559 = vmatprep.subr.mxu0 0.0
    %1560 = vmatpush1.msra.mxu0 0.0
    %1561 = vmatprep.subr.mxu0 0.0
    %1562 = vmatpush1.msra.mxu0 0.0
    %1563 = vmatprep.subr.mxu0 0.0
    %1564 = vmatpush1.msra.mxu0 0.0
    %1565 = vmatprep.subr.mxu0 0.0
    %1566 = vmatpush1.msra.mxu0 0.0
    %1567 = vmatprep.subr.mxu0 0.0
    %1568 = vmatpush1.msra.mxu0 0.0
    %1569 = vmatprep.subr.mxu0 0.0
    %1570 = vmatpush1.msra.mxu0 0.0
    %1571 = vmatprep.subr.mxu0 0.0
    %1572 = vmatpush1.msra.mxu0 0.0
    %1573 = vmatprep.subr.mxu0 0.0
    %1574 = vmatpush1.msra.mxu0 0.0
    %1575 = vmatprep.subr.mxu0 0.0
    %1576 = vmatpush1.msra.mxu0 0.0
    %1577 = vmatprep.subr.mxu0 0.0
    %1578 = vmatpush1.msra.mxu0 0.0
    %1579 = vmatprep.subr.mxu0 0.0
    %1580 = vmatpush1.msra.mxu0 0.0
    %1581 = vmatprep.subr.mxu0 0.0
    %1582 = vmatpush1.msra.mxu0 0.0
    %1583 = vmatprep.subr.mxu0 0.0
    %1584 = vmatpush1.msra.mxu0 0.0
    %1585 = vmatprep.subr.mxu0 0.0
    %1586 = vmatpush1.msra.mxu0 0.0
    %1587 = vmatprep.subr.mxu0 0.0
    %1588 = vmatpush1.msra.mxu0 0.0
    %1589 = vmatprep.subr.mxu0 0.0
    %1590 = vmatpush1.msra.mxu0 0.0
    %1591 = vmatprep.subr.mxu0 0.0
    %1592 = vmatpush1.msra.mxu0 0.0
    %1593 = vmatprep.subr.mxu0 0.0
    %1594 = vmatpush1.msra.mxu0 0.0
    %1595 = vmatprep.subr.mxu0 0.0
    %1596 = vmatpush1.msra.mxu0 0.0
    %1597 = vmatprep.subr.mxu0 0.0
    %1598 = vmatpush1.msra.mxu0 0.0
    %1599 = vmatprep.subr.mxu0 0.0
    %1600 = vmatpush1.msra.mxu0 0.0
    %1601 = vmatprep.subr.mxu0 0.0
    %1602 = vmatpush1.msra.mxu0 0.0
    %1603 = vmatprep.subr.mxu0 0.0
    %1604 = vmatpush1.msra.mxu0 0.0
    %1605 = vmatprep.subr.mxu0 0.0
    %1606 = vmatpush1.msra.mxu0 0.0
    %1607 = vmatprep.mubr.f32.mxu0 0.0
    %1608 = vmatmul.mubr.f32.gmra.mrb[0].mxu0 %v1541
    %v1609 = vpop.f32.mrb[0].mxu0
    %v1610 = vadd.f32 0.0, %v1609
    %v1611 = vpop.f32.mrb[0].mxu0
    %1612 = vdwg.mxu0
    %1613 = vrot.lane.b32.xlu0 %v429, 64
    %v1614 = vpop.permute.xlu0 %1613
    %v1617 = vsel %vm434, %v1155, 0
    %1619 = vmatprep.subr.mxu0 0.0
    %1620 = vmatpush1.msra.mxu0 %v1614
    %1621 = vmatprep.subr.mxu0 0.0
    %1622 = vmatpush1.msra.mxu0 0.0
    %1623 = vmatprep.subr.mxu0 0.0
    %1624 = vmatpush1.msra.mxu0 0.0
    %1625 = vmatprep.subr.mxu0 0.0
    %1626 = vmatpush1.msra.mxu0 0.0
    %1627 = vmatprep.subr.mxu0 0.0
    %1628 = vmatpush1.msra.mxu0 0.0
    %1629 = vmatprep.subr.mxu0 0.0
    %1630 = vmatpush1.msra.mxu0 0.0
    %1631 = vmatprep.subr.mxu0 0.0
    %1632 = vmatpush1.msra.mxu0 0.0
    %1633 = vmatprep.subr.mxu0 0.0
    %1634 = vmatpush1.msra.mxu0 0.0
    %1635 = vmatprep.subr.mxu0 0.0
    %1636 = vmatpush1.msra.mxu0 0.0
    %1637 = vmatprep.subr.mxu0 0.0
    %1638 = vmatpush1.msra.mxu0 0.0
    %1639 = vmatprep.subr.mxu0 0.0
    %1640 = vmatpush1.msra.mxu0 0.0
    %1641 = vmatprep.subr.mxu0 0.0
    %1642 = vmatpush1.msra.mxu0 0.0
    %1643 = vmatprep.subr.mxu0 0.0
    %1644 = vmatpush1.msra.mxu0 0.0
    %1645 = vmatprep.subr.mxu0 0.0
    %1646 = vmatpush1.msra.mxu0 0.0
    %1647 = vmatprep.subr.mxu0 0.0
    %1648 = vmatpush1.msra.mxu0 0.0
    %1649 = vmatprep.subr.mxu0 0.0
    %1650 = vmatpush1.msra.mxu0 0.0
    %1651 = vmatprep.subr.mxu0 0.0
    %1652 = vmatpush1.msra.mxu0 0.0
    %1653 = vmatprep.subr.mxu0 0.0
    %1654 = vmatpush1.msra.mxu0 0.0
    %1655 = vmatprep.subr.mxu0 0.0
    %1656 = vmatpush1.msra.mxu0 0.0
    %1657 = vmatprep.subr.mxu0 0.0
    %1658 = vmatpush1.msra.mxu0 0.0
    %1659 = vmatprep.subr.mxu0 0.0
    %1660 = vmatpush1.msra.mxu0 0.0
    %1661 = vmatprep.subr.mxu0 0.0
    %1662 = vmatpush1.msra.mxu0 0.0
    %1663 = vmatprep.subr.mxu0 0.0
    %1664 = vmatpush1.msra.mxu0 0.0
    %1665 = vmatprep.subr.mxu0 0.0
    %1666 = vmatpush1.msra.mxu0 0.0
    %1667 = vmatprep.subr.mxu0 0.0
    %1668 = vmatpush1.msra.mxu0 0.0
    %1669 = vmatprep.subr.mxu0 0.0
    %1670 = vmatpush1.msra.mxu0 0.0
    %1671 = vmatprep.subr.mxu0 0.0
    %1672 = vmatpush1.msra.mxu0 0.0
    %1673 = vmatprep.subr.mxu0 0.0
    %1674 = vmatpush1.msra.mxu0 0.0
    %1675 = vmatprep.subr.mxu0 0.0
    %1676 = vmatpush1.msra.mxu0 0.0
    %1677 = vmatprep.subr.mxu0 0.0
    %1678 = vmatpush1.msra.mxu0 0.0
    %1679 = vmatprep.subr.mxu0 0.0
    %1680 = vmatpush1.msra.mxu0 0.0
    %1681 = vmatprep.subr.mxu0 0.0
    %1682 = vmatpush1.msra.mxu0 0.0
    %1683 = vmatprep.mubr.f32.mxu0 0.0
    %1684 = vmatmul.mubr.f32.gmra.mrb[0].mxu0 %v1617
    %v1685 = vpop.f32.mrb[0].mxu0
    %v1686 = vadd.f32 0.0, %v1685
    %v1687 = vpop.f32.mrb[0].mxu0
    %1688 = vdwg.mxu0
    %1689 = vrot.lane.b32.xlu0 %v431, 64
    %v1690 = vpop.permute.xlu0 %1689
    %v1693 = vsel %vm434, %v1156, 0
    %1695 = vmatprep.subr.mxu0 0.0
    %1696 = vmatpush1.msra.mxu0 %v1690
    %1697 = vmatprep.subr.mxu0 0.0
    %1698 = vmatpush1.msra.mxu0 0.0
    %1699 = vmatprep.subr.mxu0 0.0
    %1700 = vmatpush1.msra.mxu0 0.0
    %1701 = vmatprep.subr.mxu0 0.0
    %1702 = vmatpush1.msra.mxu0 0.0
    %1703 = vmatprep.subr.mxu0 0.0
    %1704 = vmatpush1.msra.mxu0 0.0
    %1705 = vmatprep.subr.mxu0 0.0
    %1706 = vmatpush1.msra.mxu0 0.0
    %1707 = vmatprep.subr.mxu0 0.0
    %1708 = vmatpush1.msra.mxu0 0.0
    %1709 = vmatprep.subr.mxu0 0.0
    %1710 = vmatpush1.msra.mxu0 0.0
    %1711 = vmatprep.subr.mxu0 0.0
    %1712 = vmatpush1.msra.mxu0 0.0
    %1713 = vmatprep.subr.mxu0 0.0
    %1714 = vmatpush1.msra.mxu0 0.0
    %1715 = vmatprep.subr.mxu0 0.0
    %1716 = vmatpush1.msra.mxu0 0.0
    %1717 = vmatprep.subr.mxu0 0.0
    %1718 = vmatpush1.msra.mxu0 0.0
    %1719 = vmatprep.subr.mxu0 0.0
    %1720 = vmatpush1.msra.mxu0 0.0
    %1721 = vmatprep.subr.mxu0 0.0
    %1722 = vmatpush1.msra.mxu0 0.0
    %1723 = vmatprep.subr.mxu0 0.0
    %1724 = vmatpush1.msra.mxu0 0.0
    %1725 = vmatprep.subr.mxu0 0.0
    %1726 = vmatpush1.msra.mxu0 0.0
    %1727 = vmatprep.subr.mxu0 0.0
    %1728 = vmatpush1.msra.mxu0 0.0
    %1729 = vmatprep.subr.mxu0 0.0
    %1730 = vmatpush1.msra.mxu0 0.0
    %1731 = vmatprep.subr.mxu0 0.0
    %1732 = vmatpush1.msra.mxu0 0.0
    %1733 = vmatprep.subr.mxu0 0.0
    %1734 = vmatpush1.msra.mxu0 0.0
    %1735 = vmatprep.subr.mxu0 0.0
    %1736 = vmatpush1.msra.mxu0 0.0
    %1737 = vmatprep.subr.mxu0 0.0
    %1738 = vmatpush1.msra.mxu0 0.0
    %1739 = vmatprep.subr.mxu0 0.0
    %1740 = vmatpush1.msra.mxu0 0.0
    %1741 = vmatprep.subr.mxu0 0.0
    %1742 = vmatpush1.msra.mxu0 0.0
    %1743 = vmatprep.subr.mxu0 0.0
    %1744 = vmatpush1.msra.mxu0 0.0
    %1745 = vmatprep.subr.mxu0 0.0
    %1746 = vmatpush1.msra.mxu0 0.0
    %1747 = vmatprep.subr.mxu0 0.0
    %1748 = vmatpush1.msra.mxu0 0.0
    %1749 = vmatprep.subr.mxu0 0.0
    %1750 = vmatpush1.msra.mxu0 0.0
    %1751 = vmatprep.subr.mxu0 0.0
    %1752 = vmatpush1.msra.mxu0 0.0
    %1753 = vmatprep.subr.mxu0 0.0
    %1754 = vmatpush1.msra.mxu0 0.0
    %1755 = vmatprep.subr.mxu0 0.0
    %1756 = vmatpush1.msra.mxu0 0.0
    %1757 = vmatprep.subr.mxu0 0.0
    %1758 = vmatpush1.msra.mxu0 0.0
    %1759 = vmatprep.mubr.f32.mxu0 0.0
    %1760 = vmatmul.mubr.f32.gmra.mrb[0].mxu0 %v1693
    %v1761 = vpop.f32.mrb[0].mxu0
    %v1762 = vadd.f32 0.0, %v1761
    %v1763 = vpop.f32.mrb[0].mxu0
    %1764 = vdwg.mxu0
    %1767 = vrot.lane.b32.xlu0 %v1382, 8
    %v1768 = vpop.permute.xlu0 %1767
    %1769 = vrot.lane.b32.xlu0 %v1458, 8
    %v1770 = vpop.permute.xlu0 %1769
    %1775 = vrot.lane.b32.xlu0 %v1534, 16
    %v1776 = vpop.permute.xlu0 %1775
    %1777 = vrot.lane.b32.xlu0 %v1610, 16
    %v1778 = vpop.permute.xlu0 %1777
    %1783 = vrot.lane.b32.xlu0 %v1686, 24
    %v1784 = vpop.permute.xlu0 %1783
    %1785 = vrot.lane.b32.xlu0 %v1762, 24
    %v1786 = vpop.permute.xlu0 %1785
    %v1789 = vsel %vm434, %v1230, %v1768
    %v1790 = vsel %vm434, %v1306, %v1770
    %vm1791 = vcmask 130048
    %v1792 = vsel %vm1791, %v1789, %v1776
    %v1793 = vsel %vm1791, %v1790, %v1778
    %vm1794 = vcmask 195584
    %v1795 = vsel %vm1794, %v1792, %v1784
    %v1796 = vsel %vm1794, %v1793, %v1786
    %v1797 = vlaneseq
    %v1798 = vshrl.u32 %v1797, 7
    %v1799 = vsub.s32 0, %v1798
    %v1800 = vrot.slane %v317, %v1799
    %v1802 = vsel %vm171, %v1795, 0
    %v1805 = vsel %vm171, %v1796, 0
    %1807 = vmatprep.subr.mxu0 0.0
    %1808 = vmatpush1.msra.mxu0 %v313
    %1809 = vmatprep.subr.mxu0 0.0
    %1810 = vmatpush1.msra.mxu0 %v314
    %1811 = vmatprep.subr.mxu0 0.0
    %1812 = vmatpush1.msra.mxu0 %v315
    %1813 = vmatprep.subr.mxu0 0.0
    %1814 = vmatpush1.msra.mxu0 %v316
    %1815 = vmatprep.subr.mxu0 0.0
    %1816 = vmatpush1.msra.mxu0 0.0
    %1817 = vmatprep.subr.mxu0 0.0
    %1818 = vmatpush1.msra.mxu0 0.0
    %1819 = vmatprep.subr.mxu0 0.0
    %1820 = vmatpush1.msra.mxu0 0.0
    %1821 = vmatprep.subr.mxu0 0.0
    %1822 = vmatpush1.msra.mxu0 0.0
    %1823 = vmatprep.subr.mxu0 0.0
    %1824 = vmatpush1.msra.mxu0 0.0
    %1825 = vmatprep.subr.mxu0 0.0
    %1826 = vmatpush1.msra.mxu0 0.0
    %1827 = vmatprep.subr.mxu0 0.0
    %1828 = vmatpush1.msra.mxu0 0.0
    %1829 = vmatprep.subr.mxu0 0.0
    %1830 = vmatpush1.msra.mxu0 0.0
    %1831 = vmatprep.subr.mxu0 0.0
    %1832 = vmatpush1.msra.mxu0 0.0
    %1833 = vmatprep.subr.mxu0 0.0
    %1834 = vmatpush1.msra.mxu0 0.0
    %1835 = vmatprep.subr.mxu0 0.0
    %1836 = vmatpush1.msra.mxu0 0.0
    %1837 = vmatprep.subr.mxu0 0.0
    %1838 = vmatpush1.msra.mxu0 0.0
    %1839 = vmatprep.subr.mxu0 0.0
    %1840 = vmatpush1.msra.mxu0 0.0
    %1841 = vmatprep.subr.mxu0 0.0
    %1842 = vmatpush1.msra.mxu0 0.0
    %1843 = vmatprep.subr.mxu0 0.0
    %1844 = vmatpush1.msra.mxu0 0.0
    %1845 = vmatprep.subr.mxu0 0.0
    %1846 = vmatpush1.msra.mxu0 0.0
    %1847 = vmatprep.subr.mxu0 0.0
    %1848 = vmatpush1.msra.mxu0 0.0
    %1849 = vmatprep.subr.mxu0 0.0
    %1850 = vmatpush1.msra.mxu0 0.0
    %1851 = vmatprep.subr.mxu0 0.0
    %1852 = vmatpush1.msra.mxu0 0.0
    %1853 = vmatprep.subr.mxu0 0.0
    %1854 = vmatpush1.msra.mxu0 0.0
    %1855 = vmatprep.subr.mxu0 0.0
    %1856 = vmatpush1.msra.mxu0 0.0
    %1857 = vmatprep.subr.mxu0 0.0
    %1858 = vmatpush1.msra.mxu0 0.0
    %1859 = vmatprep.subr.mxu0 0.0
    %1860 = vmatpush1.msra.mxu0 0.0
    %1861 = vmatprep.subr.mxu0 0.0
    %1862 = vmatpush1.msra.mxu0 0.0
    %1863 = vmatprep.subr.mxu0 0.0
    %1864 = vmatpush1.msra.mxu0 0.0
    %1865 = vmatprep.subr.mxu0 0.0
    %1866 = vmatpush1.msra.mxu0 0.0
    %1867 = vmatprep.subr.mxu0 0.0
    %1868 = vmatpush1.msra.mxu0 0.0
    %1869 = vmatprep.subr.mxu0 0.0
    %1870 = vmatpush1.msra.mxu0 0.0
    %1871 = vmatprep.mubr.f32.mxu0 0.0
    %1872 = vmatmul.mubr.f32.gmra.mrb[0].mxu0 %v1802
    %v1873 = vpop.f32.mrb[0].mxu0
    %v1874 = vadd.f32 %v1800, %v1873
    %v1875 = vpop.f32.mrb[0].mxu0
    %1876 = vmatprep.mubr.f32.mxu0 0.0
    %1877 = vmatmul.mubr.f32.gmra.mrb[0].mxu0 %v1805
    %v1878 = vpop.f32.mrb[0].mxu0
    %v1879 = vadd.f32 %v1800, %v1878
    %v1880 = vpop.f32.mrb[0].mxu0
    %1881 = vdwg.mxu0
    %v1882 = vadd.f32 %v294, %v1874
    %v1883 = vadd.f32 %v295, %v1879
    %v1884 = vsel %vm171, %v1882, 0.0
    %1885 = vadd.xlane.f32.xlu0 %v1884
    %v1886 = vpop.xlane.xlu0 %1885
    %v1887 = vsel %vm171, %v1883, 0.0
    %1888 = vadd.xlane.f32.xlu0 %v1887
    %v1889 = vpop.xlane.xlu0 %1888
    %v1890 = vmul.f32 %v1886, %v263
    %v1891 = vmul.f32 %v1889, %v263
    %v1892 = vsub.f32 %v1882, %v1890
    %v1893 = vsub.f32 %v1883, %v1891
    %v1894 = vmul.f32 %v1892, %v1892
    %v1895 = vmul.f32 %v1893, %v1893
    %v1896 = vsel %vm171, %v1894, 0.0
    %1897 = vadd.xlane.f32.xlu0 %v1896
    %v1898 = vpop.xlane.xlu0 %1897
    %v1899 = vsel %vm171, %v1895, 0.0
    %1900 = vadd.xlane.f32.xlu0 %v1899
    %v1901 = vpop.xlane.xlu0 %1900
    %v1902 = vmul.f32 %v1898, %v263
    %v1903 = vmul.f32 %v1901, %v263
    %v1904 = vadd.f32 %v1902, 1e-12
    %v1905 = vadd.f32 %v1903, 1e-12
    %v1906 = vrsqrt.pop %v1904
    %v1907 = vrsqrt.pop %v1905
    %v1908 = vmul.f32 %v1892, %v1906
    %v1909 = vmul.f32 %v1893, %v1907
    %v1910 = vlaneseq
    %v1911 = vshrl.u32 %v1910, 7
    %v1912 = vsub.s32 1, %v1911
    %v1913 = vrot.slane %v317, %v1912
    %v1914 = vmul.f32 %v1908, %v1913
    %v1915 = vmul.f32 %v1909, %v1913
    %v1916 = vlaneseq
    %v1917 = vshrl.u32 %v1916, 7
    %v1918 = vsub.s32 2, %v1917
    %v1919 = vrot.slane %v317, %v1918
    %v1920 = vadd.f32 %v1914, %v1919
    %v1921 = vadd.f32 %v1915, %v1919
    %v1923 = vlaneseq
    %v1924 = vshrl.u32 %v1923, 7
    %v1925 = vsub.s32 0, %v1924
    %v1926 = vrot.slane %v322, %v1925
    %v1929 = vsel %vm171, %v1920, 0
    %v1932 = vsel %vm171, %v1921, 0
    %1934 = vmatprep.subr.mxu0 0.0
    %1935 = vmatpush1.msra.mxu0 %v318
    %1936 = vmatprep.subr.mxu0 0.0
    %1937 = vmatpush1.msra.mxu0 %v319
    %1938 = vmatprep.subr.mxu0 0.0
    %1939 = vmatpush1.msra.mxu0 %v320
    %1940 = vmatprep.subr.mxu0 0.0
    %1941 = vmatpush1.msra.mxu0 %v321
    %1942 = vmatprep.subr.mxu0 0.0
    %1943 = vmatpush1.msra.mxu0 0.0
    %1944 = vmatprep.subr.mxu0 0.0
    %1945 = vmatpush1.msra.mxu0 0.0
    %1946 = vmatprep.subr.mxu0 0.0
    %1947 = vmatpush1.msra.mxu0 0.0
    %1948 = vmatprep.subr.mxu0 0.0
    %1949 = vmatpush1.msra.mxu0 0.0
    %1950 = vmatprep.subr.mxu0 0.0
    %1951 = vmatpush1.msra.mxu0 0.0
    %1952 = vmatprep.subr.mxu0 0.0
    %1953 = vmatpush1.msra.mxu0 0.0
    %1954 = vmatprep.subr.mxu0 0.0
    %1955 = vmatpush1.msra.mxu0 0.0
    %1956 = vmatprep.subr.mxu0 0.0
    %1957 = vmatpush1.msra.mxu0 0.0
    %1958 = vmatprep.subr.mxu0 0.0
    %1959 = vmatpush1.msra.mxu0 0.0
    %1960 = vmatprep.subr.mxu0 0.0
    %1961 = vmatpush1.msra.mxu0 0.0
    %1962 = vmatprep.subr.mxu0 0.0
    %1963 = vmatpush1.msra.mxu0 0.0
    %1964 = vmatprep.subr.mxu0 0.0
    %1965 = vmatpush1.msra.mxu0 0.0
    %1966 = vmatprep.subr.mxu0 0.0
    %1967 = vmatpush1.msra.mxu0 0.0
    %1968 = vmatprep.subr.mxu0 0.0
    %1969 = vmatpush1.msra.mxu0 0.0
    %1970 = vmatprep.subr.mxu0 0.0
    %1971 = vmatpush1.msra.mxu0 0.0
    %1972 = vmatprep.subr.mxu0 0.0
    %1973 = vmatpush1.msra.mxu0 0.0
    %1974 = vmatprep.subr.mxu0 0.0
    %1975 = vmatpush1.msra.mxu0 0.0
    %1976 = vmatprep.subr.mxu0 0.0
    %1977 = vmatpush1.msra.mxu0 0.0
    %1978 = vmatprep.subr.mxu0 0.0
    %1979 = vmatpush1.msra.mxu0 0.0
    %1980 = vmatprep.subr.mxu0 0.0
    %1981 = vmatpush1.msra.mxu0 0.0
    %1982 = vmatprep.subr.mxu0 0.0
    %1983 = vmatpush1.msra.mxu0 0.0
    %1984 = vmatprep.subr.mxu0 0.0
    %1985 = vmatpush1.msra.mxu0 0.0
    %1986 = vmatprep.subr.mxu0 0.0
    %1987 = vmatpush1.msra.mxu0 0.0
    %1988 = vmatprep.subr.mxu0 0.0
    %1989 = vmatpush1.msra.mxu0 0.0
    %1990 = vmatprep.subr.mxu0 0.0
    %1991 = vmatpush1.msra.mxu0 0.0
    %1992 = vmatprep.subr.mxu0 0.0
    %1993 = vmatpush1.msra.mxu0 0.0
    %1994 = vmatprep.subr.mxu0 0.0
    %1995 = vmatpush1.msra.mxu0 0.0
    %1996 = vmatprep.subr.mxu0 0.0
    %1997 = vmatpush1.msra.mxu0 0.0
    %1998 = vmatprep.mubr.f32.mxu0 0.0
    %1999 = vmatmul.mubr.f32.gmra.mrb[0].mxu0 %v1929
    %v2000 = vpop.f32.mrb[0].mxu0
    %v2001 = vadd.f32 %v1926, %v2000
    %v2002 = vpop.f32.mrb[0].mxu0
    %2003 = vmatprep.mubr.f32.mxu0 0.0
    %2004 = vmatmul.mubr.f32.gmra.mrb[0].mxu0 %v1932
    %v2005 = vpop.f32.mrb[0].mxu0
    %v2006 = vadd.f32 %v1926, %v2005
    %v2007 = vpop.f32.mrb[0].mxu0
    %2008 = vdwg.mxu0
    %v2009 = vmul.f32 %v2001, 0.5
    %v2010 = vmul.f32 %v2006, 0.5
    %v2011 = vmul.f32 %v2001, 0.70710677
    %v2012 = vmul.f32 %v2006, 0.70710677
    %v2013 = vand.u32 2147483647, %v2011
    %v2014 = vand.u32 2147483647, %v2012
    %v2015 = vmul.f32 %v2013, 0.3275911
    %v2016 = vmul.f32 %v2014, 0.3275911
    %v2017 = vadd.f32 %v2015, 1.0
    %v2018 = vadd.f32 %v2016, 1.0
    %v2019 = vrcp.pop %v2017
    %v2020 = vrcp.pop %v2018
    %v2021 = vmul.f32 %v2019, 1.0614054
    %v2022 = vmul.f32 %v2020, 1.0614054
    %v2023 = vadd.f32 %v2021, -1.4531521
    %v2024 = vadd.f32 %v2022, -1.4531521
    %v2025 = vmul.f32 %v2023, %v2019
    %v2026 = vmul.f32 %v2024, %v2020
    %v2027 = vadd.f32 %v2025, 1.4214138
    %v2028 = vadd.f32 %v2026, 1.4214138
    %v2029 = vmul.f32 %v2027, %v2019
    %v2030 = vmul.f32 %v2028, %v2020
    %v2031 = vadd.f32 %v2029, -0.28449672
    %v2032 = vadd.f32 %v2030, -0.28449672
    %v2033 = vmul.f32 %v2031, %v2019
    %v2034 = vmul.f32 %v2032, %v2020
    %v2035 = vadd.f32 %v2033, 0.2548296
    %v2036 = vadd.f32 %v2034, 0.2548296
    %v2037 = vmul.f32 %v2035, %v2019
    %v2038 = vmul.f32 %v2036, %v2020
    %v2039 = vsub.f32 0.0, %v2013
    %v2040 = vsub.f32 0.0, %v2014
    %v2041 = vmul.f32 %v2039, %v2013
    %v2042 = vmul.f32 %v2040, %v2014
    %v2043 = vmul.f32 %v2041, 1.442695
    %v2044 = vpow.pop %v2043
    %v2045 = vmul.f32 %v2042, 1.442695
    %v2046 = vpow.pop %v2045
    %v2047 = vmul.f32 %v2037, %v2044
    %v2048 = vmul.f32 %v2038, %v2046
    %v2049 = vsub.f32 1.0, %v2047
    %v2050 = vsub.f32 1.0, %v2048
    %vm2051 = vcmp.lt.f32.partialorder %v2011, 0.0
    %vm2052 = vcmp.lt.f32.partialorder %v2012, 0.0
    %v2053 = vsub.f32 0.0, %v2049
    %v2054 = vsub.f32 0.0, %v2050
    %v2055 = vsel %vm2051, %v2053, %v2049
    %v2056 = vsel %vm2052, %v2054, %v2050
    %v2057 = vadd.f32 %v2055, 1.0
    %v2058 = vadd.f32 %v2056, 1.0
    %v2059 = vmul.f32 %v2009, %v2057
    %v2060 = vmul.f32 %v2010, %v2058
    %v2061 = vlaneseq
    %v2062 = vshrl.u32 %v2061, 7
    %v2063 = vsub.s32 3, %v2062
    %v2064 = vrot.slane %v317, %v2063
    %vm2065 = vcmask 523264
    %v2067 = vsel %vm2065, %v2059, 0
    %v2070 = vsel %vm2065, %v2060, 0
    %2072 = vmatprep.subr.mxu0 0.0
    %2073 = vmatpush1.msra.mxu0 %v323
    %2074 = vmatprep.subr.mxu0 0.0
    %2075 = vmatpush1.msra.mxu0 %v324
    %2076 = vmatprep.subr.mxu0 0.0
    %2077 = vmatpush1.msra.mxu0 %v325
    %2078 = vmatprep.subr.mxu0 0.0
    %2079 = vmatpush1.msra.mxu0 %v326
    %2080 = vmatprep.subr.mxu0 0.0
    %2081 = vmatpush1.msra.mxu0 %v327
    %2082 = vmatprep.subr.mxu0 0.0
    %2083 = vmatpush1.msra.mxu0 %v328
    %2084 = vmatprep.subr.mxu0 0.0
    %2085 = vmatpush1.msra.mxu0 %v329
    %2086 = vmatprep.subr.mxu0 0.0
    %2087 = vmatpush1.msra.mxu0 %v330
    %2088 = vmatprep.subr.mxu0 0.0
    %2089 = vmatpush1.msra.mxu0 0.0
    %2090 = vmatprep.subr.mxu0 0.0
    %2091 = vmatpush1.msra.mxu0 0.0
    %2092 = vmatprep.subr.mxu0 0.0
    %2093 = vmatpush1.msra.mxu0 0.0
    %2094 = vmatprep.subr.mxu0 0.0
    %2095 = vmatpush1.msra.mxu0 0.0
    %2096 = vmatprep.subr.mxu0 0.0
    %2097 = vmatpush1.msra.mxu0 0.0
    %2098 = vmatprep.subr.mxu0 0.0
    %2099 = vmatpush1.msra.mxu0 0.0
    %2100 = vmatprep.subr.mxu0 0.0
    %2101 = vmatpush1.msra.mxu0 0.0
    %2102 = vmatprep.subr.mxu0 0.0
    %2103 = vmatpush1.msra.mxu0 0.0
    %2104 = vmatprep.subr.mxu0 0.0
    %2105 = vmatpush1.msra.mxu0 0.0
    %2106 = vmatprep.subr.mxu0 0.0
    %2107 = vmatpush1.msra.mxu0 0.0
    %2108 = vmatprep.subr.mxu0 0.0
    %2109 = vmatpush1.msra.mxu0 0.0
    %2110 = vmatprep.subr.mxu0 0.0
    %2111 = vmatpush1.msra.mxu0 0.0
    %2112 = vmatprep.subr.mxu0 0.0
    %2113 = vmatpush1.msra.mxu0 0.0
    %2114 = vmatprep.subr.mxu0 0.0
    %2115 = vmatpush1.msra.mxu0 0.0
    %2116 = vmatprep.subr.mxu0 0.0
    %2117 = vmatpush1.msra.mxu0 0.0
    %2118 = vmatprep.subr.mxu0 0.0
    %2119 = vmatpush1.msra.mxu0 0.0
    %2120 = vmatprep.subr.mxu0 0.0
    %2121 = vmatpush1.msra.mxu0 0.0
    %2122 = vmatprep.subr.mxu0 0.0
    %2123 = vmatpush1.msra.mxu0 0.0
    %2124 = vmatprep.subr.mxu0 0.0
    %2125 = vmatpush1.msra.mxu0 0.0
    %2126 = vmatprep.subr.mxu0 0.0
    %2127 = vmatpush1.msra.mxu0 0.0
    %2128 = vmatprep.subr.mxu0 0.0
    %2129 = vmatpush1.msra.mxu0 0.0
    %2130 = vmatprep.subr.mxu0 0.0
    %2131 = vmatpush1.msra.mxu0 0.0
    %2132 = vmatprep.subr.mxu0 0.0
    %2133 = vmatpush1.msra.mxu0 0.0
    %2134 = vmatprep.subr.mxu0 0.0
    %2135 = vmatpush1.msra.mxu0 0.0
    %2136 = vmatprep.mubr.f32.mxu0 0.0
    %2137 = vmatmul.mubr.f32.gmra.mrb[0].mxu0 %v2067
    %v2138 = vpop.f32.mrb[0].mxu0
    %v2139 = vadd.f32 %v2064, %v2138
    %v2140 = vpop.f32.mrb[0].mxu0
    %2141 = vmatprep.mubr.f32.mxu0 0.0
    %2142 = vmatmul.mubr.f32.gmra.mrb[0].mxu0 %v2070
    %v2143 = vpop.f32.mrb[0].mxu0
    %v2144 = vadd.f32 %v2064, %v2143
    %v2145 = vpop.f32.mrb[0].mxu0
    %2146 = vdwg.mxu0
    %v2147 = vadd.f32 %v1920, %v2139
    %v2148 = vadd.f32 %v1921, %v2144
    %v2149 = vsel %vm171, %v2147, 0.0
    %2150 = vadd.xlane.f32.xlu0 %v2149
    %v2151 = vpop.xlane.xlu0 %2150
    %v2152 = vsel %vm171, %v2148, 0.0
    %2153 = vadd.xlane.f32.xlu0 %v2152
    %v2154 = vpop.xlane.xlu0 %2153
    %v2155 = vmul.f32 %v2151, %v263
    %v2156 = vmul.f32 %v2154, %v263
    %v2157 = vsub.f32 %v2147, %v2155
    %v2158 = vsub.f32 %v2148, %v2156
    %v2159 = vmul.f32 %v2157, %v2157
    %v2160 = vmul.f32 %v2158, %v2158
    %v2161 = vsel %vm171, %v2159, 0.0
    %2162 = vadd.xlane.f32.xlu0 %v2161
    %v2163 = vpop.xlane.xlu0 %2162
    %v2164 = vsel %vm171, %v2160, 0.0
    %2165 = vadd.xlane.f32.xlu0 %v2164
    %v2166 = vpop.xlane.xlu0 %2165
    %v2167 = vmul.f32 %v2163, %v263
    %v2168 = vmul.f32 %v2166, %v263
    %v2169 = vadd.f32 %v2167, 1e-12
    %v2170 = vadd.f32 %v2168, 1e-12
    %v2171 = vrsqrt.pop %v2169
    %v2172 = vrsqrt.pop %v2170
    %v2173 = vmul.f32 %v2157, %v2171
    %v2174 = vmul.f32 %v2158, %v2172
    %v2175 = vlaneseq
    %v2176 = vshrl.u32 %v2175, 7
    %v2177 = vsub.s32 4, %v2176
    %v2178 = vrot.slane %v317, %v2177
    %v2179 = vmul.f32 %v2173, %v2178
    %v2180 = vmul.f32 %v2174, %v2178
    %v2181 = vlaneseq
    %v2182 = vshrl.u32 %v2181, 7
    %v2183 = vsub.s32 5, %v2182
    %v2184 = vrot.slane %v317, %v2183
    %v2185 = vadd.f32 %v2179, %v2184
    %v2186 = vadd.f32 %v2180, %v2184
    %s2187 = scalar_lea.vmem %s7, 32
    %v2188 = vld [vmem:[%s2187] sm:$0xff]
    %v2189 = vld [vmem:[%s2187 + $0x8] sm:$0xff]
    %v2190 = vld [vmem:[%s2187 + $0x10] sm:$0xff]
    %v2191 = vld [vmem:[%s2187 + $0x18] sm:$0xff]
    %s2192 = scalar_lea.vmem [#allocation8], 1
    %v2193 = vld [vmem:[%s2192] sm:$0x1]
    %s2194 = scalar_lea.vmem %s9, 32
    %v2195 = vld [vmem:[%s2194] sm:$0xff]
    %v2196 = vld [vmem:[%s2194 + $0x8] sm:$0xff]
    %v2197 = vld [vmem:[%s2194 + $0x10] sm:$0xff]
    %v2198 = vld [vmem:[%s2194 + $0x18] sm:$0xff]
    %s2199 = scalar_lea.vmem %s10, 8
    %v2200 = vld [vmem:[%s2199] sm:$0x3f]
    %s2201 = scalar_lea.vmem %s11, 32
    %v2202 = vld [vmem:[%s2201] sm:$0xff]
    %v2203 = vld [vmem:[%s2201 + $0x8] sm:$0xff]
    %v2204 = vld [vmem:[%s2201 + $0x10] sm:$0xff]
    %v2205 = vld [vmem:[%s2201 + $0x18] sm:$0xff]
    %s2206 = scalar_lea.vmem [#allocation10], 1
    %v2207 = vld [vmem:[%s2206] sm:$0x1]
    %s2208 = scalar_lea.vmem %s13, 64
    %v2209 = vld [vmem:[%s2208] sm:$0xff]
    %v2210 = vld [vmem:[%s2208 + $0x8] sm:$0xff]
    %v2211 = vld [vmem:[%s2208 + $0x10] sm:$0xff]
    %v2212 = vld [vmem:[%s2208 + $0x18] sm:$0xff]
    %v2213 = vld [vmem:[%s2208 + $0x20] sm:$0xff]
    %v2214 = vld [vmem:[%s2208 + $0x28] sm:$0xff]
    %v2215 = vld [vmem:[%s2208 + $0x30] sm:$0xff]
    %v2216 = vld [vmem:[%s2208 + $0x38] sm:$0xff]
    %v2218 = vlaneseq
    %v2219 = vshrl.u32 %v2218, 7
    %v2220 = vsub.s32 0, %v2219
    %v2221 = vrot.slane %v2193, %v2220
    %v2224 = vsel %vm171, %v2185, 0
    %v2227 = vsel %vm171, %v2186, 0
    %2229 = vmatprep.subr.mxu0 0.0
    %2230 = vmatpush1.msra.mxu0 %v2188
    %2231 = vmatprep.subr.mxu0 0.0
    %2232 = vmatpush1.msra.mxu0 %v2189
    %2233 = vmatprep.subr.mxu0 0.0
    %2234 = vmatpush1.msra.mxu0 %v2190
    %2235 = vmatprep.subr.mxu0 0.0
    %2236 = vmatpush1.msra.mxu0 %v2191
    %2237 = vmatprep.subr.mxu0 0.0
    %2238 = vmatpush1.msra.mxu0 0.0
    %2239 = vmatprep.subr.mxu0 0.0
    %2240 = vmatpush1.msra.mxu0 0.0
    %2241 = vmatprep.subr.mxu0 0.0
    %2242 = vmatpush1.msra.mxu0 0.0
    %2243 = vmatprep.subr.mxu0 0.0
    %2244 = vmatpush1.msra.mxu0 0.0
    %2245 = vmatprep.subr.mxu0 0.0
    %2246 = vmatpush1.msra.mxu0 0.0
    %2247 = vmatprep.subr.mxu0 0.0
    %2248 = vmatpush1.msra.mxu0 0.0
    %2249 = vmatprep.subr.mxu0 0.0
    %2250 = vmatpush1.msra.mxu0 0.0
    %2251 = vmatprep.subr.mxu0 0.0
    %2252 = vmatpush1.msra.mxu0 0.0
    %2253 = vmatprep.subr.mxu0 0.0
    %2254 = vmatpush1.msra.mxu0 0.0
    %2255 = vmatprep.subr.mxu0 0.0
    %2256 = vmatpush1.msra.mxu0 0.0
    %2257 = vmatprep.subr.mxu0 0.0
    %2258 = vmatpush1.msra.mxu0 0.0
    %2259 = vmatprep.subr.mxu0 0.0
    %2260 = vmatpush1.msra.mxu0 0.0
    %2261 = vmatprep.subr.mxu0 0.0
    %2262 = vmatpush1.msra.mxu0 0.0
    %2263 = vmatprep.subr.mxu0 0.0
    %2264 = vmatpush1.msra.mxu0 0.0
    %2265 = vmatprep.subr.mxu0 0.0
    %2266 = vmatpush1.msra.mxu0 0.0
    %2267 = vmatprep.subr.mxu0 0.0
    %2268 = vmatpush1.msra.mxu0 0.0
    %2269 = vmatprep.subr.mxu0 0.0
    %2270 = vmatpush1.msra.mxu0 0.0
    %2271 = vmatprep.subr.mxu0 0.0
    %2272 = vmatpush1.msra.mxu0 0.0
    %2273 = vmatprep.subr.mxu0 0.0
    %2274 = vmatpush1.msra.mxu0 0.0
    %2275 = vmatprep.subr.mxu0 0.0
    %2276 = vmatpush1.msra.mxu0 0.0
    %2277 = vmatprep.subr.mxu0 0.0
    %2278 = vmatpush1.msra.mxu0 0.0
    %2279 = vmatprep.subr.mxu0 0.0
    %2280 = vmatpush1.msra.mxu0 0.0
    %2281 = vmatprep.subr.mxu0 0.0
    %2282 = vmatpush1.msra.mxu0 0.0
    %2283 = vmatprep.subr.mxu0 0.0
    %2284 = vmatpush1.msra.mxu0 0.0
    %2285 = vmatprep.subr.mxu0 0.0
    %2286 = vmatpush1.msra.mxu0 0.0
    %2287 = vmatprep.subr.mxu0 0.0
    %2288 = vmatpush1.msra.mxu0 0.0
    %2289 = vmatprep.subr.mxu0 0.0
    %2290 = vmatpush1.msra.mxu0 0.0
    %2291 = vmatprep.subr.mxu0 0.0
    %2292 = vmatpush1.msra.mxu0 0.0
    %2293 = vmatprep.mubr.f32.mxu0 0.0
    %2294 = vmatmul.mubr.f32.gmra.mrb[0].mxu0 %v2224
    %v2295 = vpop.f32.mrb[0].mxu0
    %v2296 = vadd.f32 %v2221, %v2295
    %v2297 = vpop.f32.mrb[0].mxu0
    %2298 = vmatprep.mubr.f32.mxu0 0.0
    %2299 = vmatmul.mubr.f32.gmra.mrb[0].mxu0 %v2227
    %v2300 = vpop.f32.mrb[0].mxu0
    %v2301 = vadd.f32 %v2221, %v2300
    %v2302 = vpop.f32.mrb[0].mxu0
    %2303 = vdwg.mxu0
    %2306 = vrot.lane.b32.xlu0 %v2296, 120
    %v2307 = vpop.permute.xlu0 %2306
    %2308 = vrot.lane.b32.xlu0 %v2301, 120
    %v2309 = vpop.permute.xlu0 %2308
    %2310 = vrot.lane.b32.xlu0 %v2296, 112
    %v2311 = vpop.permute.xlu0 %2310
    %2312 = vrot.lane.b32.xlu0 %v2301, 112
    %v2313 = vpop.permute.xlu0 %2312
    %2314 = vrot.lane.b32.xlu0 %v2296, 104
    %v2315 = vpop.permute.xlu0 %2314
    %2316 = vrot.lane.b32.xlu0 %v2301, 104
    %v2317 = vpop.permute.xlu0 %2316
    %2318 = vrot.lane.b32.xlu0 %v2296, 96
    %v2319 = vpop.permute.xlu0 %2318
    %v2320 = vsel %vm434, %v2296, 0
    %v2322 = vsel %vm434, %v2319, 0
    %2324 = vmatprep.subr.mxu0 0.0
    %2325 = vmatpush1.xpose.msra.mxu0 %v2322
    %2326 = vmatprep.subr.mxu0 0.0
    %2327 = vmatpush1.xpose.msra.mxu0 0.0
    %2328 = vmatprep.subr.mxu0 0.0
    %2329 = vmatpush1.xpose.msra.mxu0 0.0
    %2330 = vmatprep.subr.mxu0 0.0
    %2331 = vmatpush1.xpose.msra.mxu0 0.0
    %2332 = vmatprep.subr.mxu0 0.0
    %2333 = vmatpush1.xpose.msra.mxu0 0.0
    %2334 = vmatprep.subr.mxu0 0.0
    %2335 = vmatpush1.xpose.msra.mxu0 0.0
    %2336 = vmatprep.subr.mxu0 0.0
    %2337 = vmatpush1.xpose.msra.mxu0 0.0
    %2338 = vmatprep.subr.mxu0 0.0
    %2339 = vmatpush1.xpose.msra.mxu0 0.0
    %2340 = vmatprep.subr.mxu0 0.0
    %2341 = vmatpush1.xpose.msra.mxu0 0.0
    %2342 = vmatprep.subr.mxu0 0.0
    %2343 = vmatpush1.xpose.msra.mxu0 0.0
    %2344 = vmatprep.subr.mxu0 0.0
    %2345 = vmatpush1.xpose.msra.mxu0 0.0
    %2346 = vmatprep.subr.mxu0 0.0
    %2347 = vmatpush1.xpose.msra.mxu0 0.0
    %2348 = vmatprep.subr.mxu0 0.0
    %2349 = vmatpush1.xpose.msra.mxu0 0.0
    %2350 = vmatprep.subr.mxu0 0.0
    %2351 = vmatpush1.xpose.msra.mxu0 0.0
    %2352 = vmatprep.subr.mxu0 0.0
    %2353 = vmatpush1.xpose.msra.mxu0 0.0
    %2354 = vmatprep.subr.mxu0 0.0
    %2355 = vmatpush1.xpose.msra.mxu0 0.0
    %2356 = vmatprep.subr.mxu0 0.0
    %2357 = vmatpush1.xpose.msra.mxu0 0.0
    %2358 = vmatprep.subr.mxu0 0.0
    %2359 = vmatpush1.xpose.msra.mxu0 0.0
    %2360 = vmatprep.subr.mxu0 0.0
    %2361 = vmatpush1.xpose.msra.mxu0 0.0
    %2362 = vmatprep.subr.mxu0 0.0
    %2363 = vmatpush1.xpose.msra.mxu0 0.0
    %2364 = vmatprep.subr.mxu0 0.0
    %2365 = vmatpush1.xpose.msra.mxu0 0.0
    %2366 = vmatprep.subr.mxu0 0.0
    %2367 = vmatpush1.xpose.msra.mxu0 0.0
    %2368 = vmatprep.subr.mxu0 0.0
    %2369 = vmatpush1.xpose.msra.mxu0 0.0
    %2370 = vmatprep.subr.mxu0 0.0
    %2371 = vmatpush1.xpose.msra.mxu0 0.0
    %2372 = vmatprep.subr.mxu0 0.0
    %2373 = vmatpush1.xpose.msra.mxu0 0.0
    %2374 = vmatprep.subr.mxu0 0.0
    %2375 = vmatpush1.xpose.msra.mxu0 0.0
    %2376 = vmatprep.subr.mxu0 0.0
    %2377 = vmatpush1.xpose.msra.mxu0 0.0
    %2378 = vmatprep.subr.mxu0 0.0
    %2379 = vmatpush1.xpose.msra.mxu0 0.0
    %2380 = vmatprep.subr.mxu0 0.0
    %2381 = vmatpush1.xpose.msra.mxu0 0.0
    %2382 = vmatprep.subr.mxu0 0.0
    %2383 = vmatpush1.xpose.msra.mxu0 0.0
    %2384 = vmatprep.subr.mxu0 0.0
    %2385 = vmatpush1.xpose.msra.mxu0 0.0
    %2386 = vmatprep.subr.mxu0 0.0
    %2387 = vmatpush1.xpose.msra.mxu0 0.0
    %2388 = vmatprep.mubr.f32.mxu0 0.0
    %2389 = vmatmul.mubr.f32.gmra.mrb[0].mxu0 %v2320
    %v2390 = vpop.f32.mrb[0].mxu0
    %v2391 = vadd.f32 0.0, %v2390
    %v2392 = vpop.f32.mrb[0].mxu0
    %2393 = vdwg.mxu0
    %2394 = vrot.lane.b32.xlu0 %v2301, 96
    %v2395 = vpop.permute.xlu0 %2394
    %v2396 = vsel %vm434, %v2301, 0
    %v2398 = vsel %vm434, %v2395, 0
    %2400 = vmatprep.subr.mxu0 0.0
    %2401 = vmatpush1.xpose.msra.mxu0 %v2398
    %2402 = vmatprep.subr.mxu0 0.0
    %2403 = vmatpush1.xpose.msra.mxu0 0.0
    %2404 = vmatprep.subr.mxu0 0.0
    %2405 = vmatpush1.xpose.msra.mxu0 0.0
    %2406 = vmatprep.subr.mxu0 0.0
    %2407 = vmatpush1.xpose.msra.mxu0 0.0
    %2408 = vmatprep.subr.mxu0 0.0
    %2409 = vmatpush1.xpose.msra.mxu0 0.0
    %2410 = vmatprep.subr.mxu0 0.0
    %2411 = vmatpush1.xpose.msra.mxu0 0.0
    %2412 = vmatprep.subr.mxu0 0.0
    %2413 = vmatpush1.xpose.msra.mxu0 0.0
    %2414 = vmatprep.subr.mxu0 0.0
    %2415 = vmatpush1.xpose.msra.mxu0 0.0
    %2416 = vmatprep.subr.mxu0 0.0
    %2417 = vmatpush1.xpose.msra.mxu0 0.0
    %2418 = vmatprep.subr.mxu0 0.0
    %2419 = vmatpush1.xpose.msra.mxu0 0.0
    %2420 = vmatprep.subr.mxu0 0.0
    %2421 = vmatpush1.xpose.msra.mxu0 0.0
    %2422 = vmatprep.subr.mxu0 0.0
    %2423 = vmatpush1.xpose.msra.mxu0 0.0
    %2424 = vmatprep.subr.mxu0 0.0
    %2425 = vmatpush1.xpose.msra.mxu0 0.0
    %2426 = vmatprep.subr.mxu0 0.0
    %2427 = vmatpush1.xpose.msra.mxu0 0.0
    %2428 = vmatprep.subr.mxu0 0.0
    %2429 = vmatpush1.xpose.msra.mxu0 0.0
    %2430 = vmatprep.subr.mxu0 0.0
    %2431 = vmatpush1.xpose.msra.mxu0 0.0
    %2432 = vmatprep.subr.mxu0 0.0
    %2433 = vmatpush1.xpose.msra.mxu0 0.0
    %2434 = vmatprep.subr.mxu0 0.0
    %2435 = vmatpush1.xpose.msra.mxu0 0.0
    %2436 = vmatprep.subr.mxu0 0.0
    %2437 = vmatpush1.xpose.msra.mxu0 0.0
    %2438 = vmatprep.subr.mxu0 0.0
    %2439 = vmatpush1.xpose.msra.mxu0 0.0
    %2440 = vmatprep.subr.mxu0 0.0
    %2441 = vmatpush1.xpose.msra.mxu0 0.0
    %2442 = vmatprep.subr.mxu0 0.0
    %2443 = vmatpush1.xpose.msra.mxu0 0.0
    %2444 = vmatprep.subr.mxu0 0.0
    %2445 = vmatpush1.xpose.msra.mxu0 0.0
    %2446 = vmatprep.subr.mxu0 0.0
    %2447 = vmatpush1.xpose.msra.mxu0 0.0
    %2448 = vmatprep.subr.mxu0 0.0
    %2449 = vmatpush1.xpose.msra.mxu0 0.0
    %2450 = vmatprep.subr.mxu0 0.0
    %2451 = vmatpush1.xpose.msra.mxu0 0.0
    %2452 = vmatprep.subr.mxu0 0.0
    %2453 = vmatpush1.xpose.msra.mxu0 0.0
    %2454 = vmatprep.subr.mxu0 0.0
    %2455 = vmatpush1.xpose.msra.mxu0 0.0
    %2456 = vmatprep.subr.mxu0 0.0
    %2457 = vmatpush1.xpose.msra.mxu0 0.0
    %2458 = vmatprep.subr.mxu0 0.0
    %2459 = vmatpush1.xpose.msra.mxu0 0.0
    %2460 = vmatprep.subr.mxu0 0.0
    %2461 = vmatpush1.xpose.msra.mxu0 0.0
    %2462 = vmatprep.subr.mxu0 0.0
    %2463 = vmatpush1.xpose.msra.mxu0 0.0
    %2464 = vmatprep.mubr.f32.mxu0 0.0
    %2465 = vmatmul.mubr.f32.gmra.mrb[0].mxu0 %v2396
    %v2466 = vpop.f32.mrb[0].mxu0
    %v2467 = vadd.f32 0.0, %v2466
    %v2468 = vpop.f32.mrb[0].mxu0
    %2469 = vdwg.mxu0
    %2470 = vrot.lane.b32.xlu0 %v2307, 96
    %v2471 = vpop.permute.xlu0 %2470
    %v2472 = vsel %vm434, %v2307, 0
    %v2474 = vsel %vm434, %v2471, 0
    %2476 = vmatprep.subr.mxu0 0.0
    %2477 = vmatpush1.xpose.msra.mxu0 %v2474
    %2478 = vmatprep.subr.mxu0 0.0
    %2479 = vmatpush1.xpose.msra.mxu0 0.0
    %2480 = vmatprep.subr.mxu0 0.0
    %2481 = vmatpush1.xpose.msra.mxu0 0.0
    %2482 = vmatprep.subr.mxu0 0.0
    %2483 = vmatpush1.xpose.msra.mxu0 0.0
    %2484 = vmatprep.subr.mxu0 0.0
    %2485 = vmatpush1.xpose.msra.mxu0 0.0
    %2486 = vmatprep.subr.mxu0 0.0
    %2487 = vmatpush1.xpose.msra.mxu0 0.0
    %2488 = vmatprep.subr.mxu0 0.0
    %2489 = vmatpush1.xpose.msra.mxu0 0.0
    %2490 = vmatprep.subr.mxu0 0.0
    %2491 = vmatpush1.xpose.msra.mxu0 0.0
    %2492 = vmatprep.subr.mxu0 0.0
    %2493 = vmatpush1.xpose.msra.mxu0 0.0
    %2494 = vmatprep.subr.mxu0 0.0
    %2495 = vmatpush1.xpose.msra.mxu0 0.0
    %2496 = vmatprep.subr.mxu0 0.0
    %2497 = vmatpush1.xpose.msra.mxu0 0.0
    %2498 = vmatprep.subr.mxu0 0.0
    %2499 = vmatpush1.xpose.msra.mxu0 0.0
    %2500 = vmatprep.subr.mxu0 0.0
    %2501 = vmatpush1.xpose.msra.mxu0 0.0
    %2502 = vmatprep.subr.mxu0 0.0
    %2503 = vmatpush1.xpose.msra.mxu0 0.0
    %2504 = vmatprep.subr.mxu0 0.0
    %2505 = vmatpush1.xpose.msra.mxu0 0.0
    %2506 = vmatprep.subr.mxu0 0.0
    %2507 = vmatpush1.xpose.msra.mxu0 0.0
    %2508 = vmatprep.subr.mxu0 0.0
    %2509 = vmatpush1.xpose.msra.mxu0 0.0
    %2510 = vmatprep.subr.mxu0 0.0
    %2511 = vmatpush1.xpose.msra.mxu0 0.0
    %2512 = vmatprep.subr.mxu0 0.0
    %2513 = vmatpush1.xpose.msra.mxu0 0.0
    %2514 = vmatprep.subr.mxu0 0.0
    %2515 = vmatpush1.xpose.msra.mxu0 0.0
    %2516 = vmatprep.subr.mxu0 0.0
    %2517 = vmatpush1.xpose.msra.mxu0 0.0
    %2518 = vmatprep.subr.mxu0 0.0
    %2519 = vmatpush1.xpose.msra.mxu0 0.0
    %2520 = vmatprep.subr.mxu0 0.0
    %2521 = vmatpush1.xpose.msra.mxu0 0.0
    %2522 = vmatprep.subr.mxu0 0.0
    %2523 = vmatpush1.xpose.msra.mxu0 0.0
    %2524 = vmatprep.subr.mxu0 0.0
    %2525 = vmatpush1.xpose.msra.mxu0 0.0
    %2526 = vmatprep.subr.mxu0 0.0
    %2527 = vmatpush1.xpose.msra.mxu0 0.0
    %2528 = vmatprep.subr.mxu0 0.0
    %2529 = vmatpush1.xpose.msra.mxu0 0.0
    %2530 = vmatprep.subr.mxu0 0.0
    %2531 = vmatpush1.xpose.msra.mxu0 0.0
    %2532 = vmatprep.subr.mxu0 0.0
    %2533 = vmatpush1.xpose.msra.mxu0 0.0
    %2534 = vmatprep.subr.mxu0 0.0
    %2535 = vmatpush1.xpose.msra.mxu0 0.0
    %2536 = vmatprep.subr.mxu0 0.0
    %2537 = vmatpush1.xpose.msra.mxu0 0.0
    %2538 = vmatprep.subr.mxu0 0.0
    %2539 = vmatpush1.xpose.msra.mxu0 0.0
    %2540 = vmatprep.mubr.f32.mxu0 0.0
    %2541 = vmatmul.mubr.f32.gmra.mrb[0].mxu0 %v2472
    %v2542 = vpop.f32.mrb[0].mxu0
    %v2543 = vadd.f32 0.0, %v2542
    %v2544 = vpop.f32.mrb[0].mxu0
    %2545 = vdwg.mxu0
    %2546 = vrot.lane.b32.xlu0 %v2309, 96
    %v2547 = vpop.permute.xlu0 %2546
    %v2548 = vsel %vm434, %v2309, 0
    %v2550 = vsel %vm434, %v2547, 0
    %2552 = vmatprep.subr.mxu0 0.0
    %2553 = vmatpush1.xpose.msra.mxu0 %v2550
    %2554 = vmatprep.subr.mxu0 0.0
    %2555 = vmatpush1.xpose.msra.mxu0 0.0
    %2556 = vmatprep.subr.mxu0 0.0
    %2557 = vmatpush1.xpose.msra.mxu0 0.0
    %2558 = vmatprep.subr.mxu0 0.0
    %2559 = vmatpush1.xpose.msra.mxu0 0.0
    %2560 = vmatprep.subr.mxu0 0.0
    %2561 = vmatpush1.xpose.msra.mxu0 0.0
    %2562 = vmatprep.subr.mxu0 0.0
    %2563 = vmatpush1.xpose.msra.mxu0 0.0
    %2564 = vmatprep.subr.mxu0 0.0
    %2565 = vmatpush1.xpose.msra.mxu0 0.0
    %2566 = vmatprep.subr.mxu0 0.0
    %2567 = vmatpush1.xpose.msra.mxu0 0.0
    %2568 = vmatprep.subr.mxu0 0.0
    %2569 = vmatpush1.xpose.msra.mxu0 0.0
    %2570 = vmatprep.subr.mxu0 0.0
    %2571 = vmatpush1.xpose.msra.mxu0 0.0
    %2572 = vmatprep.subr.mxu0 0.0
    %2573 = vmatpush1.xpose.msra.mxu0 0.0
    %2574 = vmatprep.subr.mxu0 0.0
    %2575 = vmatpush1.xpose.msra.mxu0 0.0
    %2576 = vmatprep.subr.mxu0 0.0
    %2577 = vmatpush1.xpose.msra.mxu0 0.0
    %2578 = vmatprep.subr.mxu0 0.0
    %2579 = vmatpush1.xpose.msra.mxu0 0.0
    %2580 = vmatprep.subr.mxu0 0.0
    %2581 = vmatpush1.xpose.msra.mxu0 0.0
    %2582 = vmatprep.subr.mxu0 0.0
    %2583 = vmatpush1.xpose.msra.mxu0 0.0
    %2584 = vmatprep.subr.mxu0 0.0
    %2585 = vmatpush1.xpose.msra.mxu0 0.0
    %2586 = vmatprep.subr.mxu0 0.0
    %2587 = vmatpush1.xpose.msra.mxu0 0.0
    %2588 = vmatprep.subr.mxu0 0.0
    %2589 = vmatpush1.xpose.msra.mxu0 0.0
    %2590 = vmatprep.subr.mxu0 0.0
    %2591 = vmatpush1.xpose.msra.mxu0 0.0
    %2592 = vmatprep.subr.mxu0 0.0
    %2593 = vmatpush1.xpose.msra.mxu0 0.0
    %2594 = vmatprep.subr.mxu0 0.0
    %2595 = vmatpush1.xpose.msra.mxu0 0.0
    %2596 = vmatprep.subr.mxu0 0.0
    %2597 = vmatpush1.xpose.msra.mxu0 0.0
    %2598 = vmatprep.subr.mxu0 0.0
    %2599 = vmatpush1.xpose.msra.mxu0 0.0
    %2600 = vmatprep.subr.mxu0 0.0
    %2601 = vmatpush1.xpose.msra.mxu0 0.0
    %2602 = vmatprep.subr.mxu0 0.0
    %2603 = vmatpush1.xpose.msra.mxu0 0.0
    %2604 = vmatprep.subr.mxu0 0.0
    %2605 = vmatpush1.xpose.msra.mxu0 0.0
    %2606 = vmatprep.subr.mxu0 0.0
    %2607 = vmatpush1.xpose.msra.mxu0 0.0
    %2608 = vmatprep.subr.mxu0 0.0
    %2609 = vmatpush1.xpose.msra.mxu0 0.0
    %2610 = vmatprep.subr.mxu0 0.0
    %2611 = vmatpush1.xpose.msra.mxu0 0.0
    %2612 = vmatprep.subr.mxu0 0.0
    %2613 = vmatpush1.xpose.msra.mxu0 0.0
    %2614 = vmatprep.subr.mxu0 0.0
    %2615 = vmatpush1.xpose.msra.mxu0 0.0
    %2616 = vmatprep.mubr.f32.mxu0 0.0
    %2617 = vmatmul.mubr.f32.gmra.mrb[0].mxu0 %v2548
    %v2618 = vpop.f32.mrb[0].mxu0
    %v2619 = vadd.f32 0.0, %v2618
    %v2620 = vpop.f32.mrb[0].mxu0
    %2621 = vdwg.mxu0
    %2622 = vrot.lane.b32.xlu0 %v2311, 96
    %v2623 = vpop.permute.xlu0 %2622
    %v2624 = vsel %vm434, %v2311, 0
    %v2626 = vsel %vm434, %v2623, 0
    %2628 = vmatprep.subr.mxu0 0.0
    %2629 = vmatpush1.xpose.msra.mxu0 %v2626
    %2630 = vmatprep.subr.mxu0 0.0
    %2631 = vmatpush1.xpose.msra.mxu0 0.0
    %2632 = vmatprep.subr.mxu0 0.0
    %2633 = vmatpush1.xpose.msra.mxu0 0.0
    %2634 = vmatprep.subr.mxu0 0.0
    %2635 = vmatpush1.xpose.msra.mxu0 0.0
    %2636 = vmatprep.subr.mxu0 0.0
    %2637 = vmatpush1.xpose.msra.mxu0 0.0
    %2638 = vmatprep.subr.mxu0 0.0
    %2639 = vmatpush1.xpose.msra.mxu0 0.0
    %2640 = vmatprep.subr.mxu0 0.0
    %2641 = vmatpush1.xpose.msra.mxu0 0.0
    %2642 = vmatprep.subr.mxu0 0.0
    %2643 = vmatpush1.xpose.msra.mxu0 0.0
    %2644 = vmatprep.subr.mxu0 0.0
    %2645 = vmatpush1.xpose.msra.mxu0 0.0
    %2646 = vmatprep.subr.mxu0 0.0
    %2647 = vmatpush1.xpose.msra.mxu0 0.0
    %2648 = vmatprep.subr.mxu0 0.0
    %2649 = vmatpush1.xpose.msra.mxu0 0.0
    %2650 = vmatprep.subr.mxu0 0.0
    %2651 = vmatpush1.xpose.msra.mxu0 0.0
    %2652 = vmatprep.subr.mxu0 0.0
    %2653 = vmatpush1.xpose.msra.mxu0 0.0
    %2654 = vmatprep.subr.mxu0 0.0
    %2655 = vmatpush1.xpose.msra.mxu0 0.0
    %2656 = vmatprep.subr.mxu0 0.0
    %2657 = vmatpush1.xpose.msra.mxu0 0.0
    %2658 = vmatprep.subr.mxu0 0.0
    %2659 = vmatpush1.xpose.msra.mxu0 0.0
    %2660 = vmatprep.subr.mxu0 0.0
    %2661 = vmatpush1.xpose.msra.mxu0 0.0
    %2662 = vmatprep.subr.mxu0 0.0
    %2663 = vmatpush1.xpose.msra.mxu0 0.0
    %2664 = vmatprep.subr.mxu0 0.0
    %2665 = vmatpush1.xpose.msra.mxu0 0.0
    %2666 = vmatprep.subr.mxu0 0.0
    %2667 = vmatpush1.xpose.msra.mxu0 0.0
    %2668 = vmatprep.subr.mxu0 0.0
    %2669 = vmatpush1.xpose.msra.mxu0 0.0
    %2670 = vmatprep.subr.mxu0 0.0
    %2671 = vmatpush1.xpose.msra.mxu0 0.0
    %2672 = vmatprep.subr.mxu0 0.0
    %2673 = vmatpush1.xpose.msra.mxu0 0.0
    %2674 = vmatprep.subr.mxu0 0.0
    %2675 = vmatpush1.xpose.msra.mxu0 0.0
    %2676 = vmatprep.subr.mxu0 0.0
    %2677 = vmatpush1.xpose.msra.mxu0 0.0
    %2678 = vmatprep.subr.mxu0 0.0
    %2679 = vmatpush1.xpose.msra.mxu0 0.0
    %2680 = vmatprep.subr.mxu0 0.0
    %2681 = vmatpush1.xpose.msra.mxu0 0.0
    %2682 = vmatprep.subr.mxu0 0.0
    %2683 = vmatpush1.xpose.msra.mxu0 0.0
    %2684 = vmatprep.subr.mxu0 0.0
    %2685 = vmatpush1.xpose.msra.mxu0 0.0
    %2686 = vmatprep.subr.mxu0 0.0
    %2687 = vmatpush1.xpose.msra.mxu0 0.0
    %2688 = vmatprep.subr.mxu0 0.0
    %2689 = vmatpush1.xpose.msra.mxu0 0.0
    %2690 = vmatprep.subr.mxu0 0.0
    %2691 = vmatpush1.xpose.msra.mxu0 0.0
    %2692 = vmatprep.mubr.f32.mxu0 0.0
    %2693 = vmatmul.mubr.f32.gmra.mrb[0].mxu0 %v2624
    %v2694 = vpop.f32.mrb[0].mxu0
    %v2695 = vadd.f32 0.0, %v2694
    %v2696 = vpop.f32.mrb[0].mxu0
    %2697 = vdwg.mxu0
    %2698 = vrot.lane.b32.xlu0 %v2313, 96
    %v2699 = vpop.permute.xlu0 %2698
    %v2700 = vsel %vm434, %v2313, 0
    %v2702 = vsel %vm434, %v2699, 0
    %2704 = vmatprep.subr.mxu0 0.0
    %2705 = vmatpush1.xpose.msra.mxu0 %v2702
    %2706 = vmatprep.subr.mxu0 0.0
    %2707 = vmatpush1.xpose.msra.mxu0 0.0
    %2708 = vmatprep.subr.mxu0 0.0
    %2709 = vmatpush1.xpose.msra.mxu0 0.0
    %2710 = vmatprep.subr.mxu0 0.0
    %2711 = vmatpush1.xpose.msra.mxu0 0.0
    %2712 = vmatprep.subr.mxu0 0.0
    %2713 = vmatpush1.xpose.msra.mxu0 0.0
    %2714 = vmatprep.subr.mxu0 0.0
    %2715 = vmatpush1.xpose.msra.mxu0 0.0
    %2716 = vmatprep.subr.mxu0 0.0
    %2717 = vmatpush1.xpose.msra.mxu0 0.0
    %2718 = vmatprep.subr.mxu0 0.0
    %2719 = vmatpush1.xpose.msra.mxu0 0.0
    %2720 = vmatprep.subr.mxu0 0.0
    %2721 = vmatpush1.xpose.msra.mxu0 0.0
    %2722 = vmatprep.subr.mxu0 0.0
    %2723 = vmatpush1.xpose.msra.mxu0 0.0
    %2724 = vmatprep.subr.mxu0 0.0
    %2725 = vmatpush1.xpose.msra.mxu0 0.0
    %2726 = vmatprep.subr.mxu0 0.0
    %2727 = vmatpush1.xpose.msra.mxu0 0.0
    %2728 = vmatprep.subr.mxu0 0.0
    %2729 = vmatpush1.xpose.msra.mxu0 0.0
    %2730 = vmatprep.subr.mxu0 0.0
    %2731 = vmatpush1.xpose.msra.mxu0 0.0
    %2732 = vmatprep.subr.mxu0 0.0
    %2733 = vmatpush1.xpose.msra.mxu0 0.0
    %2734 = vmatprep.subr.mxu0 0.0
    %2735 = vmatpush1.xpose.msra.mxu0 0.0
    %2736 = vmatprep.subr.mxu0 0.0
    %2737 = vmatpush1.xpose.msra.mxu0 0.0
    %2738 = vmatprep.subr.mxu0 0.0
    %2739 = vmatpush1.xpose.msra.mxu0 0.0
    %2740 = vmatprep.subr.mxu0 0.0
    %2741 = vmatpush1.xpose.msra.mxu0 0.0
    %2742 = vmatprep.subr.mxu0 0.0
    %2743 = vmatpush1.xpose.msra.mxu0 0.0
    %2744 = vmatprep.subr.mxu0 0.0
    %2745 = vmatpush1.xpose.msra.mxu0 0.0
    %2746 = vmatprep.subr.mxu0 0.0
    %2747 = vmatpush1.xpose.msra.mxu0 0.0
    %2748 = vmatprep.subr.mxu0 0.0
    %2749 = vmatpush1.xpose.msra.mxu0 0.0
    %2750 = vmatprep.subr.mxu0 0.0
    %2751 = vmatpush1.xpose.msra.mxu0 0.0
    %2752 = vmatprep.subr.mxu0 0.0
    %2753 = vmatpush1.xpose.msra.mxu0 0.0
    %2754 = vmatprep.subr.mxu0 0.0
    %2755 = vmatpush1.xpose.msra.mxu0 0.0
    %2756 = vmatprep.subr.mxu0 0.0
    %2757 = vmatpush1.xpose.msra.mxu0 0.0
    %2758 = vmatprep.subr.mxu0 0.0
    %2759 = vmatpush1.xpose.msra.mxu0 0.0
    %2760 = vmatprep.subr.mxu0 0.0
    %2761 = vmatpush1.xpose.msra.mxu0 0.0
    %2762 = vmatprep.subr.mxu0 0.0
    %2763 = vmatpush1.xpose.msra.mxu0 0.0
    %2764 = vmatprep.subr.mxu0 0.0
    %2765 = vmatpush1.xpose.msra.mxu0 0.0
    %2766 = vmatprep.subr.mxu0 0.0
    %2767 = vmatpush1.xpose.msra.mxu0 0.0
    %2768 = vmatprep.mubr.f32.mxu0 0.0
    %2769 = vmatmul.mubr.f32.gmra.mrb[0].mxu0 %v2700
    %v2770 = vpop.f32.mrb[0].mxu0
    %v2771 = vadd.f32 0.0, %v2770
    %v2772 = vpop.f32.mrb[0].mxu0
    %2773 = vdwg.mxu0
    %2774 = vrot.lane.b32.xlu0 %v2315, 96
    %v2775 = vpop.permute.xlu0 %2774
    %v2776 = vsel %vm434, %v2315, 0
    %v2778 = vsel %vm434, %v2775, 0
    %2780 = vmatprep.subr.mxu0 0.0
    %2781 = vmatpush1.xpose.msra.mxu0 %v2778
    %2782 = vmatprep.subr.mxu0 0.0
    %2783 = vmatpush1.xpose.msra.mxu0 0.0
    %2784 = vmatprep.subr.mxu0 0.0
    %2785 = vmatpush1.xpose.msra.mxu0 0.0
    %2786 = vmatprep.subr.mxu0 0.0
    %2787 = vmatpush1.xpose.msra.mxu0 0.0
    %2788 = vmatprep.subr.mxu0 0.0
    %2789 = vmatpush1.xpose.msra.mxu0 0.0
    %2790 = vmatprep.subr.mxu0 0.0
    %2791 = vmatpush1.xpose.msra.mxu0 0.0
    %2792 = vmatprep.subr.mxu0 0.0
    %2793 = vmatpush1.xpose.msra.mxu0 0.0
    %2794 = vmatprep.subr.mxu0 0.0
    %2795 = vmatpush1.xpose.msra.mxu0 0.0
    %2796 = vmatprep.subr.mxu0 0.0
    %2797 = vmatpush1.xpose.msra.mxu0 0.0
    %2798 = vmatprep.subr.mxu0 0.0
    %2799 = vmatpush1.xpose.msra.mxu0 0.0
    %2800 = vmatprep.subr.mxu0 0.0
    %2801 = vmatpush1.xpose.msra.mxu0 0.0
    %2802 = vmatprep.subr.mxu0 0.0
    %2803 = vmatpush1.xpose.msra.mxu0 0.0
    %2804 = vmatprep.subr.mxu0 0.0
    %2805 = vmatpush1.xpose.msra.mxu0 0.0
    %2806 = vmatprep.subr.mxu0 0.0
    %2807 = vmatpush1.xpose.msra.mxu0 0.0
    %2808 = vmatprep.subr.mxu0 0.0
    %2809 = vmatpush1.xpose.msra.mxu0 0.0
    %2810 = vmatprep.subr.mxu0 0.0
    %2811 = vmatpush1.xpose.msra.mxu0 0.0
    %2812 = vmatprep.subr.mxu0 0.0
    %2813 = vmatpush1.xpose.msra.mxu0 0.0
    %2814 = vmatprep.subr.mxu0 0.0
    %2815 = vmatpush1.xpose.msra.mxu0 0.0
    %2816 = vmatprep.subr.mxu0 0.0
    %2817 = vmatpush1.xpose.msra.mxu0 0.0
    %2818 = vmatprep.subr.mxu0 0.0
    %2819 = vmatpush1.xpose.msra.mxu0 0.0
    %2820 = vmatprep.subr.mxu0 0.0
    %2821 = vmatpush1.xpose.msra.mxu0 0.0
    %2822 = vmatprep.subr.mxu0 0.0
    %2823 = vmatpush1.xpose.msra.mxu0 0.0
    %2824 = vmatprep.subr.mxu0 0.0
    %2825 = vmatpush1.xpose.msra.mxu0 0.0
    %2826 = vmatprep.subr.mxu0 0.0
    %2827 = vmatpush1.xpose.msra.mxu0 0.0
    %2828 = vmatprep.subr.mxu0 0.0
    %2829 = vmatpush1.xpose.msra.mxu0 0.0
    %2830 = vmatprep.subr.mxu0 0.0
    %2831 = vmatpush1.xpose.msra.mxu0 0.0
    %2832 = vmatprep.subr.mxu0 0.0
    %2833 = vmatpush1.xpose.msra.mxu0 0.0
    %2834 = vmatprep.subr.mxu0 0.0
    %2835 = vmatpush1.xpose.msra.mxu0 0.0
    %2836 = vmatprep.subr.mxu0 0.0
    %2837 = vmatpush1.xpose.msra.mxu0 0.0
    %2838 = vmatprep.subr.mxu0 0.0
    %2839 = vmatpush1.xpose.msra.mxu0 0.0
    %2840 = vmatprep.subr.mxu0 0.0
    %2841 = vmatpush1.xpose.msra.mxu0 0.0
    %2842 = vmatprep.subr.mxu0 0.0
    %2843 = vmatpush1.xpose.msra.mxu0 0.0
    %2844 = vmatprep.mubr.f32.mxu0 0.0
    %2845 = vmatmul.mubr.f32.gmra.mrb[0].mxu0 %v2776
    %v2846 = vpop.f32.mrb[0].mxu0
    %v2847 = vadd.f32 0.0, %v2846
    %v2848 = vpop.f32.mrb[0].mxu0
    %2849 = vdwg.mxu0
    %2850 = vrot.lane.b32.xlu0 %v2317, 96
    %v2851 = vpop.permute.xlu0 %2850
    %v2852 = vsel %vm434, %v2317, 0
    %v2854 = vsel %vm434, %v2851, 0
    %2856 = vmatprep.subr.mxu0 0.0
    %2857 = vmatpush1.xpose.msra.mxu0 %v2854
    %2858 = vmatprep.subr.mxu0 0.0
    %2859 = vmatpush1.xpose.msra.mxu0 0.0
    %2860 = vmatprep.subr.mxu0 0.0
    %2861 = vmatpush1.xpose.msra.mxu0 0.0
    %2862 = vmatprep.subr.mxu0 0.0
    %2863 = vmatpush1.xpose.msra.mxu0 0.0
    %2864 = vmatprep.subr.mxu0 0.0
    %2865 = vmatpush1.xpose.msra.mxu0 0.0
    %2866 = vmatprep.subr.mxu0 0.0
    %2867 = vmatpush1.xpose.msra.mxu0 0.0
    %2868 = vmatprep.subr.mxu0 0.0
    %2869 = vmatpush1.xpose.msra.mxu0 0.0
    %2870 = vmatprep.subr.mxu0 0.0
    %2871 = vmatpush1.xpose.msra.mxu0 0.0
    %2872 = vmatprep.subr.mxu0 0.0
    %2873 = vmatpush1.xpose.msra.mxu0 0.0
    %2874 = vmatprep.subr.mxu0 0.0
    %2875 = vmatpush1.xpose.msra.mxu0 0.0
    %2876 = vmatprep.subr.mxu0 0.0
    %2877 = vmatpush1.xpose.msra.mxu0 0.0
    %2878 = vmatprep.subr.mxu0 0.0
    %2879 = vmatpush1.xpose.msra.mxu0 0.0
    %2880 = vmatprep.subr.mxu0 0.0
    %2881 = vmatpush1.xpose.msra.mxu0 0.0
    %2882 = vmatprep.subr.mxu0 0.0
    %2883 = vmatpush1.xpose.msra.mxu0 0.0
    %2884 = vmatprep.subr.mxu0 0.0
    %2885 = vmatpush1.xpose.msra.mxu0 0.0
    %2886 = vmatprep.subr.mxu0 0.0
    %2887 = vmatpush1.xpose.msra.mxu0 0.0
    %2888 = vmatprep.subr.mxu0 0.0
    %2889 = vmatpush1.xpose.msra.mxu0 0.0
    %2890 = vmatprep.subr.mxu0 0.0
    %2891 = vmatpush1.xpose.msra.mxu0 0.0
    %2892 = vmatprep.subr.mxu0 0.0
    %2893 = vmatpush1.xpose.msra.mxu0 0.0
    %2894 = vmatprep.subr.mxu0 0.0
    %2895 = vmatpush1.xpose.msra.mxu0 0.0
    %2896 = vmatprep.subr.mxu0 0.0
    %2897 = vmatpush1.xpose.msra.mxu0 0.0
    %2898 = vmatprep.subr.mxu0 0.0
    %2899 = vmatpush1.xpose.msra.mxu0 0.0
    %2900 = vmatprep.subr.mxu0 0.0
    %2901 = vmatpush1.xpose.msra.mxu0 0.0
    %2902 = vmatprep.subr.mxu0 0.0
    %2903 = vmatpush1.xpose.msra.mxu0 0.0
    %2904 = vmatprep.subr.mxu0 0.0
    %2905 = vmatpush1.xpose.msra.mxu0 0.0
    %2906 = vmatprep.subr.mxu0 0.0
    %2907 = vmatpush1.xpose.msra.mxu0 0.0
    %2908 = vmatprep.subr.mxu0 0.0
    %2909 = vmatpush1.xpose.msra.mxu0 0.0
    %2910 = vmatprep.subr.mxu0 0.0
    %2911 = vmatpush1.xpose.msra.mxu0 0.0
    %2912 = vmatprep.subr.mxu0 0.0
    %2913 = vmatpush1.xpose.msra.mxu0 0.0
    %2914 = vmatprep.subr.mxu0 0.0
    %2915 = vmatpush1.xpose.msra.mxu0 0.0
    %2916 = vmatprep.subr.mxu0 0.0
    %2917 = vmatpush1.xpose.msra.mxu0 0.0
    %2918 = vmatprep.subr.mxu0 0.0
    %2919 = vmatpush1.xpose.msra.mxu0 0.0
    %2920 = vmatprep.mubr.f32.mxu0 0.0
    %2921 = vmatmul.mubr.f32.gmra.mrb[0].mxu0 %v2852
    %v2922 = vpop.f32.mrb[0].mxu0
    %v2923 = vadd.f32 0.0, %v2922
    %v2924 = vpop.f32.mrb[0].mxu0
    %2925 = vdwg.mxu0
    %v2926 = vmul.f32 %v2391, 0.35355338
    %v2927 = vmul.f32 %v2467, 0.35355338
    %v2928 = vmul.f32 %v2543, 0.35355338
    %v2929 = vmul.f32 %v2619, 0.35355338
    %v2930 = vmul.f32 %v2695, 0.35355338
    %v2931 = vmul.f32 %v2771, 0.35355338
    %v2932 = vmul.f32 %v2847, 0.35355338
    %v2933 = vmul.f32 %v2923, 0.35355338
    %v2934 = vadd.f32 %v2926, %v1054
    %v2935 = vadd.f32 %v2927, %v1058
    %v2936 = vadd.f32 %v2928, %v1054
    %v2937 = vadd.f32 %v2929, %v1058
    %v2938 = vadd.f32 %v2930, %v1054
    %v2939 = vadd.f32 %v2931, %v1058
    %v2940 = vadd.f32 %v2932, %v1054
    %v2941 = vadd.f32 %v2933, %v1058
    %v2942 = vsel %vm434, %v2934, -inf
    %2943 = vmax.xlane.f32.xlu0 %v2942
    %v2944 = vpop.xlane.xlu0 %2943
    %v2945 = vsel %vm434, %v2935, -inf
    %2946 = vmax.xlane.f32.xlu0 %v2945
    %v2947 = vpop.xlane.xlu0 %2946
    %v2948 = vsel %vm434, %v2936, -inf
    %2949 = vmax.xlane.f32.xlu0 %v2948
    %v2950 = vpop.xlane.xlu0 %2949
    %v2951 = vsel %vm434, %v2937, -inf
    %2952 = vmax.xlane.f32.xlu0 %v2951
    %v2953 = vpop.xlane.xlu0 %2952
    %v2954 = vsel %vm434, %v2938, -inf
    %2955 = vmax.xlane.f32.xlu0 %v2954
    %v2956 = vpop.xlane.xlu0 %2955
    %v2957 = vsel %vm434, %v2939, -inf
    %2958 = vmax.xlane.f32.xlu0 %v2957
    %v2959 = vpop.xlane.xlu0 %2958
    %v2960 = vsel %vm434, %v2940, -inf
    %2961 = vmax.xlane.f32.xlu0 %v2960
    %v2962 = vpop.xlane.xlu0 %2961
    %v2963 = vsel %vm434, %v2941, -inf
    %2964 = vmax.xlane.f32.xlu0 %v2963
    %v2965 = vpop.xlane.xlu0 %2964
    %v2966 = vsub.f32 %v2934, %v2944
    %v2967 = vsub.f32 %v2935, %v2947
    %v2968 = vsub.f32 %v2936, %v2950
    %v2969 = vsub.f32 %v2937, %v2953
    %v2970 = vsub.f32 %v2938, %v2956
    %v2971 = vsub.f32 %v2939, %v2959
    %v2972 = vsub.f32 %v2940, %v2962
    %v2973 = vsub.f32 %v2941, %v2965
    %v2974 = vmul.f32 %v2966, 1.442695
    %v2975 = vpow.pop %v2974
    %v2976 = vmul.f32 %v2967, 1.442695
    %v2977 = vpow.pop %v2976
    %v2978 = vmul.f32 %v2968, 1.442695
    %v2979 = vpow.pop %v2978
    %v2980 = vmul.f32 %v2969, 1.442695
    %v2981 = vpow.pop %v2980
    %v2982 = vmul.f32 %v2970, 1.442695
    %v2983 = vpow.pop %v2982
    %v2984 = vmul.f32 %v2971, 1.442695
    %v2985 = vpow.pop %v2984
    %v2986 = vmul.f32 %v2972, 1.442695
    %v2987 = vpow.pop %v2986
    %v2988 = vmul.f32 %v2973, 1.442695
    %v2989 = vpow.pop %v2988
    %v2990 = vsel %vm434, %v2975, 0.0
    %2991 = vadd.xlane.f32.xlu0 %v2990
    %v2992 = vpop.xlane.xlu0 %2991
    %v2993 = vsel %vm434, %v2977, 0.0
    %2994 = vadd.xlane.f32.xlu0 %v2993
    %v2995 = vpop.xlane.xlu0 %2994
    %v2996 = vsel %vm434, %v2979, 0.0
    %2997 = vadd.xlane.f32.xlu0 %v2996
    %v2998 = vpop.xlane.xlu0 %2997
    %v2999 = vsel %vm434, %v2981, 0.0
    %3000 = vadd.xlane.f32.xlu0 %v2999
    %v3001 = vpop.xlane.xlu0 %3000
    %v3002 = vsel %vm434, %v2983, 0.0
    %3003 = vadd.xlane.f32.xlu0 %v3002
    %v3004 = vpop.xlane.xlu0 %3003
    %v3005 = vsel %vm434, %v2985, 0.0
    %3006 = vadd.xlane.f32.xlu0 %v3005
    %v3007 = vpop.xlane.xlu0 %3006
    %v3008 = vsel %vm434, %v2987, 0.0
    %3009 = vadd.xlane.f32.xlu0 %v3008
    %v3010 = vpop.xlane.xlu0 %3009
    %v3011 = vsel %vm434, %v2989, 0.0
    %3012 = vadd.xlane.f32.xlu0 %v3011
    %v3013 = vpop.xlane.xlu0 %3012
    %v3014 = vrcp.pop %v2992
    %v3015 = vrcp.pop %v2995
    %v3016 = vrcp.pop %v2998
    %v3017 = vrcp.pop %v3001
    %v3018 = vrcp.pop %v3004
    %v3019 = vrcp.pop %v3007
    %v3020 = vrcp.pop %v3010
    %v3021 = vrcp.pop %v3013
    %v3022 = vmul.f32 %v2975, %v3014
    %v3023 = vmul.f32 %v2977, %v3015
    %v3024 = vmul.f32 %v2979, %v3016
    %v3025 = vmul.f32 %v2981, %v3017
    %v3026 = vmul.f32 %v2983, %v3018
    %v3027 = vmul.f32 %v2985, %v3019
    %v3028 = vmul.f32 %v2987, %v3020
    %v3029 = vmul.f32 %v2989, %v3021
    %3030 = vrot.lane.b32.xlu0 %v2296, 64
    %v3031 = vpop.permute.xlu0 %3030
    %v3034 = vsel %vm434, %v3022, 0
    %3036 = vmatprep.subr.mxu0 0.0
    %3037 = vmatpush1.msra.mxu0 %v3031
    %3038 = vmatprep.subr.mxu0 0.0
    %3039 = vmatpush1.msra.mxu0 0.0
    %3040 = vmatprep.subr.mxu0 0.0
    %3041 = vmatpush1.msra.mxu0 0.0
    %3042 = vmatprep.subr.mxu0 0.0
    %3043 = vmatpush1.msra.mxu0 0.0
    %3044 = vmatprep.subr.mxu0 0.0
    %3045 = vmatpush1.msra.mxu0 0.0
    %3046 = vmatprep.subr.mxu0 0.0
    %3047 = vmatpush1.msra.mxu0 0.0
    %3048 = vmatprep.subr.mxu0 0.0
    %3049 = vmatpush1.msra.mxu0 0.0
    %3050 = vmatprep.subr.mxu0 0.0
    %3051 = vmatpush1.msra.mxu0 0.0
    %3052 = vmatprep.subr.mxu0 0.0
    %3053 = vmatpush1.msra.mxu0 0.0
    %3054 = vmatprep.subr.mxu0 0.0
    %3055 = vmatpush1.msra.mxu0 0.0
    %3056 = vmatprep.subr.mxu0 0.0
    %3057 = vmatpush1.msra.mxu0 0.0
    %3058 = vmatprep.subr.mxu0 0.0
    %3059 = vmatpush1.msra.mxu0 0.0
    %3060 = vmatprep.subr.mxu0 0.0
    %3061 = vmatpush1.msra.mxu0 0.0
    %3062 = vmatprep.subr.mxu0 0.0
    %3063 = vmatpush1.msra.mxu0 0.0
    %3064 = vmatprep.subr.mxu0 0.0
    %3065 = vmatpush1.msra.mxu0 0.0
    %3066 = vmatprep.subr.mxu0 0.0
    %3067 = vmatpush1.msra.mxu0 0.0
    %3068 = vmatprep.subr.mxu0 0.0
    %3069 = vmatpush1.msra.mxu0 0.0
    %3070 = vmatprep.subr.mxu0 0.0
    %3071 = vmatpush1.msra.mxu0 0.0
    %3072 = vmatprep.subr.mxu0 0.0
    %3073 = vmatpush1.msra.mxu0 0.0
    %3074 = vmatprep.subr.mxu0 0.0
    %3075 = vmatpush1.msra.mxu0 0.0
    %3076 = vmatprep.subr.mxu0 0.0
    %3077 = vmatpush1.msra.mxu0 0.0
    %3078 = vmatprep.subr.mxu0 0.0
    %3079 = vmatpush1.msra.mxu0 0.0
    %3080 = vmatprep.subr.mxu0 0.0
    %3081 = vmatpush1.msra.mxu0 0.0
    %3082 = vmatprep.subr.mxu0 0.0
    %3083 = vmatpush1.msra.mxu0 0.0
    %3084 = vmatprep.subr.mxu0 0.0
    %3085 = vmatpush1.msra.mxu0 0.0
    %3086 = vmatprep.subr.mxu0 0.0
    %3087 = vmatpush1.msra.mxu0 0.0
    %3088 = vmatprep.subr.mxu0 0.0
    %3089 = vmatpush1.msra.mxu0 0.0
    %3090 = vmatprep.subr.mxu0 0.0
    %3091 = vmatpush1.msra.mxu0 0.0
    %3092 = vmatprep.subr.mxu0 0.0
    %3093 = vmatpush1.msra.mxu0 0.0
    %3094 = vmatprep.subr.mxu0 0.0
    %3095 = vmatpush1.msra.mxu0 0.0
    %3096 = vmatprep.subr.mxu0 0.0
    %3097 = vmatpush1.msra.mxu0 0.0
    %3098 = vmatprep.subr.mxu0 0.0
    %3099 = vmatpush1.msra.mxu0 0.0
    %3100 = vmatprep.mubr.f32.mxu0 0.0
    %3101 = vmatmul.mubr.f32.gmra.mrb[0].mxu0 %v3034
    %v3102 = vpop.f32.mrb[0].mxu0
    %v3103 = vadd.f32 0.0, %v3102
    %v3104 = vpop.f32.mrb[0].mxu0
    %3105 = vdwg.mxu0
    %3106 = vrot.lane.b32.xlu0 %v2301, 64
    %v3107 = vpop.permute.xlu0 %3106
    %v3110 = vsel %vm434, %v3023, 0
    %3112 = vmatprep.subr.mxu0 0.0
    %3113 = vmatpush1.msra.mxu0 %v3107
    %3114 = vmatprep.subr.mxu0 0.0
    %3115 = vmatpush1.msra.mxu0 0.0
    %3116 = vmatprep.subr.mxu0 0.0
    %3117 = vmatpush1.msra.mxu0 0.0
    %3118 = vmatprep.subr.mxu0 0.0
    %3119 = vmatpush1.msra.mxu0 0.0
    %3120 = vmatprep.subr.mxu0 0.0
    %3121 = vmatpush1.msra.mxu0 0.0
    %3122 = vmatprep.subr.mxu0 0.0
    %3123 = vmatpush1.msra.mxu0 0.0
    %3124 = vmatprep.subr.mxu0 0.0
    %3125 = vmatpush1.msra.mxu0 0.0
    %3126 = vmatprep.subr.mxu0 0.0
    %3127 = vmatpush1.msra.mxu0 0.0
    %3128 = vmatprep.subr.mxu0 0.0
    %3129 = vmatpush1.msra.mxu0 0.0
    %3130 = vmatprep.subr.mxu0 0.0
    %3131 = vmatpush1.msra.mxu0 0.0
    %3132 = vmatprep.subr.mxu0 0.0
    %3133 = vmatpush1.msra.mxu0 0.0
    %3134 = vmatprep.subr.mxu0 0.0
    %3135 = vmatpush1.msra.mxu0 0.0
    %3136 = vmatprep.subr.mxu0 0.0
    %3137 = vmatpush1.msra.mxu0 0.0
    %3138 = vmatprep.subr.mxu0 0.0
    %3139 = vmatpush1.msra.mxu0 0.0
    %3140 = vmatprep.subr.mxu0 0.0
    %3141 = vmatpush1.msra.mxu0 0.0
    %3142 = vmatprep.subr.mxu0 0.0
    %3143 = vmatpush1.msra.mxu0 0.0
    %3144 = vmatprep.subr.mxu0 0.0
    %3145 = vmatpush1.msra.mxu0 0.0
    %3146 = vmatprep.subr.mxu0 0.0
    %3147 = vmatpush1.msra.mxu0 0.0
    %3148 = vmatprep.subr.mxu0 0.0
    %3149 = vmatpush1.msra.mxu0 0.0
    %3150 = vmatprep.subr.mxu0 0.0
    %3151 = vmatpush1.msra.mxu0 0.0
    %3152 = vmatprep.subr.mxu0 0.0
    %3153 = vmatpush1.msra.mxu0 0.0
    %3154 = vmatprep.subr.mxu0 0.0
    %3155 = vmatpush1.msra.mxu0 0.0
    %3156 = vmatprep.subr.mxu0 0.0
    %3157 = vmatpush1.msra.mxu0 0.0
    %3158 = vmatprep.subr.mxu0 0.0
    %3159 = vmatpush1.msra.mxu0 0.0
    %3160 = vmatprep.subr.mxu0 0.0
    %3161 = vmatpush1.msra.mxu0 0.0
    %3162 = vmatprep.subr.mxu0 0.0
    %3163 = vmatpush1.msra.mxu0 0.0
    %3164 = vmatprep.subr.mxu0 0.0
    %3165 = vmatpush1.msra.mxu0 0.0
    %3166 = vmatprep.subr.mxu0 0.0
    %3167 = vmatpush1.msra.mxu0 0.0
    %3168 = vmatprep.subr.mxu0 0.0
    %3169 = vmatpush1.msra.mxu0 0.0
    %3170 = vmatprep.subr.mxu0 0.0
    %3171 = vmatpush1.msra.mxu0 0.0
    %3172 = vmatprep.subr.mxu0 0.0
    %3173 = vmatpush1.msra.mxu0 0.0
    %3174 = vmatprep.subr.mxu0 0.0
    %3175 = vmatpush1.msra.mxu0 0.0
    %3176 = vmatprep.mubr.f32.mxu0 0.0
    %3177 = vmatmul.mubr.f32.gmra.mrb[0].mxu0 %v3110
    %v3178 = vpop.f32.mrb[0].mxu0
    %v3179 = vadd.f32 0.0, %v3178
    %v3180 = vpop.f32.mrb[0].mxu0
    %3181 = vdwg.mxu0
    %3182 = vrot.lane.b32.xlu0 %v2307, 64
    %v3183 = vpop.permute.xlu0 %3182
    %v3186 = vsel %vm434, %v3024, 0
    %3188 = vmatprep.subr.mxu0 0.0
    %3189 = vmatpush1.msra.mxu0 %v3183
    %3190 = vmatprep.subr.mxu0 0.0
    %3191 = vmatpush1.msra.mxu0 0.0
    %3192 = vmatprep.subr.mxu0 0.0
    %3193 = vmatpush1.msra.mxu0 0.0
    %3194 = vmatprep.subr.mxu0 0.0
    %3195 = vmatpush1.msra.mxu0 0.0
    %3196 = vmatprep.subr.mxu0 0.0
    %3197 = vmatpush1.msra.mxu0 0.0
    %3198 = vmatprep.subr.mxu0 0.0
    %3199 = vmatpush1.msra.mxu0 0.0
    %3200 = vmatprep.subr.mxu0 0.0
    %3201 = vmatpush1.msra.mxu0 0.0
    %3202 = vmatprep.subr.mxu0 0.0
    %3203 = vmatpush1.msra.mxu0 0.0
    %3204 = vmatprep.subr.mxu0 0.0
    %3205 = vmatpush1.msra.mxu0 0.0
    %3206 = vmatprep.subr.mxu0 0.0
    %3207 = vmatpush1.msra.mxu0 0.0
    %3208 = vmatprep.subr.mxu0 0.0
    %3209 = vmatpush1.msra.mxu0 0.0
    %3210 = vmatprep.subr.mxu0 0.0
    %3211 = vmatpush1.msra.mxu0 0.0
    %3212 = vmatprep.subr.mxu0 0.0
    %3213 = vmatpush1.msra.mxu0 0.0
    %3214 = vmatprep.subr.mxu0 0.0
    %3215 = vmatpush1.msra.mxu0 0.0
    %3216 = vmatprep.subr.mxu0 0.0
    %3217 = vmatpush1.msra.mxu0 0.0
    %3218 = vmatprep.subr.mxu0 0.0
    %3219 = vmatpush1.msra.mxu0 0.0
    %3220 = vmatprep.subr.mxu0 0.0
    %3221 = vmatpush1.msra.mxu0 0.0
    %3222 = vmatprep.subr.mxu0 0.0
    %3223 = vmatpush1.msra.mxu0 0.0
    %3224 = vmatprep.subr.mxu0 0.0
    %3225 = vmatpush1.msra.mxu0 0.0
    %3226 = vmatprep.subr.mxu0 0.0
    %3227 = vmatpush1.msra.mxu0 0.0
    %3228 = vmatprep.subr.mxu0 0.0
    %3229 = vmatpush1.msra.mxu0 0.0
    %3230 = vmatprep.subr.mxu0 0.0
    %3231 = vmatpush1.msra.mxu0 0.0
    %3232 = vmatprep.subr.mxu0 0.0
    %3233 = vmatpush1.msra.mxu0 0.0
    %3234 = vmatprep.subr.mxu0 0.0
    %3235 = vmatpush1.msra.mxu0 0.0
    %3236 = vmatprep.subr.mxu0 0.0
    %3237 = vmatpush1.msra.mxu0 0.0
    %3238 = vmatprep.subr.mxu0 0.0
    %3239 = vmatpush1.msra.mxu0 0.0
    %3240 = vmatprep.subr.mxu0 0.0
    %3241 = vmatpush1.msra.mxu0 0.0
    %3242 = vmatprep.subr.mxu0 0.0
    %3243 = vmatpush1.msra.mxu0 0.0
    %3244 = vmatprep.subr.mxu0 0.0
    %3245 = vmatpush1.msra.mxu0 0.0
    %3246 = vmatprep.subr.mxu0 0.0
    %3247 = vmatpush1.msra.mxu0 0.0
    %3248 = vmatprep.subr.mxu0 0.0
    %3249 = vmatpush1.msra.mxu0 0.0
    %3250 = vmatprep.subr.mxu0 0.0
    %3251 = vmatpush1.msra.mxu0 0.0
    %3252 = vmatprep.mubr.f32.mxu0 0.0
    %3253 = vmatmul.mubr.f32.gmra.mrb[0].mxu0 %v3186
    %v3254 = vpop.f32.mrb[0].mxu0
    %v3255 = vadd.f32 0.0, %v3254
    %v3256 = vpop.f32.mrb[0].mxu0
    %3257 = vdwg.mxu0
    %3258 = vrot.lane.b32.xlu0 %v2309, 64
    %v3259 = vpop.permute.xlu0 %3258
    %v3262 = vsel %vm434, %v3025, 0
    %3264 = vmatprep.subr.mxu0 0.0
    %3265 = vmatpush1.msra.mxu0 %v3259
    %3266 = vmatprep.subr.mxu0 0.0
    %3267 = vmatpush1.msra.mxu0 0.0
    %3268 = vmatprep.subr.mxu0 0.0
    %3269 = vmatpush1.msra.mxu0 0.0
    %3270 = vmatprep.subr.mxu0 0.0
    %3271 = vmatpush1.msra.mxu0 0.0
    %3272 = vmatprep.subr.mxu0 0.0
    %3273 = vmatpush1.msra.mxu0 0.0
    %3274 = vmatprep.subr.mxu0 0.0
    %3275 = vmatpush1.msra.mxu0 0.0
    %3276 = vmatprep.subr.mxu0 0.0
    %3277 = vmatpush1.msra.mxu0 0.0
    %3278 = vmatprep.subr.mxu0 0.0
    %3279 = vmatpush1.msra.mxu0 0.0
    %3280 = vmatprep.subr.mxu0 0.0
    %3281 = vmatpush1.msra.mxu0 0.0
    %3282 = vmatprep.subr.mxu0 0.0
    %3283 = vmatpush1.msra.mxu0 0.0
    %3284 = vmatprep.subr.mxu0 0.0
    %3285 = vmatpush1.msra.mxu0 0.0
    %3286 = vmatprep.subr.mxu0 0.0
    %3287 = vmatpush1.msra.mxu0 0.0
    %3288 = vmatprep.subr.mxu0 0.0
    %3289 = vmatpush1.msra.mxu0 0.0
    %3290 = vmatprep.subr.mxu0 0.0
    %3291 = vmatpush1.msra.mxu0 0.0
    %3292 = vmatprep.subr.mxu0 0.0
    %3293 = vmatpush1.msra.mxu0 0.0
    %3294 = vmatprep.subr.mxu0 0.0
    %3295 = vmatpush1.msra.mxu0 0.0
    %3296 = vmatprep.subr.mxu0 0.0
    %3297 = vmatpush1.msra.mxu0 0.0
    %3298 = vmatprep.subr.mxu0 0.0
    %3299 = vmatpush1.msra.mxu0 0.0
    %3300 = vmatprep.subr.mxu0 0.0
    %3301 = vmatpush1.msra.mxu0 0.0
    %3302 = vmatprep.subr.mxu0 0.0
    %3303 = vmatpush1.msra.mxu0 0.0
    %3304 = vmatprep.subr.mxu0 0.0
    %3305 = vmatpush1.msra.mxu0 0.0
    %3306 = vmatprep.subr.mxu0 0.0
    %3307 = vmatpush1.msra.mxu0 0.0
    %3308 = vmatprep.subr.mxu0 0.0
    %3309 = vmatpush1.msra.mxu0 0.0
    %3310 = vmatprep.subr.mxu0 0.0
    %3311 = vmatpush1.msra.mxu0 0.0
    %3312 = vmatprep.subr.mxu0 0.0
    %3313 = vmatpush1.msra.mxu0 0.0
    %3314 = vmatprep.subr.mxu0 0.0
    %3315 = vmatpush1.msra.mxu0 0.0
    %3316 = vmatprep.subr.mxu0 0.0
    %3317 = vmatpush1.msra.mxu0 0.0
    %3318 = vmatprep.subr.mxu0 0.0
    %3319 = vmatpush1.msra.mxu0 0.0
    %3320 = vmatprep.subr.mxu0 0.0
    %3321 = vmatpush1.msra.mxu0 0.0
    %3322 = vmatprep.subr.mxu0 0.0
    %3323 = vmatpush1.msra.mxu0 0.0
    %3324 = vmatprep.subr.mxu0 0.0
    %3325 = vmatpush1.msra.mxu0 0.0
    %3326 = vmatprep.subr.mxu0 0.0
    %3327 = vmatpush1.msra.mxu0 0.0
    %3328 = vmatprep.mubr.f32.mxu0 0.0
    %3329 = vmatmul.mubr.f32.gmra.mrb[0].mxu0 %v3262
    %v3330 = vpop.f32.mrb[0].mxu0
    %v3331 = vadd.f32 0.0, %v3330
    %v3332 = vpop.f32.mrb[0].mxu0
    %3333 = vdwg.mxu0
    %3334 = vrot.lane.b32.xlu0 %v2311, 64
    %v3335 = vpop.permute.xlu0 %3334
    %v3338 = vsel %vm434, %v3026, 0
    %3340 = vmatprep.subr.mxu0 0.0
    %3341 = vmatpush1.msra.mxu0 %v3335
    %3342 = vmatprep.subr.mxu0 0.0
    %3343 = vmatpush1.msra.mxu0 0.0
    %3344 = vmatprep.subr.mxu0 0.0
    %3345 = vmatpush1.msra.mxu0 0.0
    %3346 = vmatprep.subr.mxu0 0.0
    %3347 = vmatpush1.msra.mxu0 0.0
    %3348 = vmatprep.subr.mxu0 0.0
    %3349 = vmatpush1.msra.mxu0 0.0
    %3350 = vmatprep.subr.mxu0 0.0
    %3351 = vmatpush1.msra.mxu0 0.0
    %3352 = vmatprep.subr.mxu0 0.0
    %3353 = vmatpush1.msra.mxu0 0.0
    %3354 = vmatprep.subr.mxu0 0.0
    %3355 = vmatpush1.msra.mxu0 0.0
    %3356 = vmatprep.subr.mxu0 0.0
    %3357 = vmatpush1.msra.mxu0 0.0
    %3358 = vmatprep.subr.mxu0 0.0
    %3359 = vmatpush1.msra.mxu0 0.0
    %3360 = vmatprep.subr.mxu0 0.0
    %3361 = vmatpush1.msra.mxu0 0.0
    %3362 = vmatprep.subr.mxu0 0.0
    %3363 = vmatpush1.msra.mxu0 0.0
    %3364 = vmatprep.subr.mxu0 0.0
    %3365 = vmatpush1.msra.mxu0 0.0
    %3366 = vmatprep.subr.mxu0 0.0
    %3367 = vmatpush1.msra.mxu0 0.0
    %3368 = vmatprep.subr.mxu0 0.0
    %3369 = vmatpush1.msra.mxu0 0.0
    %3370 = vmatprep.subr.mxu0 0.0
    %3371 = vmatpush1.msra.mxu0 0.0
    %3372 = vmatprep.subr.mxu0 0.0
    %3373 = vmatpush1.msra.mxu0 0.0
    %3374 = vmatprep.subr.mxu0 0.0
    %3375 = vmatpush1.msra.mxu0 0.0
    %3376 = vmatprep.subr.mxu0 0.0
    %3377 = vmatpush1.msra.mxu0 0.0
    %3378 = vmatprep.subr.mxu0 0.0
    %3379 = vmatpush1.msra.mxu0 0.0
    %3380 = vmatprep.subr.mxu0 0.0
    %3381 = vmatpush1.msra.mxu0 0.0
    %3382 = vmatprep.subr.mxu0 0.0
    %3383 = vmatpush1.msra.mxu0 0.0
    %3384 = vmatprep.subr.mxu0 0.0
    %3385 = vmatpush1.msra.mxu0 0.0
    %3386 = vmatprep.subr.mxu0 0.0
    %3387 = vmatpush1.msra.mxu0 0.0
    %3388 = vmatprep.subr.mxu0 0.0
    %3389 = vmatpush1.msra.mxu0 0.0
    %3390 = vmatprep.subr.mxu0 0.0
    %3391 = vmatpush1.msra.mxu0 0.0
    %3392 = vmatprep.subr.mxu0 0.0
    %3393 = vmatpush1.msra.mxu0 0.0
    %3394 = vmatprep.subr.mxu0 0.0
    %3395 = vmatpush1.msra.mxu0 0.0
    %3396 = vmatprep.subr.mxu0 0.0
    %3397 = vmatpush1.msra.mxu0 0.0
    %3398 = vmatprep.subr.mxu0 0.0
    %3399 = vmatpush1.msra.mxu0 0.0
    %3400 = vmatprep.subr.mxu0 0.0
    %3401 = vmatpush1.msra.mxu0 0.0
    %3402 = vmatprep.subr.mxu0 0.0
    %3403 = vmatpush1.msra.mxu0 0.0
    %3404 = vmatprep.mubr.f32.mxu0 0.0
    %3405 = vmatmul.mubr.f32.gmra.mrb[0].mxu0 %v3338
    %v3406 = vpop.f32.mrb[0].mxu0
    %v3407 = vadd.f32 0.0, %v3406
    %v3408 = vpop.f32.mrb[0].mxu0
    %3409 = vdwg.mxu0
    %3410 = vrot.lane.b32.xlu0 %v2313, 64
    %v3411 = vpop.permute.xlu0 %3410
    %v3414 = vsel %vm434, %v3027, 0
    %3416 = vmatprep.subr.mxu0 0.0
    %3417 = vmatpush1.msra.mxu0 %v3411
    %3418 = vmatprep.subr.mxu0 0.0
    %3419 = vmatpush1.msra.mxu0 0.0
    %3420 = vmatprep.subr.mxu0 0.0
    %3421 = vmatpush1.msra.mxu0 0.0
    %3422 = vmatprep.subr.mxu0 0.0
    %3423 = vmatpush1.msra.mxu0 0.0
    %3424 = vmatprep.subr.mxu0 0.0
    %3425 = vmatpush1.msra.mxu0 0.0
    %3426 = vmatprep.subr.mxu0 0.0
    %3427 = vmatpush1.msra.mxu0 0.0
    %3428 = vmatprep.subr.mxu0 0.0
    %3429 = vmatpush1.msra.mxu0 0.0
    %3430 = vmatprep.subr.mxu0 0.0
    %3431 = vmatpush1.msra.mxu0 0.0
    %3432 = vmatprep.subr.mxu0 0.0
    %3433 = vmatpush1.msra.mxu0 0.0
    %3434 = vmatprep.subr.mxu0 0.0
    %3435 = vmatpush1.msra.mxu0 0.0
    %3436 = vmatprep.subr.mxu0 0.0
    %3437 = vmatpush1.msra.mxu0 0.0
    %3438 = vmatprep.subr.mxu0 0.0
    %3439 = vmatpush1.msra.mxu0 0.0
    %3440 = vmatprep.subr.mxu0 0.0
    %3441 = vmatpush1.msra.mxu0 0.0
    %3442 = vmatprep.subr.mxu0 0.0
    %3443 = vmatpush1.msra.mxu0 0.0
    %3444 = vmatprep.subr.mxu0 0.0
    %3445 = vmatpush1.msra.mxu0 0.0
    %3446 = vmatprep.subr.mxu0 0.0
    %3447 = vmatpush1.msra.mxu0 0.0
    %3448 = vmatprep.subr.mxu0 0.0
    %3449 = vmatpush1.msra.mxu0 0.0
    %3450 = vmatprep.subr.mxu0 0.0
    %3451 = vmatpush1.msra.mxu0 0.0
    %3452 = vmatprep.subr.mxu0 0.0
    %3453 = vmatpush1.msra.mxu0 0.0
    %3454 = vmatprep.subr.mxu0 0.0
    %3455 = vmatpush1.msra.mxu0 0.0
    %3456 = vmatprep.subr.mxu0 0.0
    %3457 = vmatpush1.msra.mxu0 0.0
    %3458 = vmatprep.subr.mxu0 0.0
    %3459 = vmatpush1.msra.mxu0 0.0
    %3460 = vmatprep.subr.mxu0 0.0
    %3461 = vmatpush1.msra.mxu0 0.0
    %3462 = vmatprep.subr.mxu0 0.0
    %3463 = vmatpush1.msra.mxu0 0.0
    %3464 = vmatprep.subr.mxu0 0.0
    %3465 = vmatpush1.msra.mxu0 0.0
    %3466 = vmatprep.subr.mxu0 0.0
    %3467 = vmatpush1.msra.mxu0 0.0
    %3468 = vmatprep.subr.mxu0 0.0
    %3469 = vmatpush1.msra.mxu0 0.0
    %3470 = vmatprep.subr.mxu0 0.0
    %3471 = vmatpush1.msra.mxu0 0.0
    %3472 = vmatprep.subr.mxu0 0.0
    %3473 = vmatpush1.msra.mxu0 0.0
    %3474 = vmatprep.subr.mxu0 0.0
    %3475 = vmatpush1.msra.mxu0 0.0
    %3476 = vmatprep.subr.mxu0 0.0
    %3477 = vmatpush1.msra.mxu0 0.0
    %3478 = vmatprep.subr.mxu0 0.0
    %3479 = vmatpush1.msra.mxu0 0.0
    %3480 = vmatprep.mubr.f32.mxu0 0.0
    %3481 = vmatmul.mubr.f32.gmra.mrb[0].mxu0 %v3414
    %v3482 = vpop.f32.mrb[0].mxu0
    %v3483 = vadd.f32 0.0, %v3482
    %v3484 = vpop.f32.mrb[0].mxu0
    %3485 = vdwg.mxu0
    %3486 = vrot.lane.b32.xlu0 %v2315, 64
    %v3487 = vpop.permute.xlu0 %3486
    %v3490 = vsel %vm434, %v3028, 0
    %3492 = vmatprep.subr.mxu0 0.0
    %3493 = vmatpush1.msra.mxu0 %v3487
    %3494 = vmatprep.subr.mxu0 0.0
    %3495 = vmatpush1.msra.mxu0 0.0
    %3496 = vmatprep.subr.mxu0 0.0
    %3497 = vmatpush1.msra.mxu0 0.0
    %3498 = vmatprep.subr.mxu0 0.0
    %3499 = vmatpush1.msra.mxu0 0.0
    %3500 = vmatprep.subr.mxu0 0.0
    %3501 = vmatpush1.msra.mxu0 0.0
    %3502 = vmatprep.subr.mxu0 0.0
    %3503 = vmatpush1.msra.mxu0 0.0
    %3504 = vmatprep.subr.mxu0 0.0
    %3505 = vmatpush1.msra.mxu0 0.0
    %3506 = vmatprep.subr.mxu0 0.0
    %3507 = vmatpush1.msra.mxu0 0.0
    %3508 = vmatprep.subr.mxu0 0.0
    %3509 = vmatpush1.msra.mxu0 0.0
    %3510 = vmatprep.subr.mxu0 0.0
    %3511 = vmatpush1.msra.mxu0 0.0
    %3512 = vmatprep.subr.mxu0 0.0
    %3513 = vmatpush1.msra.mxu0 0.0
    %3514 = vmatprep.subr.mxu0 0.0
    %3515 = vmatpush1.msra.mxu0 0.0
    %3516 = vmatprep.subr.mxu0 0.0
    %3517 = vmatpush1.msra.mxu0 0.0
    %3518 = vmatprep.subr.mxu0 0.0
    %3519 = vmatpush1.msra.mxu0 0.0
    %3520 = vmatprep.subr.mxu0 0.0
    %3521 = vmatpush1.msra.mxu0 0.0
    %3522 = vmatprep.subr.mxu0 0.0
    %3523 = vmatpush1.msra.mxu0 0.0
    %3524 = vmatprep.subr.mxu0 0.0
    %3525 = vmatpush1.msra.mxu0 0.0
    %3526 = vmatprep.subr.mxu0 0.0
    %3527 = vmatpush1.msra.mxu0 0.0
    %3528 = vmatprep.subr.mxu0 0.0
    %3529 = vmatpush1.msra.mxu0 0.0
    %3530 = vmatprep.subr.mxu0 0.0
    %3531 = vmatpush1.msra.mxu0 0.0
    %3532 = vmatprep.subr.mxu0 0.0
    %3533 = vmatpush1.msra.mxu0 0.0
    %3534 = vmatprep.subr.mxu0 0.0
    %3535 = vmatpush1.msra.mxu0 0.0
    %3536 = vmatprep.subr.mxu0 0.0
    %3537 = vmatpush1.msra.mxu0 0.0
    %3538 = vmatprep.subr.mxu0 0.0
    %3539 = vmatpush1.msra.mxu0 0.0
    %3540 = vmatprep.subr.mxu0 0.0
    %3541 = vmatpush1.msra.mxu0 0.0
    %3542 = vmatprep.subr.mxu0 0.0
    %3543 = vmatpush1.msra.mxu0 0.0
    %3544 = vmatprep.subr.mxu0 0.0
    %3545 = vmatpush1.msra.mxu0 0.0
    %3546 = vmatprep.subr.mxu0 0.0
    %3547 = vmatpush1.msra.mxu0 0.0
    %3548 = vmatprep.subr.mxu0 0.0
    %3549 = vmatpush1.msra.mxu0 0.0
    %3550 = vmatprep.subr.mxu0 0.0
    %3551 = vmatpush1.msra.mxu0 0.0
    %3552 = vmatprep.subr.mxu0 0.0
    %3553 = vmatpush1.msra.mxu0 0.0
    %3554 = vmatprep.subr.mxu0 0.0
    %3555 = vmatpush1.msra.mxu0 0.0
    %3556 = vmatprep.mubr.f32.mxu0 0.0
    %3557 = vmatmul.mubr.f32.gmra.mrb[0].mxu0 %v3490
    %v3558 = vpop.f32.mrb[0].mxu0
    %v3559 = vadd.f32 0.0, %v3558
    %v3560 = vpop.f32.mrb[0].mxu0
    %3561 = vdwg.mxu0
    %3562 = vrot.lane.b32.xlu0 %v2317, 64
    %v3563 = vpop.permute.xlu0 %3562
    %v3566 = vsel %vm434, %v3029, 0
    %3568 = vmatprep.subr.mxu0 0.0
    %3569 = vmatpush1.msra.mxu0 %v3563
    %3570 = vmatprep.subr.mxu0 0.0
    %3571 = vmatpush1.msra.mxu0 0.0
    %3572 = vmatprep.subr.mxu0 0.0
    %3573 = vmatpush1.msra.mxu0 0.0
    %3574 = vmatprep.subr.mxu0 0.0
    %3575 = vmatpush1.msra.mxu0 0.0
    %3576 = vmatprep.subr.mxu0 0.0
    %3577 = vmatpush1.msra.mxu0 0.0
    %3578 = vmatprep.subr.mxu0 0.0
    %3579 = vmatpush1.msra.mxu0 0.0
    %3580 = vmatprep.subr.mxu0 0.0
    %3581 = vmatpush1.msra.mxu0 0.0
    %3582 = vmatprep.subr.mxu0 0.0
    %3583 = vmatpush1.msra.mxu0 0.0
    %3584 = vmatprep.subr.mxu0 0.0
    %3585 = vmatpush1.msra.mxu0 0.0
    %3586 = vmatprep.subr.mxu0 0.0
    %3587 = vmatpush1.msra.mxu0 0.0
    %3588 = vmatprep.subr.mxu0 0.0
    %3589 = vmatpush1.msra.mxu0 0.0
    %3590 = vmatprep.subr.mxu0 0.0
    %3591 = vmatpush1.msra.mxu0 0.0
    %3592 = vmatprep.subr.mxu0 0.0
    %3593 = vmatpush1.msra.mxu0 0.0
    %3594 = vmatprep.subr.mxu0 0.0
    %3595 = vmatpush1.msra.mxu0 0.0
    %3596 = vmatprep.subr.mxu0 0.0
    %3597 = vmatpush1.msra.mxu0 0.0
    %3598 = vmatprep.subr.mxu0 0.0
    %3599 = vmatpush1.msra.mxu0 0.0
    %3600 = vmatprep.subr.mxu0 0.0
    %3601 = vmatpush1.msra.mxu0 0.0
    %3602 = vmatprep.subr.mxu0 0.0
    %3603 = vmatpush1.msra.mxu0 0.0
    %3604 = vmatprep.subr.mxu0 0.0
    %3605 = vmatpush1.msra.mxu0 0.0
    %3606 = vmatprep.subr.mxu0 0.0
    %3607 = vmatpush1.msra.mxu0 0.0
    %3608 = vmatprep.subr.mxu0 0.0
    %3609 = vmatpush1.msra.mxu0 0.0
    %3610 = vmatprep.subr.mxu0 0.0
    %3611 = vmatpush1.msra.mxu0 0.0
    %3612 = vmatprep.subr.mxu0 0.0
    %3613 = vmatpush1.msra.mxu0 0.0
    %3614 = vmatprep.subr.mxu0 0.0
    %3615 = vmatpush1.msra.mxu0 0.0
    %3616 = vmatprep.subr.mxu0 0.0
    %3617 = vmatpush1.msra.mxu0 0.0
    %3618 = vmatprep.subr.mxu0 0.0
    %3619 = vmatpush1.msra.mxu0 0.0
    %3620 = vmatprep.subr.mxu0 0.0
    %3621 = vmatpush1.msra.mxu0 0.0
    %3622 = vmatprep.subr.mxu0 0.0
    %3623 = vmatpush1.msra.mxu0 0.0
    %3624 = vmatprep.subr.mxu0 0.0
    %3625 = vmatpush1.msra.mxu0 0.0
    %3626 = vmatprep.subr.mxu0 0.0
    %3627 = vmatpush1.msra.mxu0 0.0
    %3628 = vmatprep.subr.mxu0 0.0
    %3629 = vmatpush1.msra.mxu0 0.0
    %3630 = vmatprep.subr.mxu0 0.0
    %3631 = vmatpush1.msra.mxu0 0.0
    %3632 = vmatprep.mubr.f32.mxu0 0.0
    %3633 = vmatmul.mubr.f32.gmra.mrb[0].mxu0 %v3566
    %v3634 = vpop.f32.mrb[0].mxu0
    %v3635 = vadd.f32 0.0, %v3634
    %v3636 = vpop.f32.mrb[0].mxu0
    %3637 = vdwg.mxu0
    %3640 = vrot.lane.b32.xlu0 %v3255, 8
    %v3641 = vpop.permute.xlu0 %3640
    %3642 = vrot.lane.b32.xlu0 %v3331, 8
    %v3643 = vpop.permute.xlu0 %3642
    %3648 = vrot.lane.b32.xlu0 %v3407, 16
    %v3649 = vpop.permute.xlu0 %3648
    %3650 = vrot.lane.b32.xlu0 %v3483, 16
    %v3651 = vpop.permute.xlu0 %3650
    %3656 = vrot.lane.b32.xlu0 %v3559, 24
    %v3657 = vpop.permute.xlu0 %3656
    %3658 = vrot.lane.b32.xlu0 %v3635, 24
    %v3659 = vpop.permute.xlu0 %3658
    %v3662 = vsel %vm434, %v3103, %v3641
    %v3663 = vsel %vm434, %v3179, %v3643
    %v3664 = vsel %vm1791, %v3662, %v3649
    %v3665 = vsel %vm1791, %v3663, %v3651
    %v3666 = vsel %vm1794, %v3664, %v3657
    %v3667 = vsel %vm1794, %v3665, %v3659
    %v3668 = vlaneseq
    %v3669 = vshrl.u32 %v3668, 7
    %v3670 = vsub.s32 0, %v3669
    %v3671 = vrot.slane %v2200, %v3670
    %v3673 = vsel %vm171, %v3666, 0
    %v3676 = vsel %vm171, %v3667, 0
    %3678 = vmatprep.subr.mxu0 0.0
    %3679 = vmatpush1.msra.mxu0 %v2195
    %3680 = vmatprep.subr.mxu0 0.0
    %3681 = vmatpush1.msra.mxu0 %v2196
    %3682 = vmatprep.subr.mxu0 0.0
    %3683 = vmatpush1.msra.mxu0 %v2197
    %3684 = vmatprep.subr.mxu0 0.0
    %3685 = vmatpush1.msra.mxu0 %v2198
    %3686 = vmatprep.subr.mxu0 0.0
    %3687 = vmatpush1.msra.mxu0 0.0
    %3688 = vmatprep.subr.mxu0 0.0
    %3689 = vmatpush1.msra.mxu0 0.0
    %3690 = vmatprep.subr.mxu0 0.0
    %3691 = vmatpush1.msra.mxu0 0.0
    %3692 = vmatprep.subr.mxu0 0.0
    %3693 = vmatpush1.msra.mxu0 0.0
    %3694 = vmatprep.subr.mxu0 0.0
    %3695 = vmatpush1.msra.mxu0 0.0
    %3696 = vmatprep.subr.mxu0 0.0
    %3697 = vmatpush1.msra.mxu0 0.0
    %3698 = vmatprep.subr.mxu0 0.0
    %3699 = vmatpush1.msra.mxu0 0.0
    %3700 = vmatprep.subr.mxu0 0.0
    %3701 = vmatpush1.msra.mxu0 0.0
    %3702 = vmatprep.subr.mxu0 0.0
    %3703 = vmatpush1.msra.mxu0 0.0
    %3704 = vmatprep.subr.mxu0 0.0
    %3705 = vmatpush1.msra.mxu0 0.0
    %3706 = vmatprep.subr.mxu0 0.0
    %3707 = vmatpush1.msra.mxu0 0.0
    %3708 = vmatprep.subr.mxu0 0.0
    %3709 = vmatpush1.msra.mxu0 0.0
    %3710 = vmatprep.subr.mxu0 0.0
    %3711 = vmatpush1.msra.mxu0 0.0
    %3712 = vmatprep.subr.mxu0 0.0
    %3713 = vmatpush1.msra.mxu0 0.0
    %3714 = vmatprep.subr.mxu0 0.0
    %3715 = vmatpush1.msra.mxu0 0.0
    %3716 = vmatprep.subr.mxu0 0.0
    %3717 = vmatpush1.msra.mxu0 0.0
    %3718 = vmatprep.subr.mxu0 0.0
    %3719 = vmatpush1.msra.mxu0 0.0
    %3720 = vmatprep.subr.mxu0 0.0
    %3721 = vmatpush1.msra.mxu0 0.0
    %3722 = vmatprep.subr.mxu0 0.0
    %3723 = vmatpush1.msra.mxu0 0.0
    %3724 = vmatprep.subr.mxu0 0.0
    %3725 = vmatpush1.msra.mxu0 0.0
    %3726 = vmatprep.subr.mxu0 0.0
    %3727 = vmatpush1.msra.mxu0 0.0
    %3728 = vmatprep.subr.mxu0 0.0
    %3729 = vmatpush1.msra.mxu0 0.0
    %3730 = vmatprep.subr.mxu0 0.0
    %3731 = vmatpush1.msra.mxu0 0.0
    %3732 = vmatprep.subr.mxu0 0.0
    %3733 = vmatpush1.msra.mxu0 0.0
    %3734 = vmatprep.subr.mxu0 0.0
    %3735 = vmatpush1.msra.mxu0 0.0
    %3736 = vmatprep.subr.mxu0 0.0
    %3737 = vmatpush1.msra.mxu0 0.0
    %3738 = vmatprep.subr.mxu0 0.0
    %3739 = vmatpush1.msra.mxu0 0.0
    %3740 = vmatprep.subr.mxu0 0.0
    %3741 = vmatpush1.msra.mxu0 0.0
    %3742 = vmatprep.mubr.f32.mxu0 0.0
    %3743 = vmatmul.mubr.f32.gmra.mrb[0].mxu0 %v3673
    %v3744 = vpop.f32.mrb[0].mxu0
    %v3745 = vadd.f32 %v3671, %v3744
    %v3746 = vpop.f32.mrb[0].mxu0
    %3747 = vmatprep.mubr.f32.mxu0 0.0
    %3748 = vmatmul.mubr.f32.gmra.mrb[0].mxu0 %v3676
    %v3749 = vpop.f32.mrb[0].mxu0
    %v3750 = vadd.f32 %v3671, %v3749
    %v3751 = vpop.f32.mrb[0].mxu0
    %3752 = vdwg.mxu0
    %v3753 = vadd.f32 %v2185, %v3745
    %v3754 = vadd.f32 %v2186, %v3750
    %v3755 = vsel %vm171, %v3753, 0.0
    %3756 = vadd.xlane.f32.xlu0 %v3755
    %v3757 = vpop.xlane.xlu0 %3756
    %v3758 = vsel %vm171, %v3754, 0.0
    %3759 = vadd.xlane.f32.xlu0 %v3758
    %v3760 = vpop.xlane.xlu0 %3759
    %v3761 = vmul.f32 %v3757, %v263
    %v3762 = vmul.f32 %v3760, %v263
    %v3763 = vsub.f32 %v3753, %v3761
    %v3764 = vsub.f32 %v3754, %v3762
    %v3765 = vmul.f32 %v3763, %v3763
    %v3766 = vmul.f32 %v3764, %v3764
    %v3767 = vsel %vm171, %v3765, 0.0
    %3768 = vadd.xlane.f32.xlu0 %v3767
    %v3769 = vpop.xlane.xlu0 %3768
    %v3770 = vsel %vm171, %v3766, 0.0
    %3771 = vadd.xlane.f32.xlu0 %v3770
    %v3772 = vpop.xlane.xlu0 %3771
    %v3773 = vmul.f32 %v3769, %v263
    %v3774 = vmul.f32 %v3772, %v263
    %v3775 = vadd.f32 %v3773, 1e-12
    %v3776 = vadd.f32 %v3774, 1e-12
    %v3777 = vrsqrt.pop %v3775
    %v3778 = vrsqrt.pop %v3776
    %v3779 = vmul.f32 %v3763, %v3777
    %v3780 = vmul.f32 %v3764, %v3778
    %v3781 = vlaneseq
    %v3782 = vshrl.u32 %v3781, 7
    %v3783 = vsub.s32 1, %v3782
    %v3784 = vrot.slane %v2200, %v3783
    %v3785 = vmul.f32 %v3779, %v3784
    %v3786 = vmul.f32 %v3780, %v3784
    %v3787 = vlaneseq
    %v3788 = vshrl.u32 %v3787, 7
    %v3789 = vsub.s32 2, %v3788
    %v3790 = vrot.slane %v2200, %v3789
    %v3791 = vadd.f32 %v3785, %v3790
    %v3792 = vadd.f32 %v3786, %v3790
    %v3794 = vlaneseq
    %v3795 = vshrl.u32 %v3794, 7
    %v3796 = vsub.s32 0, %v3795
    %v3797 = vrot.slane %v2207, %v3796
    %v3800 = vsel %vm171, %v3791, 0
    %v3803 = vsel %vm171, %v3792, 0
    %3805 = vmatprep.subr.mxu0 0.0
    %3806 = vmatpush1.msra.mxu0 %v2202
    %3807 = vmatprep.subr.mxu0 0.0
    %3808 = vmatpush1.msra.mxu0 %v2203
    %3809 = vmatprep.subr.mxu0 0.0
    %3810 = vmatpush1.msra.mxu0 %v2204
    %3811 = vmatprep.subr.mxu0 0.0
    %3812 = vmatpush1.msra.mxu0 %v2205
    %3813 = vmatprep.subr.mxu0 0.0
    %3814 = vmatpush1.msra.mxu0 0.0
    %3815 = vmatprep.subr.mxu0 0.0
    %3816 = vmatpush1.msra.mxu0 0.0
    %3817 = vmatprep.subr.mxu0 0.0
    %3818 = vmatpush1.msra.mxu0 0.0
    %3819 = vmatprep.subr.mxu0 0.0
    %3820 = vmatpush1.msra.mxu0 0.0
    %3821 = vmatprep.subr.mxu0 0.0
    %3822 = vmatpush1.msra.mxu0 0.0
    %3823 = vmatprep.subr.mxu0 0.0
    %3824 = vmatpush1.msra.mxu0 0.0
    %3825 = vmatprep.subr.mxu0 0.0
    %3826 = vmatpush1.msra.mxu0 0.0
    %3827 = vmatprep.subr.mxu0 0.0
    %3828 = vmatpush1.msra.mxu0 0.0
    %3829 = vmatprep.subr.mxu0 0.0
    %3830 = vmatpush1.msra.mxu0 0.0
    %3831 = vmatprep.subr.mxu0 0.0
    %3832 = vmatpush1.msra.mxu0 0.0
    %3833 = vmatprep.subr.mxu0 0.0
    %3834 = vmatpush1.msra.mxu0 0.0
    %3835 = vmatprep.subr.mxu0 0.0
    %3836 = vmatpush1.msra.mxu0 0.0
    %3837 = vmatprep.subr.mxu0 0.0
    %3838 = vmatpush1.msra.mxu0 0.0
    %3839 = vmatprep.subr.mxu0 0.0
    %3840 = vmatpush1.msra.mxu0 0.0
    %3841 = vmatprep.subr.mxu0 0.0
    %3842 = vmatpush1.msra.mxu0 0.0
    %3843 = vmatprep.subr.mxu0 0.0
    %3844 = vmatpush1.msra.mxu0 0.0
    %3845 = vmatprep.subr.mxu0 0.0
    %3846 = vmatpush1.msra.mxu0 0.0
    %3847 = vmatprep.subr.mxu0 0.0
    %3848 = vmatpush1.msra.mxu0 0.0
    %3849 = vmatprep.subr.mxu0 0.0
    %3850 = vmatpush1.msra.mxu0 0.0
    %3851 = vmatprep.subr.mxu0 0.0
    %3852 = vmatpush1.msra.mxu0 0.0
    %3853 = vmatprep.subr.mxu0 0.0
    %3854 = vmatpush1.msra.mxu0 0.0
    %3855 = vmatprep.subr.mxu0 0.0
    %3856 = vmatpush1.msra.mxu0 0.0
    %3857 = vmatprep.subr.mxu0 0.0
    %3858 = vmatpush1.msra.mxu0 0.0
    %3859 = vmatprep.subr.mxu0 0.0
    %3860 = vmatpush1.msra.mxu0 0.0
    %3861 = vmatprep.subr.mxu0 0.0
    %3862 = vmatpush1.msra.mxu0 0.0
    %3863 = vmatprep.subr.mxu0 0.0
    %3864 = vmatpush1.msra.mxu0 0.0
    %3865 = vmatprep.subr.mxu0 0.0
    %3866 = vmatpush1.msra.mxu0 0.0
    %3867 = vmatprep.subr.mxu0 0.0
    %3868 = vmatpush1.msra.mxu0 0.0
    %3869 = vmatprep.mubr.f32.mxu0 0.0
    %3870 = vmatmul.mubr.f32.gmra.mrb[0].mxu0 %v3800
    %v3871 = vpop.f32.mrb[0].mxu0
    %v3872 = vadd.f32 %v3797, %v3871
    %v3873 = vpop.f32.mrb[0].mxu0
    %3874 = vmatprep.mubr.f32.mxu0 0.0
    %3875 = vmatmul.mubr.f32.gmra.mrb[0].mxu0 %v3803
    %v3876 = vpop.f32.mrb[0].mxu0
    %v3877 = vadd.f32 %v3797, %v3876
    %v3878 = vpop.f32.mrb[0].mxu0
    %3879 = vdwg.mxu0
    %v3880 = vmul.f32 %v3872, 0.5
    %v3881 = vmul.f32 %v3877, 0.5
    %v3882 = vmul.f32 %v3872, 0.70710677
    %v3883 = vmul.f32 %v3877, 0.70710677
    %v3884 = vand.u32 2147483647, %v3882
    %v3885 = vand.u32 2147483647, %v3883
    %v3886 = vmul.f32 %v3884, 0.3275911
    %v3887 = vmul.f32 %v3885, 0.3275911
    %v3888 = vadd.f32 %v3886, 1.0
    %v3889 = vadd.f32 %v3887, 1.0
    %v3890 = vrcp.pop %v3888
    %v3891 = vrcp.pop %v3889
    %v3892 = vmul.f32 %v3890, 1.0614054
    %v3893 = vmul.f32 %v3891, 1.0614054
    %v3894 = vadd.f32 %v3892, -1.4531521
    %v3895 = vadd.f32 %v3893, -1.4531521
    %v3896 = vmul.f32 %v3894, %v3890
    %v3897 = vmul.f32 %v3895, %v3891
    %v3898 = vadd.f32 %v3896, 1.4214138
    %v3899 = vadd.f32 %v3897, 1.4214138
    %v3900 = vmul.f32 %v3898, %v3890
    %v3901 = vmul.f32 %v3899, %v3891
    %v3902 = vadd.f32 %v3900, -0.28449672
    %v3903 = vadd.f32 %v3901, -0.28449672
    %v3904 = vmul.f32 %v3902, %v3890
    %v3905 = vmul.f32 %v3903, %v3891
    %v3906 = vadd.f32 %v3904, 0.2548296
    %v3907 = vadd.f32 %v3905, 0.2548296
    %v3908 = vmul.f32 %v3906, %v3890
    %v3909 = vmul.f32 %v3907, %v3891
    %v3910 = vsub.f32 0.0, %v3884
    %v3911 = vsub.f32 0.0, %v3885
    %v3912 = vmul.f32 %v3910, %v3884
    %v3913 = vmul.f32 %v3911, %v3885
    %v3914 = vmul.f32 %v3912, 1.442695
    %v3915 = vpow.pop %v3914
    %v3916 = vmul.f32 %v3913, 1.442695
    %v3917 = vpow.pop %v3916
    %v3918 = vmul.f32 %v3908, %v3915
    %v3919 = vmul.f32 %v3909, %v3917
    %v3920 = vsub.f32 1.0, %v3918
    %v3921 = vsub.f32 1.0, %v3919
    %vm3922 = vcmp.lt.f32.partialorder %v3882, 0.0
    %vm3923 = vcmp.lt.f32.partialorder %v3883, 0.0
    %v3924 = vsub.f32 0.0, %v3920
    %v3925 = vsub.f32 0.0, %v3921
    %v3926 = vsel %vm3922, %v3924, %v3920
    %v3927 = vsel %vm3923, %v3925, %v3921
    %v3928 = vadd.f32 %v3926, 1.0
    %v3929 = vadd.f32 %v3927, 1.0
    %v3930 = vmul.f32 %v3880, %v3928
    %v3931 = vmul.f32 %v3881, %v3929
    %v3932 = vlaneseq
    %v3933 = vshrl.u32 %v3932, 7
    %v3934 = vsub.s32 3, %v3933
    %v3935 = vrot.slane %v2200, %v3934
    %v3937 = vsel %vm2065, %v3930, 0
    %v3940 = vsel %vm2065, %v3931, 0
    %3942 = vmatprep.subr.mxu0 0.0
    %3943 = vmatpush1.msra.mxu0 %v2209
    %3944 = vmatprep.subr.mxu0 0.0
    %3945 = vmatpush1.msra.mxu0 %v2210
    %3946 = vmatprep.subr.mxu0 0.0
    %3947 = vmatpush1.msra.mxu0 %v2211
    %3948 = vmatprep.subr.mxu0 0.0
    %3949 = vmatpush1.msra.mxu0 %v2212
    %3950 = vmatprep.subr.mxu0 0.0
    %3951 = vmatpush1.msra.mxu0 %v2213
    %3952 = vmatprep.subr.mxu0 0.0
    %3953 = vmatpush1.msra.mxu0 %v2214
    %3954 = vmatprep.subr.mxu0 0.0
    %3955 = vmatpush1.msra.mxu0 %v2215
    %3956 = vmatprep.subr.mxu0 0.0
    %3957 = vmatpush1.msra.mxu0 %v2216
    %3958 = vmatprep.subr.mxu0 0.0
    %3959 = vmatpush1.msra.mxu0 0.0
    %3960 = vmatprep.subr.mxu0 0.0
    %3961 = vmatpush1.msra.mxu0 0.0
    %3962 = vmatprep.subr.mxu0 0.0
    %3963 = vmatpush1.msra.mxu0 0.0
    %3964 = vmatprep.subr.mxu0 0.0
    %3965 = vmatpush1.msra.mxu0 0.0
    %3966 = vmatprep.subr.mxu0 0.0
    %3967 = vmatpush1.msra.mxu0 0.0
    %3968 = vmatprep.subr.mxu0 0.0
    %3969 = vmatpush1.msra.mxu0 0.0
    %3970 = vmatprep.subr.mxu0 0.0
    %3971 = vmatpush1.msra.mxu0 0.0
    %3972 = vmatprep.subr.mxu0 0.0
    %3973 = vmatpush1.msra.mxu0 0.0
    %3974 = vmatprep.subr.mxu0 0.0
    %3975 = vmatpush1.msra.mxu0 0.0
    %3976 = vmatprep.subr.mxu0 0.0
    %3977 = vmatpush1.msra.mxu0 0.0
    %3978 = vmatprep.subr.mxu0 0.0
    %3979 = vmatpush1.msra.mxu0 0.0
    %3980 = vmatprep.subr.mxu0 0.0
    %3981 = vmatpush1.msra.mxu0 0.0
    %3982 = vmatprep.subr.mxu0 0.0
    %3983 = vmatpush1.msra.mxu0 0.0
    %3984 = vmatprep.subr.mxu0 0.0
    %3985 = vmatpush1.msra.mxu0 0.0
    %3986 = vmatprep.subr.mxu0 0.0
    %3987 = vmatpush1.msra.mxu0 0.0
    %3988 = vmatprep.subr.mxu0 0.0
    %3989 = vmatpush1.msra.mxu0 0.0
    %3990 = vmatprep.subr.mxu0 0.0
    %3991 = vmatpush1.msra.mxu0 0.0
    %3992 = vmatprep.subr.mxu0 0.0
    %3993 = vmatpush1.msra.mxu0 0.0
    %3994 = vmatprep.subr.mxu0 0.0
    %3995 = vmatpush1.msra.mxu0 0.0
    %3996 = vmatprep.subr.mxu0 0.0
    %3997 = vmatpush1.msra.mxu0 0.0
    %3998 = vmatprep.subr.mxu0 0.0
    %3999 = vmatpush1.msra.mxu0 0.0
    %4000 = vmatprep.subr.mxu0 0.0
    %4001 = vmatpush1.msra.mxu0 0.0
    %4002 = vmatprep.subr.mxu0 0.0
    %4003 = vmatpush1.msra.mxu0 0.0
    %4004 = vmatprep.subr.mxu0 0.0
    %4005 = vmatpush1.msra.mxu0 0.0
    %4006 = vmatprep.mubr.f32.mxu0 0.0
    %4007 = vmatmul.mubr.f32.gmra.mrb[0].mxu0 %v3937
    %v4008 = vpop.f32.mrb[0].mxu0
    %v4009 = vadd.f32 %v3935, %v4008
    %v4010 = vpop.f32.mrb[0].mxu0
    %4011 = vmatprep.mubr.f32.mxu0 0.0
    %4012 = vmatmul.mubr.f32.gmra.mrb[0].mxu0 %v3940
    %v4013 = vpop.f32.mrb[0].mxu0
    %v4014 = vadd.f32 %v3935, %v4013
    %v4015 = vpop.f32.mrb[0].mxu0
    %4016 = vdwg.mxu0
    %v4017 = vadd.f32 %v3791, %v4009
    %v4018 = vadd.f32 %v3792, %v4014
    %v4019 = vsel %vm171, %v4017, 0.0
    %4020 = vadd.xlane.f32.xlu0 %v4019
    %v4021 = vpop.xlane.xlu0 %4020
    %v4022 = vsel %vm171, %v4018, 0.0
    %4023 = vadd.xlane.f32.xlu0 %v4022
    %v4024 = vpop.xlane.xlu0 %4023
    %v4025 = vmul.f32 %v4021, %v263
    %v4026 = vmul.f32 %v4024, %v263
    %v4027 = vsub.f32 %v4017, %v4025
    %v4028 = vsub.f32 %v4018, %v4026
    %v4029 = vmul.f32 %v4027, %v4027
    %v4030 = vmul.f32 %v4028, %v4028
    %v4031 = vsel %vm171, %v4029, 0.0
    %4032 = vadd.xlane.f32.xlu0 %v4031
    %v4033 = vpop.xlane.xlu0 %4032
    %v4034 = vsel %vm171, %v4030, 0.0
    %4035 = vadd.xlane.f32.xlu0 %v4034
    %v4036 = vpop.xlane.xlu0 %4035
    %v4037 = vmul.f32 %v4033, %v263
    %v4038 = vmul.f32 %v4036, %v263
    %v4039 = vadd.f32 %v4037, 1e-12
    %v4040 = vadd.f32 %v4038, 1e-12
    %v4041 = vrsqrt.pop %v4039
    %v4042 = vrsqrt.pop %v4040
    %v4043 = vmul.f32 %v4027, %v4041
    %v4044 = vmul.f32 %v4028, %v4042
    %v4045 = vlaneseq
    %v4046 = vshrl.u32 %v4045, 7
    %v4047 = vsub.s32 4, %v4046
    %v4048 = vrot.slane %v2200, %v4047
    %v4049 = vmul.f32 %v4043, %v4048
    %v4050 = vmul.f32 %v4044, %v4048
    %v4051 = vlaneseq
    %v4052 = vshrl.u32 %v4051, 7
    %v4053 = vsub.s32 5, %v4052
    %v4054 = vrot.slane %v2200, %v4053
    %v4055 = vadd.f32 %v4049, %v4054
    %v4056 = vadd.f32 %v4050, %v4054
    %v4057 = vlaneseq
    %v4058 = vshrl.u32 %v4057, 7
    %v4059 = vmul.u32 %v4058, 8
    %vm4060 = vcmp.ge.s32.totalorder %v128, %v4059
    %v4061 = vadd.s32 %v4058, 1
    %v4062 = vmul.u32 %v4061, 8
    %vm4063 = vcmp.lt.s32.totalorder %v128, %v4062
    %vm4064 = vmand %vm4060, %vm4063
    %v4065 = vsel %vm4064, 1, 0
    %v4066 = vcvt.s32.f32 %v4065
    %v4067 = vsub.f32 1.0, %v119
    %v4068 = vsub.f32 1.0, %v120
    %v4069 = vmul.f32 %v4067, %v125
    %v4070 = vmul.f32 %v4068, %v126
    %4072 = vset.pattern.permute.xlu0 0
    %4073 = vperm.xlu0 %4072, %v4069
    %v4074 = vpop.permute.xlu0 %4073
    %4077 = vset.pattern.permute.xlu0 0
    %4078 = vperm.xlu0 %4077, %v4070
    %v4079 = vpop.permute.xlu0 %4078
    %v4081 = vmul.f32 %v4055, %v4074
    %v4082 = vmul.f32 %v4056, %v4079
    %v4084 = vsel %vm1791, %v4066, 0
    %4086 = vmatprep.subr.mxu0 0.0
    %4087 = vmatpush1.msra.mxu0 %v4081
    %4088 = vmatprep.subr.mxu0 0.0
    %4089 = vmatpush1.msra.mxu0 %v4082
    %4090 = vmatprep.subr.mxu0 0.0
    %4091 = vmatpush1.msra.mxu0 0.0
    %4092 = vmatprep.subr.mxu0 0.0
    %4093 = vmatpush1.msra.mxu0 0.0
    %4094 = vmatprep.subr.mxu0 0.0
    %4095 = vmatpush1.msra.mxu0 0.0
    %4096 = vmatprep.subr.mxu0 0.0
    %4097 = vmatpush1.msra.mxu0 0.0
    %4098 = vmatprep.subr.mxu0 0.0
    %4099 = vmatpush1.msra.mxu0 0.0
    %4100 = vmatprep.subr.mxu0 0.0
    %4101 = vmatpush1.msra.mxu0 0.0
    %4102 = vmatprep.subr.mxu0 0.0
    %4103 = vmatpush1.msra.mxu0 0.0
    %4104 = vmatprep.subr.mxu0 0.0
    %4105 = vmatpush1.msra.mxu0 0.0
    %4106 = vmatprep.subr.mxu0 0.0
    %4107 = vmatpush1.msra.mxu0 0.0
    %4108 = vmatprep.subr.mxu0 0.0
    %4109 = vmatpush1.msra.mxu0 0.0
    %4110 = vmatprep.subr.mxu0 0.0
    %4111 = vmatpush1.msra.mxu0 0.0
    %4112 = vmatprep.subr.mxu0 0.0
    %4113 = vmatpush1.msra.mxu0 0.0
    %4114 = vmatprep.subr.mxu0 0.0
    %4115 = vmatpush1.msra.mxu0 0.0
    %4116 = vmatprep.subr.mxu0 0.0
    %4117 = vmatpush1.msra.mxu0 0.0
    %4118 = vmatprep.subr.mxu0 0.0
    %4119 = vmatpush1.msra.mxu0 0.0
    %4120 = vmatprep.subr.mxu0 0.0
    %4121 = vmatpush1.msra.mxu0 0.0
    %4122 = vmatprep.subr.mxu0 0.0
    %4123 = vmatpush1.msra.mxu0 0.0
    %4124 = vmatprep.subr.mxu0 0.0
    %4125 = vmatpush1.msra.mxu0 0.0
    %4126 = vmatprep.subr.mxu0 0.0
    %4127 = vmatpush1.msra.mxu0 0.0
    %4128 = vmatprep.subr.mxu0 0.0
    %4129 = vmatpush1.msra.mxu0 0.0
    %4130 = vmatprep.subr.mxu0 0.0
    %4131 = vmatpush1.msra.mxu0 0.0
    %4132 = vmatprep.subr.mxu0 0.0
    %4133 = vmatpush1.msra.mxu0 0.0
    %4134 = vmatprep.subr.mxu0 0.0
    %4135 = vmatpush1.msra.mxu0 0.0
    %4136 = vmatprep.subr.mxu0 0.0
    %4137 = vmatpush1.msra.mxu0 0.0
    %4138 = vmatprep.subr.mxu0 0.0
    %4139 = vmatpush1.msra.mxu0 0.0
    %4140 = vmatprep.subr.mxu0 0.0
    %4141 = vmatpush1.msra.mxu0 0.0
    %4142 = vmatprep.subr.mxu0 0.0
    %4143 = vmatpush1.msra.mxu0 0.0
    %4144 = vmatprep.subr.mxu0 0.0
    %4145 = vmatpush1.msra.mxu0 0.0
    %4146 = vmatprep.subr.mxu0 0.0
    %4147 = vmatpush1.msra.mxu0 0.0
    %4148 = vmatprep.subr.mxu0 0.0
    %4149 = vmatpush1.msra.mxu0 0.0
    %4150 = vmatprep.mubr.f32.mxu0 0.0
    %4151 = vmatmul.mubr.f32.gmra.mrb[0].mxu0 %v4084
    %v4152 = vpop.f32.mrb[0].mxu0
    %v4153 = vadd.f32 0.0, %v4152
    %v4154 = vpop.f32.mrb[0].mxu0
    %4155 = vdwg.mxu0
    %v4156 = vmul.f32 %v4055, %v151
    %v4157 = vmul.f32 %v4056, %v156
    %4158 = vmatprep.subr.mxu0 0.0
    %4159 = vmatpush1.msra.mxu0 %v4156
    %4160 = vmatprep.subr.mxu0 0.0
    %4161 = vmatpush1.msra.mxu0 %v4157
    %4162 = vmatprep.subr.mxu0 0.0
    %4163 = vmatpush1.msra.mxu0 0.0
    %4164 = vmatprep.subr.mxu0 0.0
    %4165 = vmatpush1.msra.mxu0 0.0
    %4166 = vmatprep.subr.mxu0 0.0
    %4167 = vmatpush1.msra.mxu0 0.0
    %4168 = vmatprep.subr.mxu0 0.0
    %4169 = vmatpush1.msra.mxu0 0.0
    %4170 = vmatprep.subr.mxu0 0.0
    %4171 = vmatpush1.msra.mxu0 0.0
    %4172 = vmatprep.subr.mxu0 0.0
    %4173 = vmatpush1.msra.mxu0 0.0
    %4174 = vmatprep.subr.mxu0 0.0
    %4175 = vmatpush1.msra.mxu0 0.0
    %4176 = vmatprep.subr.mxu0 0.0
    %4177 = vmatpush1.msra.mxu0 0.0
    %4178 = vmatprep.subr.mxu0 0.0
    %4179 = vmatpush1.msra.mxu0 0.0
    %4180 = vmatprep.subr.mxu0 0.0
    %4181 = vmatpush1.msra.mxu0 0.0
    %4182 = vmatprep.subr.mxu0 0.0
    %4183 = vmatpush1.msra.mxu0 0.0
    %4184 = vmatprep.subr.mxu0 0.0
    %4185 = vmatpush1.msra.mxu0 0.0
    %4186 = vmatprep.subr.mxu0 0.0
    %4187 = vmatpush1.msra.mxu0 0.0
    %4188 = vmatprep.subr.mxu0 0.0
    %4189 = vmatpush1.msra.mxu0 0.0
    %4190 = vmatprep.subr.mxu0 0.0
    %4191 = vmatpush1.msra.mxu0 0.0
    %4192 = vmatprep.subr.mxu0 0.0
    %4193 = vmatpush1.msra.mxu0 0.0
    %4194 = vmatprep.subr.mxu0 0.0
    %4195 = vmatpush1.msra.mxu0 0.0
    %4196 = vmatprep.subr.mxu0 0.0
    %4197 = vmatpush1.msra.mxu0 0.0
    %4198 = vmatprep.subr.mxu0 0.0
    %4199 = vmatpush1.msra.mxu0 0.0
    %4200 = vmatprep.subr.mxu0 0.0
    %4201 = vmatpush1.msra.mxu0 0.0
    %4202 = vmatprep.subr.mxu0 0.0
    %4203 = vmatpush1.msra.mxu0 0.0
    %4204 = vmatprep.subr.mxu0 0.0
    %4205 = vmatpush1.msra.mxu0 0.0
    %4206 = vmatprep.subr.mxu0 0.0
    %4207 = vmatpush1.msra.mxu0 0.0
    %4208 = vmatprep.subr.mxu0 0.0
    %4209 = vmatpush1.msra.mxu0 0.0
    %4210 = vmatprep.subr.mxu0 0.0
    %4211 = vmatpush1.msra.mxu0 0.0
    %4212 = vmatprep.subr.mxu0 0.0
    %4213 = vmatpush1.msra.mxu0 0.0
    %4214 = vmatprep.subr.mxu0 0.0
    %4215 = vmatpush1.msra.mxu0 0.0
    %4216 = vmatprep.subr.mxu0 0.0
    %4217 = vmatpush1.msra.mxu0 0.0
    %4218 = vmatprep.subr.mxu0 0.0
    %4219 = vmatpush1.msra.mxu0 0.0
    %4220 = vmatprep.subr.mxu0 0.0
    %4221 = vmatpush1.msra.mxu0 0.0
    %4222 = vmatprep.mubr.f32.mxu0 0.0
    %4223 = vmatmul.mubr.f32.gmra.mrb[0].mxu0 %v4084
    %v4224 = vpop.f32.mrb[0].mxu0
    %v4225 = vadd.f32 0.0, %v4224
    %v4226 = vpop.f32.mrb[0].mxu0
    %4227 = vdwg.mxu0
    %v4228 = vmul.f32 %v4153, %v4153
    %vm4229 = vcmask 254976
    %v4230 = vsel %vm4229, %v4228, 0.0
    %4231 = vadd.xlane.f32.xlu0 %v4230
    %v4232 = vpop.xlane.xlu0 %4231
    %v4233 = vmax.f32 %v4232, 1e-24
    %v4234 = vrsqrt.pop %v4233
    %v4235 = vmul.f32 %v4153, %v4234
    %4236 = vst.msk [vmem:[#allocation11] sm:$0x3] %vm4229, %v4235
    %v4237 = vmul.f32 %v4225, %v4225
    %v4238 = vsel %vm4229, %v4237, 0.0
    %4239 = vadd.xlane.f32.xlu0 %v4238
    %v4240 = vpop.xlane.xlu0 %4239
    %v4241 = vmax.f32 %v4240, 1e-24
    %v4242 = vrsqrt.pop %v4241
    %v4243 = vmul.f32 %v4225, %v4242
    %4244 = vst.msk [vmem:[#allocation12] sm:$0x3] %vm4229, %v4243
    // Predicated region
    $region78: #{bert_forward.1} parent=1 // pred_check
      _
    $region79: #{bert_forward.1} parent=1 // pred_check_branch
      %4246 = sbr.rel (0) target = $region81
    $region80: #{bert_forward.1} parent=1 // pred_region
      %s4248 = ssub.s32 32, 32
      %4249 = vsyncadd [#allocation4], %s4248
      %s4251 = sshll.u32 [#allocation11], 4
      %s4252 = int_to_ptr.vmem [resolvable:$true] %s4251
      %4254 = dma.vmem_to_hbm [thread:$0]  %s4252, 32, %s14, [#allocation4]
    $region81: #{bert_forward.1} parent=1 // pred_fallthru
      _
    // Predicated region
    $region82: #{bert_forward.1} parent=1 // pred_check
      _
    $region83: #{bert_forward.1} parent=1 // pred_check_branch
      %4256 = sbr.rel (0) target = $region85
    $region84: #{bert_forward.1} parent=1 // pred_region
      %s4258 = ssub.s32 32, 32
      %4259 = vsyncadd [#allocation13], %s4258
      %s4261 = sshll.u32 [#allocation12], 4
      %s4262 = int_to_ptr.vmem [resolvable:$true] %s4261
      %4264 = dma.vmem_to_hbm [thread:$0]  %s4262, 32, %s15, [#allocation13]
    $region85: #{bert_forward.1} parent=1 // pred_fallthru
      _
    // Predicated region
    $region86: #{bert_forward.1} parent=1 // pred_check
      _
    $region87: #{bert_forward.1} parent=1 // pred_check_branch
      %4266 = sbr.rel (0) target = $region89
    $region88: #{bert_forward.1} parent=1 // pred_region
      %4267 = dma.done [#allocation4], 32
    $region89: #{bert_forward.1} parent=1 // pred_fallthru
      _
    // Predicated region
    $region90: #{bert_forward.1} parent=1 // pred_check
      _
    $region91: #{bert_forward.1} parent=1 // pred_check_branch
      %4269 = sbr.rel (0) target = $region93
    $region92: #{bert_forward.1} parent=1 // pred_region
      %4270 = dma.done [#allocation13], 32
    $region93: #{bert_forward.1} parent=1 // pred_fallthru
      _
    %4271 = vsyncpa [#allocation3], 1
    %4272 = vsyncpa [#allocation6], 1
    %4273 = vsyncpa [#allocation9], 1
    %4274 = vsyncpa [#allocation4], 1
    %4275 = vsyncpa [#allocation13], 1

</llo_original>
